<compile_context>
chip_gen: v7x
topology: tpu7x:2x2x1
jax: 0.10.0
libtpu: 0.0.40
codegen_flags: <defaults>
</compile_context>

<pallas_src>
import jax
import jax.numpy as jnp
from jax.experimental import pallas as pl
from jax.experimental.pallas import tpu as pltpu

# Block configuration (small shapes consistent with the module).
C_IN, C_MID, C_OUT = 4, 24, 32
KSIZE = 3
PAD = (KSIZE - 1) // 2
CPAD = 128            # lane-dense channel padding
BN_EPS = 1e-5


# ----------------------------------------------------------------------------
# Fused Pallas kernel: conv3x3+BN+ReLU -> conv3x3+BN+ReLU, + conv1x1(x)
# One grid step == one image (batch axis is the parallel grid axis).
# ----------------------------------------------------------------------------
def residual_block_kernel(x_ref, w1_ref, b1_ref, w2_ref, b2_ref,
                          ws_ref, bs_ref, o_ref, xbuf_ref, ybuf_ref):
    """One image of the ResidualBlock forward, VMEM-resident.

    x_ref:    (H+2P, W+2P, CPAD) bf16  zero-padded input (halo + lanes)
    w*_ref:   (K*K, CPAD, CPAD)  bf16  BN-folded conv weights, per tap
    b*_ref:   (1, CPAD)          f32   folded conv-bias + BN shift
    ws_ref:   (CPAD, CPAD)       bf16  1x1 shortcut conv weights
    bs_ref:   (1, CPAD)          f32   shortcut bias
    o_ref:    (H*W, CPAD)        bf16  lane-dense output for this image
    xbuf_ref: (H+2P, W+2P, CPAD) f32   scratch: staged f32 input
    ybuf_ref: (H+2P, W+2P, CPAD) f32   scratch: padded layer-1 activation
    """
    hp, wp, c = xbuf_ref.shape
    h, w = hp - 2 * PAD, wp - 2 * PAD
    m = h * w

    # Stage the bf16 input as f32 once (single aligned pass); all shifted
    # slicing below then stays on f32 refs.
    xbuf_ref[...] = x_ref[...].astype(jnp.float32)

    center_tap = [None]   # bf16 (m, c) interior of x, reused by the shortcut

    def conv_bn_relu(src_ref, w_ref, b_ref, save_center=False):
        # Implicit GEMM: 3 W-shifted strips, each reused for 3 H shifts.
        acc = jnp.zeros((m, c), jnp.float32)
        for dj in range(KSIZE):
            # one misaligned strip load per dj (instead of one per tap),
            # cast to bf16 once per strip for the MXU.
            strip = src_ref[:, dj:dj + w, :].astype(jnp.bfloat16)  # (hp, w, c)
            for di in range(KSIZE):
                a = strip[di:di + h].reshape(m, c)   # major-dim slice: free
                if save_center and di == PAD and dj == PAD:
                    center_tap[0] = a
                acc = acc + jnp.dot(a, w_ref[di * KSIZE + dj],
                                    preferred_element_type=jnp.float32)
        # f32 epilogue (bias + ReLU): v5e-safe.
        return jnp.maximum(acc + b_ref[...], 0.0)

    # --- sublayer 1: conv + BN + ReLU -------------------------------------
    y1 = conv_bn_relu(xbuf_ref, w1_ref, b1_ref, save_center=True)

    # Zero ONLY the halo ring of the layer-1 buffer, then store the interior
    # once (no full-buffer zeroing pass).
    zrow = jnp.zeros((1, wp, c), jnp.float32)
    zcol = jnp.zeros((hp, 1, c), jnp.float32)
    ybuf_ref[0:1, :, :] = zrow
    ybuf_ref[hp - 1:hp, :, :] = zrow
    ybuf_ref[:, 0:1, :] = zcol
    ybuf_ref[:, wp - 1:wp, :] = zcol
    ybuf_ref[PAD:PAD + h, PAD:PAD + w, :] = y1.reshape(h, w, c)

    # --- sublayer 2: conv + BN + ReLU -------------------------------------
    y2 = conv_bn_relu(ybuf_ref, w2_ref, b2_ref)

    # --- shortcut: 1x1 conv on the original input --------------------------
    # Reuse the centre-tap bf16 activation captured during sublayer 1.
    sc = jnp.dot(center_tap[0], ws_ref[...],
                 preferred_element_type=jnp.float32) + bs_ref[...]

    # residual add (f32) then single bf16 store.
    o_ref[...] = (y2 + sc).astype(o_ref.dtype)


# ----------------------------------------------------------------------------
# Pallas wrapper: grid over batch, parallel semantics (v7x dual-core)
# ----------------------------------------------------------------------------
def residual_block_pallas(x_pad, params):
    n, hp, wp, c = x_pad.shape
    h, w = hp - 2 * PAD, wp - 2 * PAD
    m = h * w

    flops = 2 * n * m * c * c * (2 * KSIZE * KSIZE + 1)
    bytes_accessed = (x_pad.size * x_pad.dtype.itemsize
                      + n * m * c * 2
                      + sum(int(p.size) * p.dtype.itemsize
                            for p in params.values()))

    grid_spec = pltpu.PrefetchScalarGridSpec(
        num_scalar_prefetch=0,
        grid=(n,),
        in_specs=[
            pl.BlockSpec((None, hp, wp, c), lambda i: (i, 0, 0, 0)),   # x
            pl.BlockSpec((KSIZE * KSIZE, c, c), lambda i: (0, 0, 0)),  # w1
            pl.BlockSpec((1, c), lambda i: (0, 0)),                    # b1
            pl.BlockSpec((KSIZE * KSIZE, c, c), lambda i: (0, 0, 0)),  # w2
            pl.BlockSpec((1, c), lambda i: (0, 0)),                    # b2
            pl.BlockSpec((c, c), lambda i: (0, 0)),                    # ws
            pl.BlockSpec((1, c), lambda i: (0, 0)),                    # bs
        ],
        out_specs=pl.BlockSpec((None, m, c), lambda i: (i, 0, 0)),
        scratch_shapes=[pltpu.VMEM((hp, wp, c), jnp.float32),   # staged x
                        pltpu.VMEM((hp, wp, c), jnp.float32)],  # layer-1 act
    )
    return pl.pallas_call(
        residual_block_kernel,
        out_shape=jax.ShapeDtypeStruct((n, m, c), jnp.bfloat16),
        grid_spec=grid_spec,
        compiler_params=pltpu.CompilerParams(
            dimension_semantics=("parallel",),
            vmem_limit_bytes=32 * 1024 * 1024),
        cost_estimate=pl.CostEstimate(flops=flops, transcendentals=0,
                                      bytes_accessed=bytes_accessed),
    )(x_pad, params["w1"], params["b1"], params["w2"], params["b2"],
      params["ws"], params["bs"])


@jax.jit
def residual_block_forward(x_nchw, params):
    """NCHW in / NCHW out, like the PyTorch module (glue is plain JAX)."""
    x = jnp.transpose(x_nchw, (0, 2, 3, 1)).astype(jnp.float32)   # NHWC
    n, h, w, cin = x.shape
    # zero-pad: spatial halo for the 3x3 'same' convs + channels to 128 lanes;
    # stored bf16 so the HBM->VMEM DMA is halved.
    x_pad = jnp.pad(x, ((0, 0), (PAD, PAD), (PAD, PAD), (0, CPAD - cin)))
    x_pad = x_pad.astype(jnp.bfloat16)
    out = residual_block_pallas(x_pad, params)                    # (n,h*w,128)
    out = out.reshape(n, h, w, CPAD)[..., :C_OUT].astype(jnp.float32)
    return jnp.transpose(out, (0, 3, 1, 2))                       # NCHW


# ----------------------------------------------------------------------------
# Parameter construction (deterministic, synthetic) + BN fold + lane padding
# ----------------------------------------------------------------------------
def _conv_bn_params(key, cin, cout, k):
    kw, kb, kg, kbe, km, kv = jax.random.split(key, 6)
    fan_in = cin * k * k
    bound = 1.0 / fan_in ** 0.5
    return dict(
        w=jax.random.normal(kw, (k, k, cin, cout), jnp.float32)
        * (2.0 / fan_in) ** 0.5,                                   # HWIO
        b=jax.random.uniform(kb, (cout,), jnp.float32, -bound, bound),
        gamma=1.0 + 0.1 * jax.random.normal(kg, (cout,), jnp.float32),
        beta=0.1 * jax.random.normal(kbe, (cout,), jnp.float32),
        mean=0.1 * jax.random.normal(km, (cout,), jnp.float32),
        var=jnp.abs(jax.random.normal(kv, (cout,), jnp.float32)) + 0.5,
    )


def _fold_pad_conv(layer, cin, cout, k):
    """Fold eval-mode BN into conv weight/bias and pad channels to 128."""
    scale = layer["gamma"] / jnp.sqrt(layer["var"] + BN_EPS)
    w_folded = layer["w"] * scale                                   # (k,k,ci,co)
    bias = (layer["b"] - layer["mean"]) * scale + layer["beta"]
    w_pad = jnp.zeros((k, k, CPAD, CPAD), jnp.float32)
    w_pad = w_pad.at[:, :, :cin, :cout].set(w_folded)
    b_pad = jnp.zeros((CPAD,), jnp.float32).at[:cout].set(bias)
    return (w_pad.reshape(k * k, CPAD, CPAD).astype(jnp.bfloat16),
            b_pad.reshape(1, CPAD))


def make_params(key):
    k1, k2, k3, k4 = jax.random.split(key, 4)
    l1 = _conv_bn_params(k1, C_IN, C_MID, KSIZE)
    l2 = _conv_bn_params(k2, C_MID, C_OUT, KSIZE)
    bound = 1.0 / C_IN ** 0.5
    sc = dict(
        w=jax.random.uniform(k3, (C_IN, C_OUT), jnp.float32, -bound, bound),
        b=jax.random.uniform(k4, (C_OUT,), jnp.float32, -bound, bound),
    )

    w1, b1 = _fold_pad_conv(l1, C_IN, C_MID, KSIZE)
    w2, b2 = _fold_pad_conv(l2, C_MID, C_OUT, KSIZE)
    ws = (jnp.zeros((CPAD, CPAD), jnp.float32)
          .at[:C_IN, :C_OUT].set(sc["w"]).astype(jnp.bfloat16))
    bs = jnp.zeros((CPAD,), jnp.float32).at[:C_OUT].set(sc["b"]).reshape(1, CPAD)

    kernel_params = dict(w1=w1, b1=b1, w2=w2, b2=b2, ws=ws, bs=bs)
    raw_params = dict(l1=l1, l2=l2, sc=sc)
    return kernel_params, raw_params


# ----------------------------------------------------------------------------
# Pure-JAX f32 reference (un-folded BN) for numerical verification
# ----------------------------------------------------------------------------
def reference_forward(x_nchw, raw):
    x = jnp.transpose(x_nchw, (0, 2, 3, 1)).astype(jnp.float32)
    h = x
    for layer in (raw["l1"], raw["l2"]):
        h = jax.lax.conv_general_dilated(
            h, layer["w"], window_strides=(1, 1), padding="SAME",
            dimension_numbers=("NHWC", "HWIO", "NHWC")) + layer["b"]
        h = ((h - layer["mean"]) / jnp.sqrt(layer["var"] + BN_EPS)
             * layer["gamma"] + layer["beta"])
        h = jnp.maximum(h, 0.0)
    sc = jnp.einsum("nhwc,cd->nhwd", x, raw["sc"]["w"]) + raw["sc"]["b"]
    return jnp.transpose(h + sc, (0, 3, 1, 2))


if __name__ == "__main__":
    key = jax.random.PRNGKey(0)
    kx, kp = jax.random.split(key)

    # NCHW input: batch=2, channels=4, spatial=16.  in_channels != out_channels
    # so the shortcut branch is the 1x1 conv, exactly as in the module.
    x = jax.random.normal(kx, (2, C_IN, 16, 16), jnp.float32)
    kernel_params, raw_params = make_params(kp)

    out = residual_block_forward(x, kernel_params)
    out = jax.block_until_ready(out)

    assert out.shape == (2, C_OUT, 16, 16), out.shape
    assert bool(jnp.all(jnp.isfinite(out)))

    # bf16 MXU operands + bf16 output -> compare against the f32 reference with
    # a loose but structure-sensitive tolerance (a wrong tap/fold would be O(1)
    # off, bf16 rounding is O(1e-2)).
    ref = reference_forward(x, raw_params)
    abs_err = float(jnp.max(jnp.abs(out - ref)))
    rel_err = float(jnp.linalg.norm(out - ref) / jnp.linalg.norm(ref))
    assert abs_err < 0.5 and rel_err < 0.08, (abs_err, rel_err)

    print("KERNEL_OK")
</pallas_src>

<mosaic_0001>
module attributes {stable_mosaic.version = 11 : i64} {
  func.func @residual_block_kernel(%arg0: i32, %arg1: memref<1x18x18x128xbf16, #tpu.memory_space<vmem>>, %arg2: memref<9x128x128xbf16, #tpu.memory_space<vmem>>, %arg3: memref<1x128xf32, #tpu.memory_space<vmem>>, %arg4: memref<9x128x128xbf16, #tpu.memory_space<vmem>>, %arg5: memref<1x128xf32, #tpu.memory_space<vmem>>, %arg6: memref<128x128xbf16, #tpu.memory_space<vmem>>, %arg7: memref<1x128xf32, #tpu.memory_space<vmem>>, %arg8: memref<1x256x128xbf16, #tpu.memory_space<vmem>>, %arg9: memref<18x18x128xf32, #tpu.memory_space<vmem>>, %arg10: memref<18x18x128xf32, #tpu.memory_space<vmem>>) attributes {dimension_semantics = [#tpu.dimension_semantics<parallel>], iteration_bounds = array<i64: 2>, scalar_prefetch = 0 : i64, scratch_operands = 2 : i64, tpu.core_type = #tpu.core_type<tc>, window_params = [{transform_indices = @transform_0, window_bounds = array<i64: 1, 18, 18, 128>}, {pipeline_mode = #tpu.pipeline_mode<synchronous>, transform_indices = @transform_1, window_bounds = array<i64: 9, 128, 128>}, {pipeline_mode = #tpu.pipeline_mode<synchronous>, transform_indices = @transform_2, window_bounds = array<i64: 1, 128>}, {pipeline_mode = #tpu.pipeline_mode<synchronous>, transform_indices = @transform_3, window_bounds = array<i64: 9, 128, 128>}, {pipeline_mode = #tpu.pipeline_mode<synchronous>, transform_indices = @transform_4, window_bounds = array<i64: 1, 128>}, {pipeline_mode = #tpu.pipeline_mode<synchronous>, transform_indices = @transform_5, window_bounds = array<i64: 128, 128>}, {pipeline_mode = #tpu.pipeline_mode<synchronous>, transform_indices = @transform_6, window_bounds = array<i64: 1, 128>}, {transform_indices = @transform_7, window_bounds = array<i64: 1, 256, 128>}]} {
    %c0 = arith.constant 0 : index
    %c0_0 = arith.constant 0 : index
    %c0_1 = arith.constant 0 : index
    %c0_2 = arith.constant 0 : index
    %0 = vector.load %arg1[%c0, %c0_0, %c0_1, %c0_2] : memref<1x18x18x128xbf16, #tpu.memory_space<vmem>>, vector<1x18x18x128xbf16>
    %1 = vector.shape_cast %0 : vector<1x18x18x128xbf16> to vector<18x18x128xbf16>
    %2 = arith.extf %1 : vector<18x18x128xbf16> to vector<18x18x128xf32>
    %c0_3 = arith.constant 0 : index
    %c0_4 = arith.constant 0 : index
    %c0_5 = arith.constant 0 : index
    %3 = vector.load %arg9[%c0_3, %c0_4, %c0_5] : memref<18x18x128xf32, #tpu.memory_space<vmem>>, vector<18x18x128xf32>
    tpu.vector_store %arg9[%c0_3, %c0_4, %c0_5], %2 {strides = array<i32>} : memref<18x18x128xf32, #tpu.memory_space<vmem>>, vector<18x18x128xf32>,
    %cst = arith.constant 0.000000e+00 : f32
    %4 = vector.broadcast %cst : f32 to vector<256x128xf32>
    %c0_6 = arith.constant 0 : index
    %c0_7 = arith.constant 0 : index
    %c0_8 = arith.constant 0 : index
    %5 = vector.load %arg9[%c0_6, %c0_7, %c0_8] : memref<18x18x128xf32, #tpu.memory_space<vmem>>, vector<18x16x128xf32>
    %6 = arith.truncf %5 : vector<18x16x128xf32> to vector<18x16x128xbf16>
    %7 = vector.extract_strided_slice %6 {offsets = [0, 0, 0], sizes = [16, 16, 128], strides = [1, 1, 1]} : vector<18x16x128xbf16> to vector<16x16x128xbf16>
    %8 = vector.shape_cast %7 : vector<16x16x128xbf16> to vector<256x128xbf16>
    %c0_9 = arith.constant 0 : index
    %c0_10 = arith.constant 0 : index
    %c0_11 = arith.constant 0 : index
    %9 = vector.load %arg2[%c0_9, %c0_10, %c0_11] : memref<9x128x128xbf16, #tpu.memory_space<vmem>>, vector<1x128x128xbf16>
    %10 = vector.shape_cast %9 : vector<1x128x128xbf16> to vector<128x128xbf16>
    %cst_12 = arith.constant dense<0.000000e+00> : vector<256x128xf32>
    %11 = tpu.matmul %8, %10, %cst_12 {dimension_numbers = #tpu.dot_dimension_numbers<[1], [0], [0], [1], [0, 0, 1, 1], [], []>} : vector<256x128xbf16>, vector<128x128xbf16>, vector<256x128xf32> -> vector<256x128xf32>
    %12 = arith.addf %4, %11 : vector<256x128xf32>
    %13 = vector.extract_strided_slice %6 {offsets = [1, 0, 0], sizes = [16, 16, 128], strides = [1, 1, 1]} : vector<18x16x128xbf16> to vector<16x16x128xbf16>
    %14 = vector.shape_cast %13 : vector<16x16x128xbf16> to vector<256x128xbf16>
    %c3 = arith.constant 3 : index
    %c0_13 = arith.constant 0 : index
    %c0_14 = arith.constant 0 : index
    %15 = vector.load %arg2[%c3, %c0_13, %c0_14] : memref<9x128x128xbf16, #tpu.memory_space<vmem>>, vector<1x128x128xbf16>
    %16 = vector.shape_cast %15 : vector<1x128x128xbf16> to vector<128x128xbf16>
    %cst_15 = arith.constant dense<0.000000e+00> : vector<256x128xf32>
    %17 = tpu.matmul %14, %16, %cst_15 {dimension_numbers = #tpu.dot_dimension_numbers<[1], [0], [0], [1], [0, 0, 1, 1], [], []>} : vector<256x128xbf16>, vector<128x128xbf16>, vector<256x128xf32> -> vector<256x128xf32>
    %18 = arith.addf %12, %17 : vector<256x128xf32>
    %19 = vector.extract_strided_slice %6 {offsets = [2, 0, 0], sizes = [16, 16, 128], strides = [1, 1, 1]} : vector<18x16x128xbf16> to vector<16x16x128xbf16>
    %20 = vector.shape_cast %19 : vector<16x16x128xbf16> to vector<256x128xbf16>
    %c6 = arith.constant 6 : index
    %c0_16 = arith.constant 0 : index
    %c0_17 = arith.constant 0 : index
    %21 = vector.load %arg2[%c6, %c0_16, %c0_17] : memref<9x128x128xbf16, #tpu.memory_space<vmem>>, vector<1x128x128xbf16>
    %22 = vector.shape_cast %21 : vector<1x128x128xbf16> to vector<128x128xbf16>
    %cst_18 = arith.constant dense<0.000000e+00> : vector<256x128xf32>
    %23 = tpu.matmul %20, %22, %cst_18 {dimension_numbers = #tpu.dot_dimension_numbers<[1], [0], [0], [1], [0, 0, 1, 1], [], []>} : vector<256x128xbf16>, vector<128x128xbf16>, vector<256x128xf32> -> vector<256x128xf32>
    %24 = arith.addf %18, %23 : vector<256x128xf32>
    %c0_19 = arith.constant 0 : index
    %c1 = arith.constant 1 : index
    %c0_20 = arith.constant 0 : index
    %25 = vector.load %arg9[%c0_19, %c1, %c0_20] : memref<18x18x128xf32, #tpu.memory_space<vmem>>, vector<18x16x128xf32>
    %26 = arith.truncf %25 : vector<18x16x128xf32> to vector<18x16x128xbf16>
    %27 = vector.extract_strided_slice %26 {offsets = [0, 0, 0], sizes = [16, 16, 128], strides = [1, 1, 1]} : vector<18x16x128xbf16> to vector<16x16x128xbf16>
    %28 = vector.shape_cast %27 : vector<16x16x128xbf16> to vector<256x128xbf16>
    %c1_21 = arith.constant 1 : index
    %c0_22 = arith.constant 0 : index
    %c0_23 = arith.constant 0 : index
    %29 = vector.load %arg2[%c1_21, %c0_22, %c0_23] : memref<9x128x128xbf16, #tpu.memory_space<vmem>>, vector<1x128x128xbf16>
    %30 = vector.shape_cast %29 : vector<1x128x128xbf16> to vector<128x128xbf16>
    %cst_24 = arith.constant dense<0.000000e+00> : vector<256x128xf32>
    %31 = tpu.matmul %28, %30, %cst_24 {dimension_numbers = #tpu.dot_dimension_numbers<[1], [0], [0], [1], [0, 0, 1, 1], [], []>} : vector<256x128xbf16>, vector<128x128xbf16>, vector<256x128xf32> -> vector<256x128xf32>
    %32 = arith.addf %24, %31 : vector<256x128xf32>
    %33 = vector.extract_strided_slice %26 {offsets = [1, 0, 0], sizes = [16, 16, 128], strides = [1, 1, 1]} : vector<18x16x128xbf16> to vector<16x16x128xbf16>
    %34 = vector.shape_cast %33 : vector<16x16x128xbf16> to vector<256x128xbf16>
    %c4 = arith.constant 4 : index
    %c0_25 = arith.constant 0 : index
    %c0_26 = arith.constant 0 : index
    %35 = vector.load %arg2[%c4, %c0_25, %c0_26] : memref<9x128x128xbf16, #tpu.memory_space<vmem>>, vector<1x128x128xbf16>
    %36 = vector.shape_cast %35 : vector<1x128x128xbf16> to vector<128x128xbf16>
    %cst_27 = arith.constant dense<0.000000e+00> : vector<256x128xf32>
    %37 = tpu.matmul %34, %36, %cst_27 {dimension_numbers = #tpu.dot_dimension_numbers<[1], [0], [0], [1], [0, 0, 1, 1], [], []>} : vector<256x128xbf16>, vector<128x128xbf16>, vector<256x128xf32> -> vector<256x128xf32>
    %38 = arith.addf %32, %37 : vector<256x128xf32>
    %39 = vector.extract_strided_slice %26 {offsets = [2, 0, 0], sizes = [16, 16, 128], strides = [1, 1, 1]} : vector<18x16x128xbf16> to vector<16x16x128xbf16>
    %40 = vector.shape_cast %39 : vector<16x16x128xbf16> to vector<256x128xbf16>
    %c7 = arith.constant 7 : index
    %c0_28 = arith.constant 0 : index
    %c0_29 = arith.constant 0 : index
    %41 = vector.load %arg2[%c7, %c0_28, %c0_29] : memref<9x128x128xbf16, #tpu.memory_space<vmem>>, vector<1x128x128xbf16>
    %42 = vector.shape_cast %41 : vector<1x128x128xbf16> to vector<128x128xbf16>
    %cst_30 = arith.constant dense<0.000000e+00> : vector<256x128xf32>
    %43 = tpu.matmul %40, %42, %cst_30 {dimension_numbers = #tpu.dot_dimension_numbers<[1], [0], [0], [1], [0, 0, 1, 1], [], []>} : vector<256x128xbf16>, vector<128x128xbf16>, vector<256x128xf32> -> vector<256x128xf32>
    %44 = arith.addf %38, %43 : vector<256x128xf32>
    %c0_31 = arith.constant 0 : index
    %c2 = arith.constant 2 : index
    %c0_32 = arith.constant 0 : index
    %45 = vector.load %arg9[%c0_31, %c2, %c0_32] : memref<18x18x128xf32, #tpu.memory_space<vmem>>, vector<18x16x128xf32>
    %46 = arith.truncf %45 : vector<18x16x128xf32> to vector<18x16x128xbf16>
    %47 = vector.extract_strided_slice %46 {offsets = [0, 0, 0], sizes = [16, 16, 128], strides = [1, 1, 1]} : vector<18x16x128xbf16> to vector<16x16x128xbf16>
    %48 = vector.shape_cast %47 : vector<16x16x128xbf16> to vector<256x128xbf16>
    %c2_33 = arith.constant 2 : index
    %c0_34 = arith.constant 0 : index
    %c0_35 = arith.constant 0 : index
    %49 = vector.load %arg2[%c2_33, %c0_34, %c0_35] : memref<9x128x128xbf16, #tpu.memory_space<vmem>>, vector<1x128x128xbf16>
    %50 = vector.shape_cast %49 : vector<1x128x128xbf16> to vector<128x128xbf16>
    %cst_36 = arith.constant dense<0.000000e+00> : vector<256x128xf32>
    %51 = tpu.matmul %48, %50, %cst_36 {dimension_numbers = #tpu.dot_dimension_numbers<[1], [0], [0], [1], [0, 0, 1, 1], [], []>} : vector<256x128xbf16>, vector<128x128xbf16>, vector<256x128xf32> -> vector<256x128xf32>
    %52 = arith.addf %44, %51 : vector<256x128xf32>
    %53 = vector.extract_strided_slice %46 {offsets = [1, 0, 0], sizes = [16, 16, 128], strides = [1, 1, 1]} : vector<18x16x128xbf16> to vector<16x16x128xbf16>
    %54 = vector.shape_cast %53 : vector<16x16x128xbf16> to vector<256x128xbf16>
    %c5 = arith.constant 5 : index
    %c0_37 = arith.constant 0 : index
    %c0_38 = arith.constant 0 : index
    %55 = vector.load %arg2[%c5, %c0_37, %c0_38] : memref<9x128x128xbf16, #tpu.memory_space<vmem>>, vector<1x128x128xbf16>
    %56 = vector.shape_cast %55 : vector<1x128x128xbf16> to vector<128x128xbf16>
    %cst_39 = arith.constant dense<0.000000e+00> : vector<256x128xf32>
    %57 = tpu.matmul %54, %56, %cst_39 {dimension_numbers = #tpu.dot_dimension_numbers<[1], [0], [0], [1], [0, 0, 1, 1], [], []>} : vector<256x128xbf16>, vector<128x128xbf16>, vector<256x128xf32> -> vector<256x128xf32>
    %58 = arith.addf %52, %57 : vector<256x128xf32>
    %59 = vector.extract_strided_slice %46 {offsets = [2, 0, 0], sizes = [16, 16, 128], strides = [1, 1, 1]} : vector<18x16x128xbf16> to vector<16x16x128xbf16>
    %60 = vector.shape_cast %59 : vector<16x16x128xbf16> to vector<256x128xbf16>
    %c8 = arith.constant 8 : index
    %c0_40 = arith.constant 0 : index
    %c0_41 = arith.constant 0 : index
    %61 = vector.load %arg2[%c8, %c0_40, %c0_41] : memref<9x128x128xbf16, #tpu.memory_space<vmem>>, vector<1x128x128xbf16>
    %62 = vector.shape_cast %61 : vector<1x128x128xbf16> to vector<128x128xbf16>
    %cst_42 = arith.constant dense<0.000000e+00> : vector<256x128xf32>
    %63 = tpu.matmul %60, %62, %cst_42 {dimension_numbers = #tpu.dot_dimension_numbers<[1], [0], [0], [1], [0, 0, 1, 1], [], []>} : vector<256x128xbf16>, vector<128x128xbf16>, vector<256x128xf32> -> vector<256x128xf32>
    %64 = arith.addf %58, %63 : vector<256x128xf32>
    %c0_43 = arith.constant 0 : index
    %c0_44 = arith.constant 0 : index
    %65 = vector.load %arg3[%c0_43, %c0_44] : memref<1x128xf32, #tpu.memory_space<vmem>>, vector<1x128xf32>
    %66 = vector.broadcast %65 : vector<1x128xf32> to vector<256x128xf32>
    %67 = arith.addf %64, %66 : vector<256x128xf32>
    %cst_45 = arith.constant 0.000000e+00 : f32
    %68 = vector.broadcast %cst_45 : f32 to vector<256x128xf32>
    %69 = arith.maximumf %67, %68 : vector<256x128xf32>
    %cst_46 = arith.constant 0.000000e+00 : f32
    %70 = vector.broadcast %cst_46 : f32 to vector<1x18x128xf32>
    %cst_47 = arith.constant 0.000000e+00 : f32
    %71 = vector.broadcast %cst_47 : f32 to vector<18x1x128xf32>
    %c0_48 = arith.constant 0 : index
    %c0_49 = arith.constant 0 : index
    %c0_50 = arith.constant 0 : index
    %72 = vector.load %arg10[%c0_48, %c0_49, %c0_50] : memref<18x18x128xf32, #tpu.memory_space<vmem>>, vector<1x18x128xf32>
    tpu.vector_store %arg10[%c0_48, %c0_49, %c0_50], %70 {strides = array<i32>} : memref<18x18x128xf32, #tpu.memory_space<vmem>>, vector<1x18x128xf32>,
    %c17 = arith.constant 17 : index
    %c0_51 = arith.constant 0 : index
    %c0_52 = arith.constant 0 : index
    %73 = vector.load %arg10[%c17, %c0_51, %c0_52] : memref<18x18x128xf32, #tpu.memory_space<vmem>>, vector<1x18x128xf32>
    tpu.vector_store %arg10[%c17, %c0_51, %c0_52], %70 {strides = array<i32>} : memref<18x18x128xf32, #tpu.memory_space<vmem>>, vector<1x18x128xf32>,
    %c0_53 = arith.constant 0 : index
    %c0_54 = arith.constant 0 : index
    %c0_55 = arith.constant 0 : index
    %74 = vector.load %arg10[%c0_53, %c0_54, %c0_55] : memref<18x18x128xf32, #tpu.memory_space<vmem>>, vector<18x1x128xf32>
    tpu.vector_store %arg10[%c0_53, %c0_54, %c0_55], %71 {strides = array<i32>} : memref<18x18x128xf32, #tpu.memory_space<vmem>>, vector<18x1x128xf32>,
    %c0_56 = arith.constant 0 : index
    %c17_57 = arith.constant 17 : index
    %c0_58 = arith.constant 0 : index
    %75 = vector.load %arg10[%c0_56, %c17_57, %c0_58] : memref<18x18x128xf32, #tpu.memory_space<vmem>>, vector<18x1x128xf32>
    tpu.vector_store %arg10[%c0_56, %c17_57, %c0_58], %71 {strides = array<i32>} : memref<18x18x128xf32, #tpu.memory_space<vmem>>, vector<18x1x128xf32>,
    %76 = vector.shape_cast %69 : vector<256x128xf32> to vector<16x16x128xf32>
    %c1_59 = arith.constant 1 : index
    %c1_60 = arith.constant 1 : index
    %c0_61 = arith.constant 0 : index
    %77 = vector.load %arg10[%c1_59, %c1_60, %c0_61] : memref<18x18x128xf32, #tpu.memory_space<vmem>>, vector<16x16x128xf32>
    tpu.vector_store %arg10[%c1_59, %c1_60, %c0_61], %76 {strides = array<i32>} : memref<18x18x128xf32, #tpu.memory_space<vmem>>, vector<16x16x128xf32>,
    %cst_62 = arith.constant 0.000000e+00 : f32
    %78 = vector.broadcast %cst_62 : f32 to vector<256x128xf32>
    %c0_63 = arith.constant 0 : index
    %c0_64 = arith.constant 0 : index
    %c0_65 = arith.constant 0 : index
    %79 = vector.load %arg10[%c0_63, %c0_64, %c0_65] : memref<18x18x128xf32, #tpu.memory_space<vmem>>, vector<18x16x128xf32>
    %80 = arith.truncf %79 : vector<18x16x128xf32> to vector<18x16x128xbf16>
    %81 = vector.extract_strided_slice %80 {offsets = [0, 0, 0], sizes = [16, 16, 128], strides = [1, 1, 1]} : vector<18x16x128xbf16> to vector<16x16x128xbf16>
    %82 = vector.shape_cast %81 : vector<16x16x128xbf16> to vector<256x128xbf16>
    %c0_66 = arith.constant 0 : index
    %c0_67 = arith.constant 0 : index
    %c0_68 = arith.constant 0 : index
    %83 = vector.load %arg4[%c0_66, %c0_67, %c0_68] : memref<9x128x128xbf16, #tpu.memory_space<vmem>>, vector<1x128x128xbf16>
    %84 = vector.shape_cast %83 : vector<1x128x128xbf16> to vector<128x128xbf16>
    %cst_69 = arith.constant dense<0.000000e+00> : vector<256x128xf32>
    %85 = tpu.matmul %82, %84, %cst_69 {dimension_numbers = #tpu.dot_dimension_numbers<[1], [0], [0], [1], [0, 0, 1, 1], [], []>} : vector<256x128xbf16>, vector<128x128xbf16>, vector<256x128xf32> -> vector<256x128xf32>
    %86 = arith.addf %78, %85 : vector<256x128xf32>
    %87 = vector.extract_strided_slice %80 {offsets = [1, 0, 0], sizes = [16, 16, 128], strides = [1, 1, 1]} : vector<18x16x128xbf16> to vector<16x16x128xbf16>
    %88 = vector.shape_cast %87 : vector<16x16x128xbf16> to vector<256x128xbf16>
    %c3_70 = arith.constant 3 : index
    %c0_71 = arith.constant 0 : index
    %c0_72 = arith.constant 0 : index
    %89 = vector.load %arg4[%c3_70, %c0_71, %c0_72] : memref<9x128x128xbf16, #tpu.memory_space<vmem>>, vector<1x128x128xbf16>
    %90 = vector.shape_cast %89 : vector<1x128x128xbf16> to vector<128x128xbf16>
    %cst_73 = arith.constant dense<0.000000e+00> : vector<256x128xf32>
    %91 = tpu.matmul %88, %90, %cst_73 {dimension_numbers = #tpu.dot_dimension_numbers<[1], [0], [0], [1], [0, 0, 1, 1], [], []>} : vector<256x128xbf16>, vector<128x128xbf16>, vector<256x128xf32> -> vector<256x128xf32>
    %92 = arith.addf %86, %91 : vector<256x128xf32>
    %93 = vector.extract_strided_slice %80 {offsets = [2, 0, 0], sizes = [16, 16, 128], strides = [1, 1, 1]} : vector<18x16x128xbf16> to vector<16x16x128xbf16>
    %94 = vector.shape_cast %93 : vector<16x16x128xbf16> to vector<256x128xbf16>
    %c6_74 = arith.constant 6 : index
    %c0_75 = arith.constant 0 : index
    %c0_76 = arith.constant 0 : index
    %95 = vector.load %arg4[%c6_74, %c0_75, %c0_76] : memref<9x128x128xbf16, #tpu.memory_space<vmem>>, vector<1x128x128xbf16>
    %96 = vector.shape_cast %95 : vector<1x128x128xbf16> to vector<128x128xbf16>
    %cst_77 = arith.constant dense<0.000000e+00> : vector<256x128xf32>
    %97 = tpu.matmul %94, %96, %cst_77 {dimension_numbers = #tpu.dot_dimension_numbers<[1], [0], [0], [1], [0, 0, 1, 1], [], []>} : vector<256x128xbf16>, vector<128x128xbf16>, vector<256x128xf32> -> vector<256x128xf32>
    %98 = arith.addf %92, %97 : vector<256x128xf32>
    %c0_78 = arith.constant 0 : index
    %c1_79 = arith.constant 1 : index
    %c0_80 = arith.constant 0 : index
    %99 = vector.load %arg10[%c0_78, %c1_79, %c0_80] : memref<18x18x128xf32, #tpu.memory_space<vmem>>, vector<18x16x128xf32>
    %100 = arith.truncf %99 : vector<18x16x128xf32> to vector<18x16x128xbf16>
    %101 = vector.extract_strided_slice %100 {offsets = [0, 0, 0], sizes = [16, 16, 128], strides = [1, 1, 1]} : vector<18x16x128xbf16> to vector<16x16x128xbf16>
    %102 = vector.shape_cast %101 : vector<16x16x128xbf16> to vector<256x128xbf16>
    %c1_81 = arith.constant 1 : index
    %c0_82 = arith.constant 0 : index
    %c0_83 = arith.constant 0 : index
    %103 = vector.load %arg4[%c1_81, %c0_82, %c0_83] : memref<9x128x128xbf16, #tpu.memory_space<vmem>>, vector<1x128x128xbf16>
    %104 = vector.shape_cast %103 : vector<1x128x128xbf16> to vector<128x128xbf16>
    %cst_84 = arith.constant dense<0.000000e+00> : vector<256x128xf32>
    %105 = tpu.matmul %102, %104, %cst_84 {dimension_numbers = #tpu.dot_dimension_numbers<[1], [0], [0], [1], [0, 0, 1, 1], [], []>} : vector<256x128xbf16>, vector<128x128xbf16>, vector<256x128xf32> -> vector<256x128xf32>
    %106 = arith.addf %98, %105 : vector<256x128xf32>
    %107 = vector.extract_strided_slice %100 {offsets = [1, 0, 0], sizes = [16, 16, 128], strides = [1, 1, 1]} : vector<18x16x128xbf16> to vector<16x16x128xbf16>
    %108 = vector.shape_cast %107 : vector<16x16x128xbf16> to vector<256x128xbf16>
    %c4_85 = arith.constant 4 : index
    %c0_86 = arith.constant 0 : index
    %c0_87 = arith.constant 0 : index
    %109 = vector.load %arg4[%c4_85, %c0_86, %c0_87] : memref<9x128x128xbf16, #tpu.memory_space<vmem>>, vector<1x128x128xbf16>
    %110 = vector.shape_cast %109 : vector<1x128x128xbf16> to vector<128x128xbf16>
    %cst_88 = arith.constant dense<0.000000e+00> : vector<256x128xf32>
    %111 = tpu.matmul %108, %110, %cst_88 {dimension_numbers = #tpu.dot_dimension_numbers<[1], [0], [0], [1], [0, 0, 1, 1], [], []>} : vector<256x128xbf16>, vector<128x128xbf16>, vector<256x128xf32> -> vector<256x128xf32>
    %112 = arith.addf %106, %111 : vector<256x128xf32>
    %113 = vector.extract_strided_slice %100 {offsets = [2, 0, 0], sizes = [16, 16, 128], strides = [1, 1, 1]} : vector<18x16x128xbf16> to vector<16x16x128xbf16>
    %114 = vector.shape_cast %113 : vector<16x16x128xbf16> to vector<256x128xbf16>
    %c7_89 = arith.constant 7 : index
    %c0_90 = arith.constant 0 : index
    %c0_91 = arith.constant 0 : index
    %115 = vector.load %arg4[%c7_89, %c0_90, %c0_91] : memref<9x128x128xbf16, #tpu.memory_space<vmem>>, vector<1x128x128xbf16>
    %116 = vector.shape_cast %115 : vector<1x128x128xbf16> to vector<128x128xbf16>
    %cst_92 = arith.constant dense<0.000000e+00> : vector<256x128xf32>
    %117 = tpu.matmul %114, %116, %cst_92 {dimension_numbers = #tpu.dot_dimension_numbers<[1], [0], [0], [1], [0, 0, 1, 1], [], []>} : vector<256x128xbf16>, vector<128x128xbf16>, vector<256x128xf32> -> vector<256x128xf32>
    %118 = arith.addf %112, %117 : vector<256x128xf32>
    %c0_93 = arith.constant 0 : index
    %c2_94 = arith.constant 2 : index
    %c0_95 = arith.constant 0 : index
    %119 = vector.load %arg10[%c0_93, %c2_94, %c0_95] : memref<18x18x128xf32, #tpu.memory_space<vmem>>, vector<18x16x128xf32>
    %120 = arith.truncf %119 : vector<18x16x128xf32> to vector<18x16x128xbf16>
    %121 = vector.extract_strided_slice %120 {offsets = [0, 0, 0], sizes = [16, 16, 128], strides = [1, 1, 1]} : vector<18x16x128xbf16> to vector<16x16x128xbf16>
    %122 = vector.shape_cast %121 : vector<16x16x128xbf16> to vector<256x128xbf16>
    %c2_96 = arith.constant 2 : index
    %c0_97 = arith.constant 0 : index
    %c0_98 = arith.constant 0 : index
    %123 = vector.load %arg4[%c2_96, %c0_97, %c0_98] : memref<9x128x128xbf16, #tpu.memory_space<vmem>>, vector<1x128x128xbf16>
    %124 = vector.shape_cast %123 : vector<1x128x128xbf16> to vector<128x128xbf16>
    %cst_99 = arith.constant dense<0.000000e+00> : vector<256x128xf32>
    %125 = tpu.matmul %122, %124, %cst_99 {dimension_numbers = #tpu.dot_dimension_numbers<[1], [0], [0], [1], [0, 0, 1, 1], [], []>} : vector<256x128xbf16>, vector<128x128xbf16>, vector<256x128xf32> -> vector<256x128xf32>
    %126 = arith.addf %118, %125 : vector<256x128xf32>
    %127 = vector.extract_strided_slice %120 {offsets = [1, 0, 0], sizes = [16, 16, 128], strides = [1, 1, 1]} : vector<18x16x128xbf16> to vector<16x16x128xbf16>
    %128 = vector.shape_cast %127 : vector<16x16x128xbf16> to vector<256x128xbf16>
    %c5_100 = arith.constant 5 : index
    %c0_101 = arith.constant 0 : index
    %c0_102 = arith.constant 0 : index
    %129 = vector.load %arg4[%c5_100, %c0_101, %c0_102] : memref<9x128x128xbf16, #tpu.memory_space<vmem>>, vector<1x128x128xbf16>
    %130 = vector.shape_cast %129 : vector<1x128x128xbf16> to vector<128x128xbf16>
    %cst_103 = arith.constant dense<0.000000e+00> : vector<256x128xf32>
    %131 = tpu.matmul %128, %130, %cst_103 {dimension_numbers = #tpu.dot_dimension_numbers<[1], [0], [0], [1], [0, 0, 1, 1], [], []>} : vector<256x128xbf16>, vector<128x128xbf16>, vector<256x128xf32> -> vector<256x128xf32>
    %132 = arith.addf %126, %131 : vector<256x128xf32>
    %133 = vector.extract_strided_slice %120 {offsets = [2, 0, 0], sizes = [16, 16, 128], strides = [1, 1, 1]} : vector<18x16x128xbf16> to vector<16x16x128xbf16>
    %134 = vector.shape_cast %133 : vector<16x16x128xbf16> to vector<256x128xbf16>
    %c8_104 = arith.constant 8 : index
    %c0_105 = arith.constant 0 : index
    %c0_106 = arith.constant 0 : index
    %135 = vector.load %arg4[%c8_104, %c0_105, %c0_106] : memref<9x128x128xbf16, #tpu.memory_space<vmem>>, vector<1x128x128xbf16>
    %136 = vector.shape_cast %135 : vector<1x128x128xbf16> to vector<128x128xbf16>
    %cst_107 = arith.constant dense<0.000000e+00> : vector<256x128xf32>
    %137 = tpu.matmul %134, %136, %cst_107 {dimension_numbers = #tpu.dot_dimension_numbers<[1], [0], [0], [1], [0, 0, 1, 1], [], []>} : vector<256x128xbf16>, vector<128x128xbf16>, vector<256x128xf32> -> vector<256x128xf32>
    %138 = arith.addf %132, %137 : vector<256x128xf32>
    %c0_108 = arith.constant 0 : index
    %c0_109 = arith.constant 0 : index
    %139 = vector.load %arg5[%c0_108, %c0_109] : memref<1x128xf32, #tpu.memory_space<vmem>>, vector<1x128xf32>
    %140 = vector.broadcast %139 : vector<1x128xf32> to vector<256x128xf32>
    %141 = arith.addf %138, %140 : vector<256x128xf32>
    %cst_110 = arith.constant 0.000000e+00 : f32
    %142 = vector.broadcast %cst_110 : f32 to vector<256x128xf32>
    %143 = arith.maximumf %141, %142 : vector<256x128xf32>
    %c0_111 = arith.constant 0 : index
    %c0_112 = arith.constant 0 : index
    %144 = vector.load %arg6[%c0_111, %c0_112] : memref<128x128xbf16, #tpu.memory_space<vmem>>, vector<128x128xbf16>
    %cst_113 = arith.constant dense<0.000000e+00> : vector<256x128xf32>
    %145 = tpu.matmul %34, %144, %cst_113 {dimension_numbers = #tpu.dot_dimension_numbers<[1], [0], [0], [1], [0, 0, 1, 1], [], []>} : vector<256x128xbf16>, vector<128x128xbf16>, vector<256x128xf32> -> vector<256x128xf32>
    %c0_114 = arith.constant 0 : index
    %c0_115 = arith.constant 0 : index
    %146 = vector.load %arg7[%c0_114, %c0_115] : memref<1x128xf32, #tpu.memory_space<vmem>>, vector<1x128xf32>
    %147 = vector.broadcast %146 : vector<1x128xf32> to vector<256x128xf32>
    %148 = arith.addf %145, %147 : vector<256x128xf32>
    %149 = arith.addf %143, %148 : vector<256x128xf32>
    %150 = arith.truncf %149 : vector<256x128xf32> to vector<256x128xbf16>
    %c0_116 = arith.constant 0 : index
    %c0_117 = arith.constant 0 : index
    %c0_118 = arith.constant 0 : index
    %151 = vector.load %arg8[%c0_116, %c0_117, %c0_118] : memref<1x256x128xbf16, #tpu.memory_space<vmem>>, vector<1x256x128xbf16>
    %152 = vector.shape_cast %151 : vector<1x256x128xbf16> to vector<256x128xbf16>
    %153 = vector.shape_cast %150 : vector<256x128xbf16> to vector<1x256x128xbf16>
    tpu.vector_store %arg8[%c0_116, %c0_117, %c0_118], %153 {strides = array<i32>} : memref<1x256x128xbf16, #tpu.memory_space<vmem>>, vector<1x256x128xbf16>,
    return
  }
  func.func @transform_0(%arg0: i32) -> (i32, i32, i32, i32) {
    %c0_i32 = arith.constant 0 : i32
    %c0_i32_0 = arith.constant 0 : i32
    %c0_i32_1 = arith.constant 0 : i32
    %c0_i32_2 = arith.constant 0 : i32
    return %arg0, %c0_i32, %c0_i32_0, %c0_i32_1 : i32, i32, i32, i32
  }
  func.func @transform_1(%arg0: i32) -> (i32, i32, i32) {
    %c0_i32 = arith.constant 0 : i32
    %c0_i32_0 = arith.constant 0 : i32
    %c0_i32_1 = arith.constant 0 : i32
    %c0_i32_2 = arith.constant 0 : i32
    return %c0_i32, %c0_i32_0, %c0_i32_1 : i32, i32, i32
  }
  func.func @transform_2(%arg0: i32) -> (i32, i32) {
    %c0_i32 = arith.constant 0 : i32
    %c0_i32_0 = arith.constant 0 : i32
    %c0_i32_1 = arith.constant 0 : i32
    return %c0_i32, %c0_i32_0 : i32, i32
  }
  func.func @transform_3(%arg0: i32) -> (i32, i32, i32) {
    %c0_i32 = arith.constant 0 : i32
    %c0_i32_0 = arith.constant 0 : i32
    %c0_i32_1 = arith.constant 0 : i32
    %c0_i32_2 = arith.constant 0 : i32
    return %c0_i32, %c0_i32_0, %c0_i32_1 : i32, i32, i32
  }
  func.func @transform_4(%arg0: i32) -> (i32, i32) {
    %c0_i32 = arith.constant 0 : i32
    %c0_i32_0 = arith.constant 0 : i32
    %c0_i32_1 = arith.constant 0 : i32
    return %c0_i32, %c0_i32_0 : i32, i32
  }
  func.func @transform_5(%arg0: i32) -> (i32, i32) {
    %c0_i32 = arith.constant 0 : i32
    %c0_i32_0 = arith.constant 0 : i32
    %c0_i32_1 = arith.constant 0 : i32
    return %c0_i32, %c0_i32_0 : i32, i32
  }
  func.func @transform_6(%arg0: i32) -> (i32, i32) {
    %c0_i32 = arith.constant 0 : i32
    %c0_i32_0 = arith.constant 0 : i32
    %c0_i32_1 = arith.constant 0 : i32
    return %c0_i32, %c0_i32_0 : i32, i32
  }
  func.func @transform_7(%arg0: i32) -> (i32, i32, i32) {
    %c0_i32 = arith.constant 0 : i32
    %c0_i32_0 = arith.constant 0 : i32
    %c0_i32_1 = arith.constant 0 : i32
    return %arg0, %c0_i32, %c0_i32_0 : i32, i32, i32
  }
}

</mosaic_0001>

<llo_original>
// kernel: residual_block_forward.1
$region0: #{residual_block_forward.1}
  #allocation0 [shape = 'u32[]', space=smem, size = 0x4, offset = 0x4, fixed_abs, tag = 'smem constant byte address 0x4 - core index']
  #allocation1 [shape = 'u32[144,128]{1,0:T(1,128)}', space=vmem, size = 0x12000, scoped, tag = 'internal scratch']
  #allocation2 [shape = 'f32[18,18,128]{2,1,0:T(8,128)}', space=vmem, size = 0x36000, scoped, tag = 'scratch operand']
  #allocation3 [shape = 'f32[18,18,128]{2,1,0:T(8,128)}', space=vmem, size = 0x36000, scoped, tag = 'scratch operand']
  %s0 = inlined_call_operand.vmem [shape: bf16[2,18,18,128], index: 0, kind: input, shape index: {}]
  %s1 = inlined_call_operand.vmem [shape: bf16[9,128,128], index: 1, kind: input, shape index: {}]
  %s2 = inlined_call_operand.vmem [shape: f32[1,128], index: 2, kind: input, shape index: {}]
  %s3 = inlined_call_operand.vmem [shape: bf16[9,128,128], index: 3, kind: input, shape index: {}]
  %s4 = inlined_call_operand.vmem [shape: f32[1,128], index: 4, kind: input, shape index: {}]
  %s5 = inlined_call_operand.vmem [shape: bf16[128,128], index: 5, kind: input, shape index: {}]
  %s6 = inlined_call_operand.vmem [shape: f32[1,128], index: 6, kind: input, shape index: {}]
  %s7 = inlined_call_operand.vmem [shape: bf16[2,256,128], index: 7, kind: output, shape index: {}]
  %s8 = sld [smem:[#allocation0]]
  $region61: #{residual_block_forward.1} parent=0
    _
  %s10 = ssub.s32 1, %s8
  %s11 = scalar_select 0, %s10, %s8
  loop: start=0, step=1, limit=4
  $region2: #{residual_block_forward.1} parent=0 // loop_pre_header
    _
  $region3: #{residual_block_forward.1} parent=0 // loop_header
    %s13 = sphi 0, %s17
    %p14 = scmp.ge.s32.totalorder %s13, 4
    %s23 = sphi 0, %s25
    %s26 = sphi 0, %s23
    %s27 = sphi 0, %s26
    %s43 = sphi 0, %s27
    %s47 = sphi 0, %s47
    %s49 = sphi 0, %s47
    %s50 = sphi 0, %s49
    %s64 = sphi 0, %s50
    %s68 = sphi 0, %s68
    %s70 = sphi 0, %s68
    %s71 = sphi 0, %s70
    %s85 = sphi 0, %s71
    %s89 = sphi 0, %s89
    %s91 = sphi 0, %s89
    %s92 = sphi 0, %s91
    %s106 = sphi 0, %s92
    %s110 = sphi 0, %s110
    %s112 = sphi 0, %s110
    %s113 = sphi 0, %s112
    %s127 = sphi 0, %s113
    %s131 = sphi 0, %s131
    %s133 = sphi 0, %s131
    %s134 = sphi 0, %s133
    %s148 = sphi 0, %s134
    %s152 = sphi 0, %s152
    %s154 = sphi 0, %s152
    %s155 = sphi 0, %s154
    %s169 = sphi 0, %s155
    %s175 = sphi 0, %s177
    %s178 = sphi 0, %s175
    %s179 = sphi 0, %s178
    %s195 = sphi 0, %s179
  $region4: #{residual_block_forward.1} parent=0 // loop_header_branch
    %16 = sbr.rel (%p14) target = $region8
  $region5: #{residual_block_forward.1} parent=0 // loop_body
    %s18 = ssub.s32 %s13, 1
    %s19 = ssub.s32 %s13, 2
    %s20 = sadd.s32 %s13, 1
    %s21 = ssub.s32 %s13, %s20
    %p22 = scmp.eq.s32.totalorder %s21, 0
    %s24 = sadd.s32 %s23, 1
    %s25 = scalar_select %p22, %s23, %s24
    %p28 = pneg %p22
    %p29 = scmp.eq.s32.totalorder %s13, 1
    %p30 = por %p28, %p29
    %p31 = scmp.ne.s32.totalorder %s23, %s26
    %p32 = scmp.eq.s32.totalorder %s13, 0
    %p33 = por %p31, %p32
    %p34 = scmp.ne.s32.totalorder %s23, %s26
    %p35 = scmp.eq.s32.totalorder %s18, 1
    %p36 = por %p34, %p35
    %p37 = scmp.ne.s32.totalorder %s26, %s27
    %p38 = scmp.eq.s32.totalorder %s18, 0
    %p39 = por %p37, %p38
    %p40 = scmp.ne.s32.totalorder %s26, %s27
    %p41 = scmp.eq.s32.totalorder %s19, 1
    %p42 = por %p40, %p41
    %p44 = scmp.ne.s32.totalorder %s27, %s43
    %p45 = scmp.eq.s32.totalorder %s19, 0
    %p46 = por %p44, %p45
    %s48 = sadd.s32 %s47, 1
    %p51 = scmp.eq.s32.totalorder %s13, 1
    %p52 = scmp.ne.s32.totalorder %s47, %s49
    %p53 = scmp.eq.s32.totalorder %s13, 0
    %p54 = por %p52, %p53
    %p55 = scmp.ne.s32.totalorder %s47, %s49
    %p56 = scmp.eq.s32.totalorder %s18, 1
    %p57 = por %p55, %p56
    %p58 = scmp.ne.s32.totalorder %s49, %s50
    %p59 = scmp.eq.s32.totalorder %s18, 0
    %p60 = por %p58, %p59
    %p61 = scmp.ne.s32.totalorder %s49, %s50
    %p62 = scmp.eq.s32.totalorder %s19, 1
    %p63 = por %p61, %p62
    %p65 = scmp.ne.s32.totalorder %s50, %s64
    %p66 = scmp.eq.s32.totalorder %s19, 0
    %p67 = por %p65, %p66
    %s69 = sadd.s32 %s68, 1
    %p72 = scmp.eq.s32.totalorder %s13, 1
    %p73 = scmp.ne.s32.totalorder %s68, %s70
    %p74 = scmp.eq.s32.totalorder %s13, 0
    %p75 = por %p73, %p74
    %p76 = scmp.ne.s32.totalorder %s68, %s70
    %p77 = scmp.eq.s32.totalorder %s18, 1
    %p78 = por %p76, %p77
    %p79 = scmp.ne.s32.totalorder %s70, %s71
    %p80 = scmp.eq.s32.totalorder %s18, 0
    %p81 = por %p79, %p80
    %p82 = scmp.ne.s32.totalorder %s70, %s71
    %p83 = scmp.eq.s32.totalorder %s19, 1
    %p84 = por %p82, %p83
    %p86 = scmp.ne.s32.totalorder %s71, %s85
    %p87 = scmp.eq.s32.totalorder %s19, 0
    %p88 = por %p86, %p87
    %s90 = sadd.s32 %s89, 1
    %p93 = scmp.eq.s32.totalorder %s13, 1
    %p94 = scmp.ne.s32.totalorder %s89, %s91
    %p95 = scmp.eq.s32.totalorder %s13, 0
    %p96 = por %p94, %p95
    %p97 = scmp.ne.s32.totalorder %s89, %s91
    %p98 = scmp.eq.s32.totalorder %s18, 1
    %p99 = por %p97, %p98
    %p100 = scmp.ne.s32.totalorder %s91, %s92
    %p101 = scmp.eq.s32.totalorder %s18, 0
    %p102 = por %p100, %p101
    %p103 = scmp.ne.s32.totalorder %s91, %s92
    %p104 = scmp.eq.s32.totalorder %s19, 1
    %p105 = por %p103, %p104
    %p107 = scmp.ne.s32.totalorder %s92, %s106
    %p108 = scmp.eq.s32.totalorder %s19, 0
    %p109 = por %p107, %p108
    %s111 = sadd.s32 %s110, 1
    %p114 = scmp.eq.s32.totalorder %s13, 1
    %p115 = scmp.ne.s32.totalorder %s110, %s112
    %p116 = scmp.eq.s32.totalorder %s13, 0
    %p117 = por %p115, %p116
    %p118 = scmp.ne.s32.totalorder %s110, %s112
    %p119 = scmp.eq.s32.totalorder %s18, 1
    %p120 = por %p118, %p119
    %p121 = scmp.ne.s32.totalorder %s112, %s113
    %p122 = scmp.eq.s32.totalorder %s18, 0
    %p123 = por %p121, %p122
    %p124 = scmp.ne.s32.totalorder %s112, %s113
    %p125 = scmp.eq.s32.totalorder %s19, 1
    %p126 = por %p124, %p125
    %p128 = scmp.ne.s32.totalorder %s113, %s127
    %p129 = scmp.eq.s32.totalorder %s19, 0
    %p130 = por %p128, %p129
    %s132 = sadd.s32 %s131, 1
    %p135 = scmp.eq.s32.totalorder %s13, 1
    %p136 = scmp.ne.s32.totalorder %s131, %s133
    %p137 = scmp.eq.s32.totalorder %s13, 0
    %p138 = por %p136, %p137
    %p139 = scmp.ne.s32.totalorder %s131, %s133
    %p140 = scmp.eq.s32.totalorder %s18, 1
    %p141 = por %p139, %p140
    %p142 = scmp.ne.s32.totalorder %s133, %s134
    %p143 = scmp.eq.s32.totalorder %s18, 0
    %p144 = por %p142, %p143
    %p145 = scmp.ne.s32.totalorder %s133, %s134
    %p146 = scmp.eq.s32.totalorder %s19, 1
    %p147 = por %p145, %p146
    %p149 = scmp.ne.s32.totalorder %s134, %s148
    %p150 = scmp.eq.s32.totalorder %s19, 0
    %p151 = por %p149, %p150
    %s153 = sadd.s32 %s152, 1
    %p156 = scmp.eq.s32.totalorder %s13, 1
    %p157 = scmp.ne.s32.totalorder %s152, %s154
    %p158 = scmp.eq.s32.totalorder %s13, 0
    %p159 = por %p157, %p158
    %p160 = scmp.ne.s32.totalorder %s152, %s154
    %p161 = scmp.eq.s32.totalorder %s18, 1
    %p162 = por %p160, %p161
    %p163 = scmp.ne.s32.totalorder %s154, %s155
    %p164 = scmp.eq.s32.totalorder %s18, 0
    %p165 = por %p163, %p164
    %p166 = scmp.ne.s32.totalorder %s154, %s155
    %p167 = scmp.eq.s32.totalorder %s19, 1
    %p168 = por %p166, %p167
    %p170 = scmp.ne.s32.totalorder %s155, %s169
    %p171 = scmp.eq.s32.totalorder %s19, 0
    %p172 = por %p170, %p171
    %s173 = ssub.s32 %s13, %s20
    %p174 = scmp.eq.s32.totalorder %s173, 0
    %s176 = sadd.s32 %s175, 1
    %s177 = scalar_select %p174, %s175, %s176
    %p180 = pneg %p174
    %p181 = scmp.eq.s32.totalorder %s13, 1
    %p182 = por %p180, %p181
    %p183 = scmp.ne.s32.totalorder %s175, %s178
    %p184 = scmp.eq.s32.totalorder %s13, 0
    %p185 = por %p183, %p184
    %p186 = scmp.ne.s32.totalorder %s175, %s178
    %p187 = scmp.eq.s32.totalorder %s18, 1
    %p188 = por %p186, %p187
    %p189 = scmp.ne.s32.totalorder %s178, %s179
    %p190 = scmp.eq.s32.totalorder %s18, 0
    %p191 = por %p189, %p190
    %p192 = scmp.ne.s32.totalorder %s178, %s179
    %p193 = scmp.eq.s32.totalorder %s19, 1
    %p194 = por %p192, %p193
    %p196 = scmp.ne.s32.totalorder %s179, %s195
    %p197 = scmp.eq.s32.totalorder %s19, 0
    %p198 = por %p196, %p197
    %p199 = scmp.le.s32.totalorder 1, %s13
    %p200 = scmp.lt.s32.totalorder %s13, 3
    %p201 = pnand %p199, %p200
    %p202 = pneg %p201
    // Predicated region
    $region9: #{residual_block_forward.1} parent=5 // pred_check
      _
    $region10: #{residual_block_forward.1} parent=5 // pred_check_branch
      %204 = sbr.rel (%p201) target = $region12
    $region11: #{residual_block_forward.1} parent=5 // pred_region
      %s205 = ssub.s32 %s13, 1
      // Predicated region
      $region13: #{residual_block_forward.1} parent=11 // pred_check
        %p206 = pneg %p60
      $region14: #{residual_block_forward.1} parent=11 // pred_check_branch
        %208 = sbr.rel (%p206) target = $region16
      $region15: #{residual_block_forward.1} parent=11 // pred_region
        _
      $region16: #{residual_block_forward.1} parent=11 // pred_fallthru
        _
      // Predicated region
      $region17: #{residual_block_forward.1} parent=11 // pred_check
        %p209 = pneg %p81
      $region18: #{residual_block_forward.1} parent=11 // pred_check_branch
        %211 = sbr.rel (%p209) target = $region20
      $region19: #{residual_block_forward.1} parent=11 // pred_region
        _
      $region20: #{residual_block_forward.1} parent=11 // pred_fallthru
        _
      // Predicated region
      $region21: #{residual_block_forward.1} parent=11 // pred_check
        %p212 = pneg %p102
      $region22: #{residual_block_forward.1} parent=11 // pred_check_branch
        %214 = sbr.rel (%p212) target = $region24
      $region23: #{residual_block_forward.1} parent=11 // pred_region
        _
      $region24: #{residual_block_forward.1} parent=11 // pred_fallthru
        _
      // Predicated region
      $region25: #{residual_block_forward.1} parent=11 // pred_check
        %p215 = pneg %p123
      $region26: #{residual_block_forward.1} parent=11 // pred_check_branch
        %217 = sbr.rel (%p215) target = $region28
      $region27: #{residual_block_forward.1} parent=11 // pred_region
        _
      $region28: #{residual_block_forward.1} parent=11 // pred_fallthru
        _
      // Predicated region
      $region29: #{residual_block_forward.1} parent=11 // pred_check
        %p218 = pneg %p144
      $region30: #{residual_block_forward.1} parent=11 // pred_check_branch
        %220 = sbr.rel (%p218) target = $region32
      $region31: #{residual_block_forward.1} parent=11 // pred_region
        _
      $region32: #{residual_block_forward.1} parent=11 // pred_fallthru
        _
      // Predicated region
      $region33: #{residual_block_forward.1} parent=11 // pred_check
        %p221 = pneg %p165
      $region34: #{residual_block_forward.1} parent=11 // pred_check_branch
        %223 = sbr.rel (%p221) target = $region36
      $region35: #{residual_block_forward.1} parent=11 // pred_region
        _
      $region36: #{residual_block_forward.1} parent=11 // pred_fallthru
        _
    $region12: #{residual_block_forward.1} parent=5 // pred_fallthru
      _
    %p224 = scmp.lt.s32.totalorder %s13, 2
    // Predicated region
    $region37: #{residual_block_forward.1} parent=5 // pred_check
      %p225 = pneg %p224
    $region38: #{residual_block_forward.1} parent=5 // pred_check_branch
      %227 = sbr.rel (%p225) target = $region40
    $region39: #{residual_block_forward.1} parent=5 // pred_region
      // Predicated region
      $region41: #{residual_block_forward.1} parent=39 // pred_check
        %p228 = pneg %p33
      $region42: #{residual_block_forward.1} parent=39 // pred_check_branch
        %230 = sbr.rel (%p228) target = $region44
      $region43: #{residual_block_forward.1} parent=39 // pred_region
        %p231 = scmp.lt.s32.totalorder %s13, 1
        %s232 = scalar_select %p231, %s13, 1
        %s233 = smul.addr %s232, 54
        %s234 = smul.addr %s233, 4
        %s235 = scalar_lea.vmem %s0, %s234
      $region44: #{residual_block_forward.1} parent=39 // pred_fallthru
        _
    $region40: #{residual_block_forward.1} parent=5 // pred_fallthru
      _
    %p236 = scmp.le.s32.totalorder 1, %s13
    %p237 = scmp.lt.s32.totalorder %s13, 3
    %p238 = pnand %p236, %p237
    %p239 = pneg %p238
    // Predicated region
    $region45: #{residual_block_forward.1} parent=5 // pred_check
      _
    $region46: #{residual_block_forward.1} parent=5 // pred_check_branch
      %241 = sbr.rel (%p238) target = $region48
    $region47: #{residual_block_forward.1} parent=5 // pred_region
      %s242 = ssub.s32 %s13, 1
      %p243 = scmp.lt.s32.totalorder %s18, 1
      %s244 = scalar_select %p243, %s18, 1
      %s245 = smul.addr %s244, 54
      %s246 = smul.addr %s245, 4
      %s247 = scalar_lea.vmem %s0, %s246
      %p248 = pneg %p39
      %p249 = pneg %p36
      %p250 = pneg %p60
      %p251 = pneg %p57
      %p252 = pneg %p81
      %p253 = pneg %p78
      %p254 = pneg %p102
      %p255 = pneg %p99
      %p256 = pneg %p123
      %p257 = pneg %p120
      %p258 = pneg %p144
      %p259 = pneg %p141
      %p260 = pneg %p165
      %p261 = pneg %p162
      %p262 = pneg %p191
      %p263 = pneg %p188
      %p264 = scmp.lt.s32.totalorder %s18, 1
      %s265 = scalar_select %p264, %s18, 1
      %s266 = smul.addr %s265, 32
      %s267 = smul.addr %s266, 4
      %s268 = scalar_lea.vmem %s7, %s267
      %p269 = scmp.lt.s32.totalorder %s18, 1
      %s270 = scalar_select %p269, %s18, 1
      %s271 = smul.addr %s270, 54
      %s272 = smul.addr %s271, 4
      %s273 = scalar_lea.vmem %s0, %s272
      %p274 = scmp.lt.s32.totalorder %s18, 1
      %s275 = scalar_select %p274, %s18, 1
      %s276 = smul.addr %s275, 32
      %s277 = smul.addr %s276, 4
      %s278 = scalar_lea.vmem %s7, %s277
      %v280 = vld [vmem:[%s273] sm:$0xf]
      %v281 = vld [vmem:[%s273 + $0x4] sm:$0xf]
      %v282 = vld [vmem:[%s273 + $0x8] sm:$0x1]
      %v283 = vld [vmem:[%s273 + $0xc] sm:$0xf]
      %v284 = vld [vmem:[%s273 + $0x10] sm:$0xf]
      %v285 = vld [vmem:[%s273 + $0x14] sm:$0x1]
      %v286 = vld [vmem:[%s273 + $0x18] sm:$0xf]
      %v287 = vld [vmem:[%s273 + $0x1c] sm:$0xf]
      %v288 = vld [vmem:[%s273 + $0x20] sm:$0x1]
      %v289 = vld [vmem:[%s273 + $0x24] sm:$0xf]
      %v290 = vld [vmem:[%s273 + $0x28] sm:$0xf]
      %v291 = vld [vmem:[%s273 + $0x2c] sm:$0x1]
      %v292 = vld [vmem:[%s273 + $0x30] sm:$0xf]
      %v293 = vld [vmem:[%s273 + $0x34] sm:$0xf]
      %v294 = vld [vmem:[%s273 + $0x38] sm:$0x1]
      %v295 = vld [vmem:[%s273 + $0x3c] sm:$0xf]
      %v296 = vld [vmem:[%s273 + $0x40] sm:$0xf]
      %v297 = vld [vmem:[%s273 + $0x44] sm:$0x1]
      %v298 = vld [vmem:[%s273 + $0x48] sm:$0xf]
      %v299 = vld [vmem:[%s273 + $0x4c] sm:$0xf]
      %v300 = vld [vmem:[%s273 + $0x50] sm:$0x1]
      %v301 = vld [vmem:[%s273 + $0x54] sm:$0xf]
      %v302 = vld [vmem:[%s273 + $0x58] sm:$0xf]
      %v303 = vld [vmem:[%s273 + $0x5c] sm:$0x1]
      %v304 = vld [vmem:[%s273 + $0x60] sm:$0xf]
      %v305 = vld [vmem:[%s273 + $0x64] sm:$0xf]
      %v306 = vld [vmem:[%s273 + $0x68] sm:$0x1]
      %v307 = vld [vmem:[%s273 + $0x6c] sm:$0xf]
      %v308 = vld [vmem:[%s273 + $0x70] sm:$0xf]
      %v309 = vld [vmem:[%s273 + $0x74] sm:$0x1]
      %v310 = vld [vmem:[%s273 + $0x78] sm:$0xf]
      %v311 = vld [vmem:[%s273 + $0x7c] sm:$0xf]
      %v312 = vld [vmem:[%s273 + $0x80] sm:$0x1]
      %v313 = vld [vmem:[%s273 + $0x84] sm:$0xf]
      %v314 = vld [vmem:[%s273 + $0x88] sm:$0xf]
      %v315 = vld [vmem:[%s273 + $0x8c] sm:$0x1]
      %v316 = vld [vmem:[%s273 + $0x90] sm:$0xf]
      %v317 = vld [vmem:[%s273 + $0x94] sm:$0xf]
      %v318 = vld [vmem:[%s273 + $0x98] sm:$0x1]
      %v319 = vld [vmem:[%s273 + $0x9c] sm:$0xf]
      %v320 = vld [vmem:[%s273 + $0xa0] sm:$0xf]
      %v321 = vld [vmem:[%s273 + $0xa4] sm:$0x1]
      %v322 = vld [vmem:[%s273 + $0xa8] sm:$0xf]
      %v323 = vld [vmem:[%s273 + $0xac] sm:$0xf]
      %v324 = vld [vmem:[%s273 + $0xb0] sm:$0x1]
      %v325 = vld [vmem:[%s273 + $0xb4] sm:$0xf]
      %v326 = vld [vmem:[%s273 + $0xb8] sm:$0xf]
      %v327 = vld [vmem:[%s273 + $0xbc] sm:$0x1]
      %v328 = vld [vmem:[%s273 + $0xc0] sm:$0xf]
      %v329 = vld [vmem:[%s273 + $0xc4] sm:$0xf]
      %v330 = vld [vmem:[%s273 + $0xc8] sm:$0x1]
      %v331 = vld [vmem:[%s273 + $0xcc] sm:$0xf]
      %v332 = vld [vmem:[%s273 + $0xd0] sm:$0xf]
      %v333 = vld [vmem:[%s273 + $0xd4] sm:$0x1]
      %v334 = vunpack.c.l.bf16 %v280
      %v335 = vunpack.c.l.bf16 %v281
      %v336 = vunpack.c.l.bf16 %v282
      %v337 = vunpack.c.l.bf16 %v283
      %v338 = vunpack.c.l.bf16 %v284
      %v339 = vunpack.c.l.bf16 %v285
      %v340 = vunpack.c.l.bf16 %v286
      %v341 = vunpack.c.l.bf16 %v287
      %v342 = vunpack.c.l.bf16 %v288
      %v343 = vunpack.c.l.bf16 %v289
      %v344 = vunpack.c.l.bf16 %v290
      %v345 = vunpack.c.l.bf16 %v291
      %v346 = vunpack.c.l.bf16 %v292
      %v347 = vunpack.c.l.bf16 %v293
      %v348 = vunpack.c.l.bf16 %v294
      %v349 = vunpack.c.l.bf16 %v295
      %v350 = vunpack.c.l.bf16 %v296
      %v351 = vunpack.c.l.bf16 %v297
      %v352 = vunpack.c.l.bf16 %v298
      %v353 = vunpack.c.l.bf16 %v299
      %v354 = vunpack.c.l.bf16 %v300
      %v355 = vunpack.c.l.bf16 %v301
      %v356 = vunpack.c.l.bf16 %v302
      %v357 = vunpack.c.l.bf16 %v303
      %v358 = vunpack.c.l.bf16 %v304
      %v359 = vunpack.c.l.bf16 %v305
      %v360 = vunpack.c.l.bf16 %v306
      %v361 = vunpack.c.l.bf16 %v307
      %v362 = vunpack.c.l.bf16 %v308
      %v363 = vunpack.c.l.bf16 %v309
      %v364 = vunpack.c.l.bf16 %v310
      %v365 = vunpack.c.l.bf16 %v311
      %v366 = vunpack.c.l.bf16 %v312
      %v367 = vunpack.c.l.bf16 %v313
      %v368 = vunpack.c.l.bf16 %v314
      %v369 = vunpack.c.l.bf16 %v315
      %v370 = vunpack.c.l.bf16 %v316
      %v371 = vunpack.c.l.bf16 %v317
      %v372 = vunpack.c.l.bf16 %v318
      %v373 = vunpack.c.l.bf16 %v319
      %v374 = vunpack.c.l.bf16 %v320
      %v375 = vunpack.c.l.bf16 %v321
      %v376 = vunpack.c.l.bf16 %v322
      %v377 = vunpack.c.l.bf16 %v323
      %v378 = vunpack.c.l.bf16 %v324
      %v379 = vunpack.c.l.bf16 %v325
      %v380 = vunpack.c.l.bf16 %v326
      %v381 = vunpack.c.l.bf16 %v327
      %v382 = vunpack.c.l.bf16 %v328
      %v383 = vunpack.c.l.bf16 %v329
      %v384 = vunpack.c.l.bf16 %v330
      %v385 = vunpack.c.l.bf16 %v331
      %v386 = vunpack.c.l.bf16 %v332
      %v387 = vunpack.c.l.bf16 %v333
      %388 = vst [vmem:[#allocation2] sm:$0xff] %v334
      %389 = vst [vmem:[#allocation2 + $0x8] sm:$0xff] %v335
      %390 = vst [vmem:[#allocation2 + $0x10] sm:$0x3] %v336
      %391 = vst [vmem:[#allocation2 + $0x18] sm:$0xff] %v337
      %392 = vst [vmem:[#allocation2 + $0x20] sm:$0xff] %v338
      %393 = vst [vmem:[#allocation2 + $0x28] sm:$0x3] %v339
      %394 = vst [vmem:[#allocation2 + $0x30] sm:$0xff] %v340
      %395 = vst [vmem:[#allocation2 + $0x38] sm:$0xff] %v341
      %396 = vst [vmem:[#allocation2 + $0x40] sm:$0x3] %v342
      %397 = vst [vmem:[#allocation2 + $0x48] sm:$0xff] %v343
      %398 = vst [vmem:[#allocation2 + $0x50] sm:$0xff] %v344
      %399 = vst [vmem:[#allocation2 + $0x58] sm:$0x3] %v345
      %400 = vst [vmem:[#allocation2 + $0x60] sm:$0xff] %v346
      %401 = vst [vmem:[#allocation2 + $0x68] sm:$0xff] %v347
      %402 = vst [vmem:[#allocation2 + $0x70] sm:$0x3] %v348
      %403 = vst [vmem:[#allocation2 + $0x78] sm:$0xff] %v349
      %404 = vst [vmem:[#allocation2 + $0x80] sm:$0xff] %v350
      %405 = vst [vmem:[#allocation2 + $0x88] sm:$0x3] %v351
      %406 = vst [vmem:[#allocation2 + $0x90] sm:$0xff] %v352
      %407 = vst [vmem:[#allocation2 + $0x98] sm:$0xff] %v353
      %408 = vst [vmem:[#allocation2 + $0xa0] sm:$0x3] %v354
      %409 = vst [vmem:[#allocation2 + $0xa8] sm:$0xff] %v355
      %410 = vst [vmem:[#allocation2 + $0xb0] sm:$0xff] %v356
      %411 = vst [vmem:[#allocation2 + $0xb8] sm:$0x3] %v357
      %412 = vst [vmem:[#allocation2 + $0xc0] sm:$0xff] %v358
      %413 = vst [vmem:[#allocation2 + $0xc8] sm:$0xff] %v359
      %414 = vst [vmem:[#allocation2 + $0xd0] sm:$0x3] %v360
      %415 = vst [vmem:[#allocation2 + $0xd8] sm:$0xff] %v361
      %416 = vst [vmem:[#allocation2 + $0xe0] sm:$0xff] %v362
      %417 = vst [vmem:[#allocation2 + $0xe8] sm:$0x3] %v363
      %418 = vst [vmem:[#allocation2 + $0xf0] sm:$0xff] %v364
      %419 = vst [vmem:[#allocation2 + $0xf8] sm:$0xff] %v365
      %420 = vst [vmem:[#allocation2 + $0x100] sm:$0x3] %v366
      %421 = vst [vmem:[#allocation2 + $0x108] sm:$0xff] %v367
      %422 = vst [vmem:[#allocation2 + $0x110] sm:$0xff] %v368
      %423 = vst [vmem:[#allocation2 + $0x118] sm:$0x3] %v369
      %424 = vst [vmem:[#allocation2 + $0x120] sm:$0xff] %v370
      %425 = vst [vmem:[#allocation2 + $0x128] sm:$0xff] %v371
      %426 = vst [vmem:[#allocation2 + $0x130] sm:$0x3] %v372
      %427 = vst [vmem:[#allocation2 + $0x138] sm:$0xff] %v373
      %428 = vst [vmem:[#allocation2 + $0x140] sm:$0xff] %v374
      %429 = vst [vmem:[#allocation2 + $0x148] sm:$0x3] %v375
      %430 = vst [vmem:[#allocation2 + $0x150] sm:$0xff] %v376
      %431 = vst [vmem:[#allocation2 + $0x158] sm:$0xff] %v377
      %432 = vst [vmem:[#allocation2 + $0x160] sm:$0x3] %v378
      %433 = vst [vmem:[#allocation2 + $0x168] sm:$0xff] %v379
      %434 = vst [vmem:[#allocation2 + $0x170] sm:$0xff] %v380
      %435 = vst [vmem:[#allocation2 + $0x178] sm:$0x3] %v381
      %436 = vst [vmem:[#allocation2 + $0x180] sm:$0xff] %v382
      %437 = vst [vmem:[#allocation2 + $0x188] sm:$0xff] %v383
      %438 = vst [vmem:[#allocation2 + $0x190] sm:$0x3] %v384
      %439 = vst [vmem:[#allocation2 + $0x198] sm:$0xff] %v385
      %440 = vst [vmem:[#allocation2 + $0x1a0] sm:$0xff] %v386
      %441 = vst [vmem:[#allocation2 + $0x1a8] sm:$0x3] %v387
      %v442 = vld [vmem:[#allocation2] sm:$0xff]
      %v443 = vld [vmem:[#allocation2 + $0x8] sm:$0xff]
      %v444 = vld [vmem:[#allocation2 + $0x18] sm:$0xff]
      %v445 = vld [vmem:[#allocation2 + $0x20] sm:$0xff]
      %v446 = vld [vmem:[#allocation2 + $0x30] sm:$0xff]
      %v447 = vld [vmem:[#allocation2 + $0x38] sm:$0xff]
      %v448 = vld [vmem:[#allocation2 + $0x48] sm:$0xff]
      %v449 = vld [vmem:[#allocation2 + $0x50] sm:$0xff]
      %v450 = vld [vmem:[#allocation2 + $0x60] sm:$0xff]
      %v451 = vld [vmem:[#allocation2 + $0x68] sm:$0xff]
      %v452 = vld [vmem:[#allocation2 + $0x78] sm:$0xff]
      %v453 = vld [vmem:[#allocation2 + $0x80] sm:$0xff]
      %v454 = vld [vmem:[#allocation2 + $0x90] sm:$0xff]
      %v455 = vld [vmem:[#allocation2 + $0x98] sm:$0xff]
      %v456 = vld [vmem:[#allocation2 + $0xa8] sm:$0xff]
      %v457 = vld [vmem:[#allocation2 + $0xb0] sm:$0xff]
      %v458 = vld [vmem:[#allocation2 + $0xc0] sm:$0xff]
      %v459 = vld [vmem:[#allocation2 + $0xc8] sm:$0xff]
      %v460 = vld [vmem:[#allocation2 + $0xd8] sm:$0xff]
      %v461 = vld [vmem:[#allocation2 + $0xe0] sm:$0xff]
      %v462 = vld [vmem:[#allocation2 + $0xf0] sm:$0xff]
      %v463 = vld [vmem:[#allocation2 + $0xf8] sm:$0xff]
      %v464 = vld [vmem:[#allocation2 + $0x108] sm:$0xff]
      %v465 = vld [vmem:[#allocation2 + $0x110] sm:$0xff]
      %v466 = vld [vmem:[#allocation2 + $0x120] sm:$0xff]
      %v467 = vld [vmem:[#allocation2 + $0x128] sm:$0xff]
      %v468 = vld [vmem:[#allocation2 + $0x138] sm:$0xff]
      %v469 = vld [vmem:[#allocation2 + $0x140] sm:$0xff]
      %v470 = vld [vmem:[#allocation2 + $0x150] sm:$0xff]
      %v471 = vld [vmem:[#allocation2 + $0x158] sm:$0xff]
      %v472 = vld [vmem:[#allocation2 + $0x168] sm:$0xff]
      %v473 = vld [vmem:[#allocation2 + $0x170] sm:$0xff]
      %v474 = vld [vmem:[#allocation2 + $0x180] sm:$0xff]
      %v475 = vld [vmem:[#allocation2 + $0x188] sm:$0xff]
      %v476 = vld [vmem:[#allocation2 + $0x198] sm:$0xff]
      %v477 = vld [vmem:[#allocation2 + $0x1a0] sm:$0xff]
      %v478 = vpack.c.bf16 %v443, %v442
      %v479 = vpack.c.bf16 %v445, %v444
      %v480 = vpack.c.bf16 %v447, %v446
      %v481 = vpack.c.bf16 %v449, %v448
      %v482 = vpack.c.bf16 %v451, %v450
      %v483 = vpack.c.bf16 %v453, %v452
      %v484 = vpack.c.bf16 %v455, %v454
      %v485 = vpack.c.bf16 %v457, %v456
      %v486 = vpack.c.bf16 %v459, %v458
      %v487 = vpack.c.bf16 %v461, %v460
      %v488 = vpack.c.bf16 %v463, %v462
      %v489 = vpack.c.bf16 %v465, %v464
      %v490 = vpack.c.bf16 %v467, %v466
      %v491 = vpack.c.bf16 %v469, %v468
      %v492 = vpack.c.bf16 %v471, %v470
      %v493 = vpack.c.bf16 %v473, %v472
      %v494 = vpack.c.bf16 %v475, %v474
      %v495 = vpack.c.bf16 %v477, %v476
      %v496 = vld [vmem:[%s1] sm:$0xf]
      %v497 = vld [vmem:[%s1 + $0x4] sm:$0xf]
      %v498 = vld [vmem:[%s1 + $0x8] sm:$0xf]
      %v499 = vld [vmem:[%s1 + $0xc] sm:$0xf]
      %v500 = vld [vmem:[%s1 + $0x10] sm:$0xf]
      %v501 = vld [vmem:[%s1 + $0x14] sm:$0xf]
      %v502 = vld [vmem:[%s1 + $0x18] sm:$0xf]
      %v503 = vld [vmem:[%s1 + $0x1c] sm:$0xf]
      %v504 = vld [vmem:[%s1 + $0x20] sm:$0xf]
      %v505 = vld [vmem:[%s1 + $0x24] sm:$0xf]
      %v506 = vld [vmem:[%s1 + $0x28] sm:$0xf]
      %v507 = vld [vmem:[%s1 + $0x2c] sm:$0xf]
      %v508 = vld [vmem:[%s1 + $0x30] sm:$0xf]
      %v509 = vld [vmem:[%s1 + $0x34] sm:$0xf]
      %v510 = vld [vmem:[%s1 + $0x38] sm:$0xf]
      %v511 = vld [vmem:[%s1 + $0x3c] sm:$0xf]
      %s512 = scalar_lea.vmem %s1, 192
      %v513 = vld [vmem:[%s512] sm:$0xf]
      %v514 = vld [vmem:[%s512 + $0x4] sm:$0xf]
      %v515 = vld [vmem:[%s512 + $0x8] sm:$0xf]
      %v516 = vld [vmem:[%s512 + $0xc] sm:$0xf]
      %v517 = vld [vmem:[%s512 + $0x10] sm:$0xf]
      %v518 = vld [vmem:[%s512 + $0x14] sm:$0xf]
      %v519 = vld [vmem:[%s512 + $0x18] sm:$0xf]
      %v520 = vld [vmem:[%s512 + $0x1c] sm:$0xf]
      %v521 = vld [vmem:[%s512 + $0x20] sm:$0xf]
      %v522 = vld [vmem:[%s512 + $0x24] sm:$0xf]
      %v523 = vld [vmem:[%s512 + $0x28] sm:$0xf]
      %v524 = vld [vmem:[%s512 + $0x2c] sm:$0xf]
      %v525 = vld [vmem:[%s512 + $0x30] sm:$0xf]
      %v526 = vld [vmem:[%s512 + $0x34] sm:$0xf]
      %v527 = vld [vmem:[%s512 + $0x38] sm:$0xf]
      %v528 = vld [vmem:[%s512 + $0x3c] sm:$0xf]
      %v545 = vunpack.c.l.b16 %v513
      %v546 = vunpack.c.l.b16 %v514
      %v547 = vunpack.c.l.b16 %v515
      %v548 = vunpack.c.l.b16 %v516
      %v549 = vunpack.c.l.b16 %v517
      %v550 = vunpack.c.l.b16 %v518
      %v551 = vunpack.c.l.b16 %v519
      %v552 = vunpack.c.l.b16 %v520
      %v553 = vunpack.c.l.b16 %v521
      %v554 = vunpack.c.l.b16 %v522
      %v555 = vunpack.c.l.b16 %v523
      %v556 = vunpack.c.l.b16 %v524
      %v557 = vunpack.c.l.b16 %v525
      %v558 = vunpack.c.l.b16 %v526
      %v559 = vunpack.c.l.b16 %v527
      %v560 = vunpack.c.l.b16 %v528
      %v561 = vpack.c.b16 %v546, %v545
      %v562 = vpack.c.b16 %v548, %v547
      %v563 = vpack.c.b16 %v550, %v549
      %v564 = vpack.c.b16 %v552, %v551
      %v565 = vpack.c.b16 %v554, %v553
      %v566 = vpack.c.b16 %v556, %v555
      %v567 = vpack.c.b16 %v558, %v557
      %v568 = vpack.c.b16 %v560, %v559
      %577 = vmatprep.subr.bf16.mxu0 0
      %578 = vmatpush1.bf16.msra.mxu0 %v561
      %579 = vmatprep.subr.bf16.mxu0 0
      %580 = vmatpush1.bf16.msra.mxu0 %v562
      %581 = vmatprep.subr.bf16.mxu0 0
      %582 = vmatpush1.bf16.msra.mxu0 %v563
      %583 = vmatprep.subr.bf16.mxu0 0
      %584 = vmatpush1.bf16.msra.mxu0 %v564
      %585 = vmatprep.subr.bf16.mxu0 0
      %586 = vmatpush1.bf16.msra.mxu0 %v565
      %587 = vmatprep.subr.bf16.mxu0 0
      %588 = vmatpush1.bf16.msra.mxu0 %v566
      %589 = vmatprep.subr.bf16.mxu0 0
      %590 = vmatpush1.bf16.msra.mxu0 %v567
      %591 = vmatprep.subr.bf16.mxu0 0
      %592 = vmatpush1.bf16.msra.mxu0 %v568
      %593 = vmatprep.subr.bf16.mxu0 0
      %594 = vmatpush1.bf16.msra.mxu0 0
      %595 = vmatprep.subr.bf16.mxu0 0
      %596 = vmatpush1.bf16.msra.mxu0 0
      %597 = vmatprep.subr.bf16.mxu0 0
      %598 = vmatpush1.bf16.msra.mxu0 0
      %599 = vmatprep.subr.bf16.mxu0 0
      %600 = vmatpush1.bf16.msra.mxu0 0
      %601 = vmatprep.subr.bf16.mxu0 0
      %602 = vmatpush1.bf16.msra.mxu0 0
      %603 = vmatprep.subr.bf16.mxu0 0
      %604 = vmatpush1.bf16.msra.mxu0 0
      %605 = vmatprep.subr.bf16.mxu0 0
      %606 = vmatpush1.bf16.msra.mxu0 0
      %607 = vmatprep.subr.bf16.mxu0 0
      %608 = vmatpush1.bf16.msra.mxu0 0
      %609 = vmatprep.mubr.bf16.mxu0 0
      %610 = vmatmul.mubr.bf16.gmra.mrb[0].mxu0 %v479
      %v611 = vpop.f32.mrb[0].mxu0
      %v612 = vadd.f32 0.0, %v611
      %v613 = vpop.f32.mrb[0].mxu0
      %v614 = vpop.f32.mrb[0].mxu0
      %v615 = vadd.f32 0.0, %v614
      %v616 = vpop.f32.mrb[0].mxu0
      %617 = vmatprep.mubr.bf16.mxu0 0
      %618 = vmatmul.mubr.bf16.gmra.mrb[0].mxu0 %v480
      %v619 = vpop.f32.mrb[0].mxu0
      %v620 = vadd.f32 0.0, %v619
      %v621 = vpop.f32.mrb[0].mxu0
      %v622 = vpop.f32.mrb[0].mxu0
      %v623 = vadd.f32 0.0, %v622
      %v624 = vpop.f32.mrb[0].mxu0
      %625 = vmatprep.mubr.bf16.mxu0 0
      %626 = vmatmul.mubr.bf16.gmra.mrb[0].mxu0 %v481
      %v627 = vpop.f32.mrb[0].mxu0
      %v628 = vadd.f32 0.0, %v627
      %v629 = vpop.f32.mrb[0].mxu0
      %v630 = vpop.f32.mrb[0].mxu0
      %v631 = vadd.f32 0.0, %v630
      %v632 = vpop.f32.mrb[0].mxu0
      %633 = vmatprep.mubr.bf16.mxu0 0
      %634 = vmatmul.mubr.bf16.gmra.mrb[0].mxu0 %v482
      %v635 = vpop.f32.mrb[0].mxu0
      %v636 = vadd.f32 0.0, %v635
      %v637 = vpop.f32.mrb[0].mxu0
      %v638 = vpop.f32.mrb[0].mxu0
      %v639 = vadd.f32 0.0, %v638
      %v640 = vpop.f32.mrb[0].mxu0
      %641 = vmatprep.mubr.bf16.mxu0 0
      %642 = vmatmul.mubr.bf16.gmra.mrb[0].mxu0 %v483
      %v643 = vpop.f32.mrb[0].mxu0
      %v644 = vadd.f32 0.0, %v643
      %v645 = vpop.f32.mrb[0].mxu0
      %v646 = vpop.f32.mrb[0].mxu0
      %v647 = vadd.f32 0.0, %v646
      %v648 = vpop.f32.mrb[0].mxu0
      %649 = vmatprep.mubr.bf16.mxu0 0
      %650 = vmatmul.mubr.bf16.gmra.mrb[0].mxu0 %v484
      %v651 = vpop.f32.mrb[0].mxu0
      %v652 = vadd.f32 0.0, %v651
      %v653 = vpop.f32.mrb[0].mxu0
      %v654 = vpop.f32.mrb[0].mxu0
      %v655 = vadd.f32 0.0, %v654
      %v656 = vpop.f32.mrb[0].mxu0
      %657 = vmatprep.mubr.bf16.mxu0 0
      %658 = vmatmul.mubr.bf16.gmra.mrb[0].mxu0 %v485
      %v659 = vpop.f32.mrb[0].mxu0
      %v660 = vadd.f32 0.0, %v659
      %v661 = vpop.f32.mrb[0].mxu0
      %v662 = vpop.f32.mrb[0].mxu0
      %v663 = vadd.f32 0.0, %v662
      %v664 = vpop.f32.mrb[0].mxu0
      %665 = vmatprep.mubr.bf16.mxu0 0
      %666 = vmatmul.mubr.bf16.gmra.mrb[0].mxu0 %v486
      %v667 = vpop.f32.mrb[0].mxu0
      %v668 = vadd.f32 0.0, %v667
      %v669 = vpop.f32.mrb[0].mxu0
      %v670 = vpop.f32.mrb[0].mxu0
      %v671 = vadd.f32 0.0, %v670
      %v672 = vpop.f32.mrb[0].mxu0
      %673 = vmatprep.mubr.bf16.mxu0 0
      %674 = vmatmul.mubr.bf16.gmra.mrb[0].mxu0 %v487
      %v675 = vpop.f32.mrb[0].mxu0
      %v676 = vadd.f32 0.0, %v675
      %v677 = vpop.f32.mrb[0].mxu0
      %v678 = vpop.f32.mrb[0].mxu0
      %v679 = vadd.f32 0.0, %v678
      %v680 = vpop.f32.mrb[0].mxu0
      %681 = vmatprep.mubr.bf16.mxu0 0
      %682 = vmatmul.mubr.bf16.gmra.mrb[0].mxu0 %v488
      %v683 = vpop.f32.mrb[0].mxu0
      %v684 = vadd.f32 0.0, %v683
      %v685 = vpop.f32.mrb[0].mxu0
      %v686 = vpop.f32.mrb[0].mxu0
      %v687 = vadd.f32 0.0, %v686
      %v688 = vpop.f32.mrb[0].mxu0
      %689 = vmatprep.mubr.bf16.mxu0 0
      %690 = vmatmul.mubr.bf16.gmra.mrb[0].mxu0 %v489
      %v691 = vpop.f32.mrb[0].mxu0
      %v692 = vadd.f32 0.0, %v691
      %v693 = vpop.f32.mrb[0].mxu0
      %v694 = vpop.f32.mrb[0].mxu0
      %v695 = vadd.f32 0.0, %v694
      %v696 = vpop.f32.mrb[0].mxu0
      %697 = vmatprep.mubr.bf16.mxu0 0
      %698 = vmatmul.mubr.bf16.gmra.mrb[0].mxu0 %v490
      %v699 = vpop.f32.mrb[0].mxu0
      %v700 = vadd.f32 0.0, %v699
      %v701 = vpop.f32.mrb[0].mxu0
      %v702 = vpop.f32.mrb[0].mxu0
      %v703 = vadd.f32 0.0, %v702
      %v704 = vpop.f32.mrb[0].mxu0
      %705 = vmatprep.mubr.bf16.mxu0 0
      %706 = vmatmul.mubr.bf16.gmra.mrb[0].mxu0 %v491
      %v707 = vpop.f32.mrb[0].mxu0
      %v708 = vadd.f32 0.0, %v707
      %v709 = vpop.f32.mrb[0].mxu0
      %v710 = vpop.f32.mrb[0].mxu0
      %v711 = vadd.f32 0.0, %v710
      %v712 = vpop.f32.mrb[0].mxu0
      %713 = vmatprep.mubr.bf16.mxu0 0
      %714 = vmatmul.mubr.bf16.gmra.mrb[0].mxu0 %v492
      %v715 = vpop.f32.mrb[0].mxu0
      %v716 = vadd.f32 0.0, %v715
      %v717 = vpop.f32.mrb[0].mxu0
      %v718 = vpop.f32.mrb[0].mxu0
      %v719 = vadd.f32 0.0, %v718
      %v720 = vpop.f32.mrb[0].mxu0
      %721 = vmatprep.mubr.bf16.mxu0 0
      %722 = vmatmul.mubr.bf16.gmra.mrb[0].mxu0 %v493
      %v723 = vpop.f32.mrb[0].mxu0
      %v724 = vadd.f32 0.0, %v723
      %v725 = vpop.f32.mrb[0].mxu0
      %v726 = vpop.f32.mrb[0].mxu0
      %v727 = vadd.f32 0.0, %v726
      %v728 = vpop.f32.mrb[0].mxu0
      %729 = vmatprep.mubr.bf16.mxu0 0
      %730 = vmatmul.mubr.bf16.gmra.mrb[0].mxu0 %v494
      %v731 = vpop.f32.mrb[0].mxu0
      %v732 = vadd.f32 0.0, %v731
      %v733 = vpop.f32.mrb[0].mxu0
      %v734 = vpop.f32.mrb[0].mxu0
      %v735 = vadd.f32 0.0, %v734
      %v736 = vpop.f32.mrb[0].mxu0
      %737 = vdwg.mxu0
      %v754 = vunpack.c.l.b16 %v496
      %v755 = vunpack.c.l.b16 %v497
      %v756 = vunpack.c.l.b16 %v498
      %v757 = vunpack.c.l.b16 %v499
      %v758 = vunpack.c.l.b16 %v500
      %v759 = vunpack.c.l.b16 %v501
      %v760 = vunpack.c.l.b16 %v502
      %v761 = vunpack.c.l.b16 %v503
      %v762 = vunpack.c.l.b16 %v504
      %v763 = vunpack.c.l.b16 %v505
      %v764 = vunpack.c.l.b16 %v506
      %v765 = vunpack.c.l.b16 %v507
      %v766 = vunpack.c.l.b16 %v508
      %v767 = vunpack.c.l.b16 %v509
      %v768 = vunpack.c.l.b16 %v510
      %v769 = vunpack.c.l.b16 %v511
      %v770 = vpack.c.b16 %v755, %v754
      %v771 = vpack.c.b16 %v757, %v756
      %v772 = vpack.c.b16 %v759, %v758
      %v773 = vpack.c.b16 %v761, %v760
      %v774 = vpack.c.b16 %v763, %v762
      %v775 = vpack.c.b16 %v765, %v764
      %v776 = vpack.c.b16 %v767, %v766
      %v777 = vpack.c.b16 %v769, %v768
      %786 = vmatprep.subr.bf16.mxu0 0
      %787 = vmatpush1.bf16.msra.mxu0 %v770
      %788 = vmatprep.subr.bf16.mxu0 0
      %789 = vmatpush1.bf16.msra.mxu0 %v771
      %790 = vmatprep.subr.bf16.mxu0 0
      %791 = vmatpush1.bf16.msra.mxu0 %v772
      %792 = vmatprep.subr.bf16.mxu0 0
      %793 = vmatpush1.bf16.msra.mxu0 %v773
      %794 = vmatprep.subr.bf16.mxu0 0
      %795 = vmatpush1.bf16.msra.mxu0 %v774
      %796 = vmatprep.subr.bf16.mxu0 0
      %797 = vmatpush1.bf16.msra.mxu0 %v775
      %798 = vmatprep.subr.bf16.mxu0 0
      %799 = vmatpush1.bf16.msra.mxu0 %v776
      %800 = vmatprep.subr.bf16.mxu0 0
      %801 = vmatpush1.bf16.msra.mxu0 %v777
      %802 = vmatprep.subr.bf16.mxu0 0
      %803 = vmatpush1.bf16.msra.mxu0 0
      %804 = vmatprep.subr.bf16.mxu0 0
      %805 = vmatpush1.bf16.msra.mxu0 0
      %806 = vmatprep.subr.bf16.mxu0 0
      %807 = vmatpush1.bf16.msra.mxu0 0
      %808 = vmatprep.subr.bf16.mxu0 0
      %809 = vmatpush1.bf16.msra.mxu0 0
      %810 = vmatprep.subr.bf16.mxu0 0
      %811 = vmatpush1.bf16.msra.mxu0 0
      %812 = vmatprep.subr.bf16.mxu0 0
      %813 = vmatpush1.bf16.msra.mxu0 0
      %814 = vmatprep.subr.bf16.mxu0 0
      %815 = vmatpush1.bf16.msra.mxu0 0
      %816 = vmatprep.subr.bf16.mxu0 0
      %817 = vmatpush1.bf16.msra.mxu0 0
      %818 = vmatprep.mubr.bf16.mxu0 0
      %819 = vmatmul.mubr.bf16.gmra.mrb[0].mxu0 %v478
      %v820 = vpop.f32.mrb[0].mxu0
      %v821 = vadd.f32 %v612, %v820
      %v822 = vpop.f32.mrb[0].mxu0
      %v823 = vpop.f32.mrb[0].mxu0
      %v824 = vadd.f32 %v615, %v823
      %v825 = vpop.f32.mrb[0].mxu0
      %826 = vmatprep.mubr.bf16.mxu0 0
      %827 = vmatmul.mubr.bf16.gmra.mrb[0].mxu0 %v479
      %v828 = vpop.f32.mrb[0].mxu0
      %v829 = vadd.f32 %v620, %v828
      %v830 = vpop.f32.mrb[0].mxu0
      %v831 = vpop.f32.mrb[0].mxu0
      %v832 = vadd.f32 %v623, %v831
      %v833 = vpop.f32.mrb[0].mxu0
      %834 = vmatprep.mubr.bf16.mxu0 0
      %835 = vmatmul.mubr.bf16.gmra.mrb[0].mxu0 %v480
      %v836 = vpop.f32.mrb[0].mxu0
      %v837 = vadd.f32 %v628, %v836
      %v838 = vpop.f32.mrb[0].mxu0
      %v839 = vpop.f32.mrb[0].mxu0
      %v840 = vadd.f32 %v631, %v839
      %v841 = vpop.f32.mrb[0].mxu0
      %842 = vmatprep.mubr.bf16.mxu0 0
      %843 = vmatmul.mubr.bf16.gmra.mrb[0].mxu0 %v481
      %v844 = vpop.f32.mrb[0].mxu0
      %v845 = vadd.f32 %v636, %v844
      %v846 = vpop.f32.mrb[0].mxu0
      %v847 = vpop.f32.mrb[0].mxu0
      %v848 = vadd.f32 %v639, %v847
      %v849 = vpop.f32.mrb[0].mxu0
      %850 = vmatprep.mubr.bf16.mxu0 0
      %851 = vmatmul.mubr.bf16.gmra.mrb[0].mxu0 %v482
      %v852 = vpop.f32.mrb[0].mxu0
      %v853 = vadd.f32 %v644, %v852
      %v854 = vpop.f32.mrb[0].mxu0
      %v855 = vpop.f32.mrb[0].mxu0
      %v856 = vadd.f32 %v647, %v855
      %v857 = vpop.f32.mrb[0].mxu0
      %858 = vmatprep.mubr.bf16.mxu0 0
      %859 = vmatmul.mubr.bf16.gmra.mrb[0].mxu0 %v483
      %v860 = vpop.f32.mrb[0].mxu0
      %v861 = vadd.f32 %v652, %v860
      %v862 = vpop.f32.mrb[0].mxu0
      %v863 = vpop.f32.mrb[0].mxu0
      %v864 = vadd.f32 %v655, %v863
      %v865 = vpop.f32.mrb[0].mxu0
      %866 = vmatprep.mubr.bf16.mxu0 0
      %867 = vmatmul.mubr.bf16.gmra.mrb[0].mxu0 %v484
      %v868 = vpop.f32.mrb[0].mxu0
      %v869 = vadd.f32 %v660, %v868
      %v870 = vpop.f32.mrb[0].mxu0
      %v871 = vpop.f32.mrb[0].mxu0
      %v872 = vadd.f32 %v663, %v871
      %v873 = vpop.f32.mrb[0].mxu0
      %874 = vmatprep.mubr.bf16.mxu0 0
      %875 = vmatmul.mubr.bf16.gmra.mrb[0].mxu0 %v485
      %v876 = vpop.f32.mrb[0].mxu0
      %v877 = vadd.f32 %v668, %v876
      %v878 = vpop.f32.mrb[0].mxu0
      %v879 = vpop.f32.mrb[0].mxu0
      %v880 = vadd.f32 %v671, %v879
      %v881 = vpop.f32.mrb[0].mxu0
      %882 = vmatprep.mubr.bf16.mxu0 0
      %883 = vmatmul.mubr.bf16.gmra.mrb[0].mxu0 %v486
      %v884 = vpop.f32.mrb[0].mxu0
      %v885 = vadd.f32 %v676, %v884
      %v886 = vpop.f32.mrb[0].mxu0
      %v887 = vpop.f32.mrb[0].mxu0
      %v888 = vadd.f32 %v679, %v887
      %v889 = vpop.f32.mrb[0].mxu0
      %890 = vmatprep.mubr.bf16.mxu0 0
      %891 = vmatmul.mubr.bf16.gmra.mrb[0].mxu0 %v487
      %v892 = vpop.f32.mrb[0].mxu0
      %v893 = vadd.f32 %v684, %v892
      %v894 = vpop.f32.mrb[0].mxu0
      %v895 = vpop.f32.mrb[0].mxu0
      %v896 = vadd.f32 %v687, %v895
      %v897 = vpop.f32.mrb[0].mxu0
      %898 = vmatprep.mubr.bf16.mxu0 0
      %899 = vmatmul.mubr.bf16.gmra.mrb[0].mxu0 %v488
      %v900 = vpop.f32.mrb[0].mxu0
      %v901 = vadd.f32 %v692, %v900
      %v902 = vpop.f32.mrb[0].mxu0
      %v903 = vpop.f32.mrb[0].mxu0
      %v904 = vadd.f32 %v695, %v903
      %v905 = vpop.f32.mrb[0].mxu0
      %906 = vmatprep.mubr.bf16.mxu0 0
      %907 = vmatmul.mubr.bf16.gmra.mrb[0].mxu0 %v489
      %v908 = vpop.f32.mrb[0].mxu0
      %v909 = vadd.f32 %v700, %v908
      %v910 = vpop.f32.mrb[0].mxu0
      %v911 = vpop.f32.mrb[0].mxu0
      %v912 = vadd.f32 %v703, %v911
      %v913 = vpop.f32.mrb[0].mxu0
      %914 = vmatprep.mubr.bf16.mxu0 0
      %915 = vmatmul.mubr.bf16.gmra.mrb[0].mxu0 %v490
      %v916 = vpop.f32.mrb[0].mxu0
      %v917 = vadd.f32 %v708, %v916
      %v918 = vpop.f32.mrb[0].mxu0
      %v919 = vpop.f32.mrb[0].mxu0
      %v920 = vadd.f32 %v711, %v919
      %v921 = vpop.f32.mrb[0].mxu0
      %922 = vmatprep.mubr.bf16.mxu0 0
      %923 = vmatmul.mubr.bf16.gmra.mrb[0].mxu0 %v491
      %v924 = vpop.f32.mrb[0].mxu0
      %v925 = vadd.f32 %v716, %v924
      %v926 = vpop.f32.mrb[0].mxu0
      %v927 = vpop.f32.mrb[0].mxu0
      %v928 = vadd.f32 %v719, %v927
      %v929 = vpop.f32.mrb[0].mxu0
      %930 = vmatprep.mubr.bf16.mxu0 0
      %931 = vmatmul.mubr.bf16.gmra.mrb[0].mxu0 %v492
      %v932 = vpop.f32.mrb[0].mxu0
      %v933 = vadd.f32 %v724, %v932
      %v934 = vpop.f32.mrb[0].mxu0
      %v935 = vpop.f32.mrb[0].mxu0
      %v936 = vadd.f32 %v727, %v935
      %v937 = vpop.f32.mrb[0].mxu0
      %938 = vmatprep.mubr.bf16.mxu0 0
      %939 = vmatmul.mubr.bf16.gmra.mrb[0].mxu0 %v493
      %v940 = vpop.f32.mrb[0].mxu0
      %v941 = vadd.f32 %v732, %v940
      %v942 = vpop.f32.mrb[0].mxu0
      %v943 = vpop.f32.mrb[0].mxu0
      %v944 = vadd.f32 %v735, %v943
      %v945 = vpop.f32.mrb[0].mxu0
      %946 = vdwg.mxu0
      %s947 = scalar_lea.vmem %s1, 384
      %v948 = vld [vmem:[%s947] sm:$0xf]
      %v949 = vld [vmem:[%s947 + $0x4] sm:$0xf]
      %v950 = vld [vmem:[%s947 + $0x8] sm:$0xf]
      %v951 = vld [vmem:[%s947 + $0xc] sm:$0xf]
      %v952 = vld [vmem:[%s947 + $0x10] sm:$0xf]
      %v953 = vld [vmem:[%s947 + $0x14] sm:$0xf]
      %v954 = vld [vmem:[%s947 + $0x18] sm:$0xf]
      %v955 = vld [vmem:[%s947 + $0x1c] sm:$0xf]
      %v956 = vld [vmem:[%s947 + $0x20] sm:$0xf]
      %v957 = vld [vmem:[%s947 + $0x24] sm:$0xf]
      %v958 = vld [vmem:[%s947 + $0x28] sm:$0xf]
      %v959 = vld [vmem:[%s947 + $0x2c] sm:$0xf]
      %v960 = vld [vmem:[%s947 + $0x30] sm:$0xf]
      %v961 = vld [vmem:[%s947 + $0x34] sm:$0xf]
      %v962 = vld [vmem:[%s947 + $0x38] sm:$0xf]
      %v963 = vld [vmem:[%s947 + $0x3c] sm:$0xf]
      %v980 = vunpack.c.l.b16 %v948
      %v981 = vunpack.c.l.b16 %v949
      %v982 = vunpack.c.l.b16 %v950
      %v983 = vunpack.c.l.b16 %v951
      %v984 = vunpack.c.l.b16 %v952
      %v985 = vunpack.c.l.b16 %v953
      %v986 = vunpack.c.l.b16 %v954
      %v987 = vunpack.c.l.b16 %v955
      %v988 = vunpack.c.l.b16 %v956
      %v989 = vunpack.c.l.b16 %v957
      %v990 = vunpack.c.l.b16 %v958
      %v991 = vunpack.c.l.b16 %v959
      %v992 = vunpack.c.l.b16 %v960
      %v993 = vunpack.c.l.b16 %v961
      %v994 = vunpack.c.l.b16 %v962
      %v995 = vunpack.c.l.b16 %v963
      %v996 = vpack.c.b16 %v981, %v980
      %v997 = vpack.c.b16 %v983, %v982
      %v998 = vpack.c.b16 %v985, %v984
      %v999 = vpack.c.b16 %v987, %v986
      %v1000 = vpack.c.b16 %v989, %v988
      %v1001 = vpack.c.b16 %v991, %v990
      %v1002 = vpack.c.b16 %v993, %v992
      %v1003 = vpack.c.b16 %v995, %v994
      %1012 = vmatprep.subr.bf16.mxu0 0
      %1013 = vmatpush1.bf16.msra.mxu0 %v996
      %1014 = vmatprep.subr.bf16.mxu0 0
      %1015 = vmatpush1.bf16.msra.mxu0 %v997
      %1016 = vmatprep.subr.bf16.mxu0 0
      %1017 = vmatpush1.bf16.msra.mxu0 %v998
      %1018 = vmatprep.subr.bf16.mxu0 0
      %1019 = vmatpush1.bf16.msra.mxu0 %v999
      %1020 = vmatprep.subr.bf16.mxu0 0
      %1021 = vmatpush1.bf16.msra.mxu0 %v1000
      %1022 = vmatprep.subr.bf16.mxu0 0
      %1023 = vmatpush1.bf16.msra.mxu0 %v1001
      %1024 = vmatprep.subr.bf16.mxu0 0
      %1025 = vmatpush1.bf16.msra.mxu0 %v1002
      %1026 = vmatprep.subr.bf16.mxu0 0
      %1027 = vmatpush1.bf16.msra.mxu0 %v1003
      %1028 = vmatprep.subr.bf16.mxu0 0
      %1029 = vmatpush1.bf16.msra.mxu0 0
      %1030 = vmatprep.subr.bf16.mxu0 0
      %1031 = vmatpush1.bf16.msra.mxu0 0
      %1032 = vmatprep.subr.bf16.mxu0 0
      %1033 = vmatpush1.bf16.msra.mxu0 0
      %1034 = vmatprep.subr.bf16.mxu0 0
      %1035 = vmatpush1.bf16.msra.mxu0 0
      %1036 = vmatprep.subr.bf16.mxu0 0
      %1037 = vmatpush1.bf16.msra.mxu0 0
      %1038 = vmatprep.subr.bf16.mxu0 0
      %1039 = vmatpush1.bf16.msra.mxu0 0
      %1040 = vmatprep.subr.bf16.mxu0 0
      %1041 = vmatpush1.bf16.msra.mxu0 0
      %1042 = vmatprep.subr.bf16.mxu0 0
      %1043 = vmatpush1.bf16.msra.mxu0 0
      %1044 = vmatprep.mubr.bf16.mxu0 0
      %1045 = vmatmul.mubr.bf16.gmra.mrb[0].mxu0 %v480
      %v1046 = vpop.f32.mrb[0].mxu0
      %v1047 = vadd.f32 0.0, %v1046
      %v1048 = vpop.f32.mrb[0].mxu0
      %v1049 = vpop.f32.mrb[0].mxu0
      %v1050 = vadd.f32 0.0, %v1049
      %v1051 = vpop.f32.mrb[0].mxu0
      %1052 = vmatprep.mubr.bf16.mxu0 0
      %1053 = vmatmul.mubr.bf16.gmra.mrb[0].mxu0 %v481
      %v1054 = vpop.f32.mrb[0].mxu0
      %v1055 = vadd.f32 0.0, %v1054
      %v1056 = vpop.f32.mrb[0].mxu0
      %v1057 = vpop.f32.mrb[0].mxu0
      %v1058 = vadd.f32 0.0, %v1057
      %v1059 = vpop.f32.mrb[0].mxu0
      %1060 = vmatprep.mubr.bf16.mxu0 0
      %1061 = vmatmul.mubr.bf16.gmra.mrb[0].mxu0 %v482
      %v1062 = vpop.f32.mrb[0].mxu0
      %v1063 = vadd.f32 0.0, %v1062
      %v1064 = vpop.f32.mrb[0].mxu0
      %v1065 = vpop.f32.mrb[0].mxu0
      %v1066 = vadd.f32 0.0, %v1065
      %v1067 = vpop.f32.mrb[0].mxu0
      %1068 = vmatprep.mubr.bf16.mxu0 0
      %1069 = vmatmul.mubr.bf16.gmra.mrb[0].mxu0 %v483
      %v1070 = vpop.f32.mrb[0].mxu0
      %v1071 = vadd.f32 0.0, %v1070
      %v1072 = vpop.f32.mrb[0].mxu0
      %v1073 = vpop.f32.mrb[0].mxu0
      %v1074 = vadd.f32 0.0, %v1073
      %v1075 = vpop.f32.mrb[0].mxu0
      %1076 = vmatprep.mubr.bf16.mxu0 0
      %1077 = vmatmul.mubr.bf16.gmra.mrb[0].mxu0 %v484
      %v1078 = vpop.f32.mrb[0].mxu0
      %v1079 = vadd.f32 0.0, %v1078
      %v1080 = vpop.f32.mrb[0].mxu0
      %v1081 = vpop.f32.mrb[0].mxu0
      %v1082 = vadd.f32 0.0, %v1081
      %v1083 = vpop.f32.mrb[0].mxu0
      %1084 = vmatprep.mubr.bf16.mxu0 0
      %1085 = vmatmul.mubr.bf16.gmra.mrb[0].mxu0 %v485
      %v1086 = vpop.f32.mrb[0].mxu0
      %v1087 = vadd.f32 0.0, %v1086
      %v1088 = vpop.f32.mrb[0].mxu0
      %v1089 = vpop.f32.mrb[0].mxu0
      %v1090 = vadd.f32 0.0, %v1089
      %v1091 = vpop.f32.mrb[0].mxu0
      %1092 = vmatprep.mubr.bf16.mxu0 0
      %1093 = vmatmul.mubr.bf16.gmra.mrb[0].mxu0 %v486
      %v1094 = vpop.f32.mrb[0].mxu0
      %v1095 = vadd.f32 0.0, %v1094
      %v1096 = vpop.f32.mrb[0].mxu0
      %v1097 = vpop.f32.mrb[0].mxu0
      %v1098 = vadd.f32 0.0, %v1097
      %v1099 = vpop.f32.mrb[0].mxu0
      %1100 = vmatprep.mubr.bf16.mxu0 0
      %1101 = vmatmul.mubr.bf16.gmra.mrb[0].mxu0 %v487
      %v1102 = vpop.f32.mrb[0].mxu0
      %v1103 = vadd.f32 0.0, %v1102
      %v1104 = vpop.f32.mrb[0].mxu0
      %v1105 = vpop.f32.mrb[0].mxu0
      %v1106 = vadd.f32 0.0, %v1105
      %v1107 = vpop.f32.mrb[0].mxu0
      %1108 = vmatprep.mubr.bf16.mxu0 0
      %1109 = vmatmul.mubr.bf16.gmra.mrb[0].mxu0 %v488
      %v1110 = vpop.f32.mrb[0].mxu0
      %v1111 = vadd.f32 0.0, %v1110
      %v1112 = vpop.f32.mrb[0].mxu0
      %v1113 = vpop.f32.mrb[0].mxu0
      %v1114 = vadd.f32 0.0, %v1113
      %v1115 = vpop.f32.mrb[0].mxu0
      %1116 = vmatprep.mubr.bf16.mxu0 0
      %1117 = vmatmul.mubr.bf16.gmra.mrb[0].mxu0 %v489
      %v1118 = vpop.f32.mrb[0].mxu0
      %v1119 = vadd.f32 0.0, %v1118
      %v1120 = vpop.f32.mrb[0].mxu0
      %v1121 = vpop.f32.mrb[0].mxu0
      %v1122 = vadd.f32 0.0, %v1121
      %v1123 = vpop.f32.mrb[0].mxu0
      %1124 = vmatprep.mubr.bf16.mxu0 0
      %1125 = vmatmul.mubr.bf16.gmra.mrb[0].mxu0 %v490
      %v1126 = vpop.f32.mrb[0].mxu0
      %v1127 = vadd.f32 0.0, %v1126
      %v1128 = vpop.f32.mrb[0].mxu0
      %v1129 = vpop.f32.mrb[0].mxu0
      %v1130 = vadd.f32 0.0, %v1129
      %v1131 = vpop.f32.mrb[0].mxu0
      %1132 = vmatprep.mubr.bf16.mxu0 0
      %1133 = vmatmul.mubr.bf16.gmra.mrb[0].mxu0 %v491
      %v1134 = vpop.f32.mrb[0].mxu0
      %v1135 = vadd.f32 0.0, %v1134
      %v1136 = vpop.f32.mrb[0].mxu0
      %v1137 = vpop.f32.mrb[0].mxu0
      %v1138 = vadd.f32 0.0, %v1137
      %v1139 = vpop.f32.mrb[0].mxu0
      %1140 = vmatprep.mubr.bf16.mxu0 0
      %1141 = vmatmul.mubr.bf16.gmra.mrb[0].mxu0 %v492
      %v1142 = vpop.f32.mrb[0].mxu0
      %v1143 = vadd.f32 0.0, %v1142
      %v1144 = vpop.f32.mrb[0].mxu0
      %v1145 = vpop.f32.mrb[0].mxu0
      %v1146 = vadd.f32 0.0, %v1145
      %v1147 = vpop.f32.mrb[0].mxu0
      %1148 = vmatprep.mubr.bf16.mxu0 0
      %1149 = vmatmul.mubr.bf16.gmra.mrb[0].mxu0 %v493
      %v1150 = vpop.f32.mrb[0].mxu0
      %v1151 = vadd.f32 0.0, %v1150
      %v1152 = vpop.f32.mrb[0].mxu0
      %v1153 = vpop.f32.mrb[0].mxu0
      %v1154 = vadd.f32 0.0, %v1153
      %v1155 = vpop.f32.mrb[0].mxu0
      %1156 = vmatprep.mubr.bf16.mxu0 0
      %1157 = vmatmul.mubr.bf16.gmra.mrb[0].mxu0 %v494
      %v1158 = vpop.f32.mrb[0].mxu0
      %v1159 = vadd.f32 0.0, %v1158
      %v1160 = vpop.f32.mrb[0].mxu0
      %v1161 = vpop.f32.mrb[0].mxu0
      %v1162 = vadd.f32 0.0, %v1161
      %v1163 = vpop.f32.mrb[0].mxu0
      %1164 = vmatprep.mubr.bf16.mxu0 0
      %1165 = vmatmul.mubr.bf16.gmra.mrb[0].mxu0 %v495
      %v1166 = vpop.f32.mrb[0].mxu0
      %v1167 = vadd.f32 0.0, %v1166
      %v1168 = vpop.f32.mrb[0].mxu0
      %v1169 = vpop.f32.mrb[0].mxu0
      %v1170 = vadd.f32 0.0, %v1169
      %v1171 = vpop.f32.mrb[0].mxu0
      %1172 = vdwg.mxu0
      %v1173 = vadd.f32 %v821, %v1047
      %v1174 = vadd.f32 %v824, %v1050
      %v1175 = vadd.f32 %v829, %v1055
      %v1176 = vadd.f32 %v832, %v1058
      %v1177 = vadd.f32 %v837, %v1063
      %v1178 = vadd.f32 %v840, %v1066
      %v1179 = vadd.f32 %v845, %v1071
      %v1180 = vadd.f32 %v848, %v1074
      %v1181 = vadd.f32 %v853, %v1079
      %v1182 = vadd.f32 %v856, %v1082
      %v1183 = vadd.f32 %v861, %v1087
      %v1184 = vadd.f32 %v864, %v1090
      %v1185 = vadd.f32 %v869, %v1095
      %v1186 = vadd.f32 %v872, %v1098
      %v1187 = vadd.f32 %v877, %v1103
      %v1188 = vadd.f32 %v880, %v1106
      %v1189 = vadd.f32 %v885, %v1111
      %v1190 = vadd.f32 %v888, %v1114
      %v1191 = vadd.f32 %v893, %v1119
      %v1192 = vadd.f32 %v896, %v1122
      %v1193 = vadd.f32 %v901, %v1127
      %v1194 = vadd.f32 %v904, %v1130
      %v1195 = vadd.f32 %v909, %v1135
      %v1196 = vadd.f32 %v912, %v1138
      %v1197 = vadd.f32 %v917, %v1143
      %v1198 = vadd.f32 %v920, %v1146
      %v1199 = vadd.f32 %v925, %v1151
      %v1200 = vadd.f32 %v928, %v1154
      %v1201 = vadd.f32 %v933, %v1159
      %v1202 = vadd.f32 %v936, %v1162
      %v1203 = vadd.f32 %v941, %v1167
      %v1204 = vadd.f32 %v944, %v1170
      %v1205 = vld [vmem:[#allocation2 + $0x1] sm:$0xff]
      %v1206 = vld [vmem:[#allocation2 + $0x9] sm:$0xff]
      %v1207 = vld [vmem:[#allocation2 + $0x19] sm:$0xff]
      %v1208 = vld [vmem:[#allocation2 + $0x21] sm:$0xff]
      %v1209 = vld [vmem:[#allocation2 + $0x31] sm:$0xff]
      %v1210 = vld [vmem:[#allocation2 + $0x39] sm:$0xff]
      %v1211 = vld [vmem:[#allocation2 + $0x49] sm:$0xff]
      %v1212 = vld [vmem:[#allocation2 + $0x51] sm:$0xff]
      %v1213 = vld [vmem:[#allocation2 + $0x61] sm:$0xff]
      %v1214 = vld [vmem:[#allocation2 + $0x69] sm:$0xff]
      %v1215 = vld [vmem:[#allocation2 + $0x79] sm:$0xff]
      %v1216 = vld [vmem:[#allocation2 + $0x81] sm:$0xff]
      %v1217 = vld [vmem:[#allocation2 + $0x91] sm:$0xff]
      %v1218 = vld [vmem:[#allocation2 + $0x99] sm:$0xff]
      %v1219 = vld [vmem:[#allocation2 + $0xa9] sm:$0xff]
      %v1220 = vld [vmem:[#allocation2 + $0xb1] sm:$0xff]
      %v1221 = vld [vmem:[#allocation2 + $0xc1] sm:$0xff]
      %v1222 = vld [vmem:[#allocation2 + $0xc9] sm:$0xff]
      %v1223 = vld [vmem:[#allocation2 + $0xd9] sm:$0xff]
      %v1224 = vld [vmem:[#allocation2 + $0xe1] sm:$0xff]
      %v1225 = vld [vmem:[#allocation2 + $0xf1] sm:$0xff]
      %v1226 = vld [vmem:[#allocation2 + $0xf9] sm:$0xff]
      %v1227 = vld [vmem:[#allocation2 + $0x109] sm:$0xff]
      %v1228 = vld [vmem:[#allocation2 + $0x111] sm:$0xff]
      %v1229 = vld [vmem:[#allocation2 + $0x121] sm:$0xff]
      %v1230 = vld [vmem:[#allocation2 + $0x129] sm:$0xff]
      %v1231 = vld [vmem:[#allocation2 + $0x139] sm:$0xff]
      %v1232 = vld [vmem:[#allocation2 + $0x141] sm:$0xff]
      %v1233 = vld [vmem:[#allocation2 + $0x151] sm:$0xff]
      %v1234 = vld [vmem:[#allocation2 + $0x159] sm:$0xff]
      %v1235 = vld [vmem:[#allocation2 + $0x169] sm:$0xff]
      %v1236 = vld [vmem:[#allocation2 + $0x171] sm:$0xff]
      %v1237 = vld [vmem:[#allocation2 + $0x181] sm:$0xff]
      %v1238 = vld [vmem:[#allocation2 + $0x189] sm:$0xff]
      %v1239 = vld [vmem:[#allocation2 + $0x199] sm:$0xff]
      %v1240 = vld [vmem:[#allocation2 + $0x1a1] sm:$0xff]
      %v1241 = vpack.c.bf16 %v1206, %v1205
      %v1242 = vpack.c.bf16 %v1208, %v1207
      %v1243 = vpack.c.bf16 %v1210, %v1209
      %v1244 = vpack.c.bf16 %v1212, %v1211
      %v1245 = vpack.c.bf16 %v1214, %v1213
      %v1246 = vpack.c.bf16 %v1216, %v1215
      %v1247 = vpack.c.bf16 %v1218, %v1217
      %v1248 = vpack.c.bf16 %v1220, %v1219
      %v1249 = vpack.c.bf16 %v1222, %v1221
      %v1250 = vpack.c.bf16 %v1224, %v1223
      %v1251 = vpack.c.bf16 %v1226, %v1225
      %v1252 = vpack.c.bf16 %v1228, %v1227
      %v1253 = vpack.c.bf16 %v1230, %v1229
      %v1254 = vpack.c.bf16 %v1232, %v1231
      %v1255 = vpack.c.bf16 %v1234, %v1233
      %v1256 = vpack.c.bf16 %v1236, %v1235
      %v1257 = vpack.c.bf16 %v1238, %v1237
      %v1258 = vpack.c.bf16 %v1240, %v1239
      %s1259 = scalar_lea.vmem %s1, 64
      %v1260 = vld [vmem:[%s1259] sm:$0xf]
      %v1261 = vld [vmem:[%s1259 + $0x4] sm:$0xf]
      %v1262 = vld [vmem:[%s1259 + $0x8] sm:$0xf]
      %v1263 = vld [vmem:[%s1259 + $0xc] sm:$0xf]
      %v1264 = vld [vmem:[%s1259 + $0x10] sm:$0xf]
      %v1265 = vld [vmem:[%s1259 + $0x14] sm:$0xf]
      %v1266 = vld [vmem:[%s1259 + $0x18] sm:$0xf]
      %v1267 = vld [vmem:[%s1259 + $0x1c] sm:$0xf]
      %v1268 = vld [vmem:[%s1259 + $0x20] sm:$0xf]
      %v1269 = vld [vmem:[%s1259 + $0x24] sm:$0xf]
      %v1270 = vld [vmem:[%s1259 + $0x28] sm:$0xf]
      %v1271 = vld [vmem:[%s1259 + $0x2c] sm:$0xf]
      %v1272 = vld [vmem:[%s1259 + $0x30] sm:$0xf]
      %v1273 = vld [vmem:[%s1259 + $0x34] sm:$0xf]
      %v1274 = vld [vmem:[%s1259 + $0x38] sm:$0xf]
      %v1275 = vld [vmem:[%s1259 + $0x3c] sm:$0xf]
      %v1292 = vunpack.c.l.b16 %v1260
      %v1293 = vunpack.c.l.b16 %v1261
      %v1294 = vunpack.c.l.b16 %v1262
      %v1295 = vunpack.c.l.b16 %v1263
      %v1296 = vunpack.c.l.b16 %v1264
      %v1297 = vunpack.c.l.b16 %v1265
      %v1298 = vunpack.c.l.b16 %v1266
      %v1299 = vunpack.c.l.b16 %v1267
      %v1300 = vunpack.c.l.b16 %v1268
      %v1301 = vunpack.c.l.b16 %v1269
      %v1302 = vunpack.c.l.b16 %v1270
      %v1303 = vunpack.c.l.b16 %v1271
      %v1304 = vunpack.c.l.b16 %v1272
      %v1305 = vunpack.c.l.b16 %v1273
      %v1306 = vunpack.c.l.b16 %v1274
      %v1307 = vunpack.c.l.b16 %v1275
      %v1308 = vpack.c.b16 %v1293, %v1292
      %v1309 = vpack.c.b16 %v1295, %v1294
      %v1310 = vpack.c.b16 %v1297, %v1296
      %v1311 = vpack.c.b16 %v1299, %v1298
      %v1312 = vpack.c.b16 %v1301, %v1300
      %v1313 = vpack.c.b16 %v1303, %v1302
      %v1314 = vpack.c.b16 %v1305, %v1304
      %v1315 = vpack.c.b16 %v1307, %v1306
      %1324 = vmatprep.subr.bf16.mxu0 0
      %1325 = vmatpush1.bf16.msra.mxu0 %v1308
      %1326 = vmatprep.subr.bf16.mxu0 0
      %1327 = vmatpush1.bf16.msra.mxu0 %v1309
      %1328 = vmatprep.subr.bf16.mxu0 0
      %1329 = vmatpush1.bf16.msra.mxu0 %v1310
      %1330 = vmatprep.subr.bf16.mxu0 0
      %1331 = vmatpush1.bf16.msra.mxu0 %v1311
      %1332 = vmatprep.subr.bf16.mxu0 0
      %1333 = vmatpush1.bf16.msra.mxu0 %v1312
      %1334 = vmatprep.subr.bf16.mxu0 0
      %1335 = vmatpush1.bf16.msra.mxu0 %v1313
      %1336 = vmatprep.subr.bf16.mxu0 0
      %1337 = vmatpush1.bf16.msra.mxu0 %v1314
      %1338 = vmatprep.subr.bf16.mxu0 0
      %1339 = vmatpush1.bf16.msra.mxu0 %v1315
      %1340 = vmatprep.subr.bf16.mxu0 0
      %1341 = vmatpush1.bf16.msra.mxu0 0
      %1342 = vmatprep.subr.bf16.mxu0 0
      %1343 = vmatpush1.bf16.msra.mxu0 0
      %1344 = vmatprep.subr.bf16.mxu0 0
      %1345 = vmatpush1.bf16.msra.mxu0 0
      %1346 = vmatprep.subr.bf16.mxu0 0
      %1347 = vmatpush1.bf16.msra.mxu0 0
      %1348 = vmatprep.subr.bf16.mxu0 0
      %1349 = vmatpush1.bf16.msra.mxu0 0
      %1350 = vmatprep.subr.bf16.mxu0 0
      %1351 = vmatpush1.bf16.msra.mxu0 0
      %1352 = vmatprep.subr.bf16.mxu0 0
      %1353 = vmatpush1.bf16.msra.mxu0 0
      %1354 = vmatprep.subr.bf16.mxu0 0
      %1355 = vmatpush1.bf16.msra.mxu0 0
      %1356 = vmatprep.mubr.bf16.mxu0 0
      %1357 = vmatmul.mubr.bf16.gmra.mrb[0].mxu0 %v1241
      %v1358 = vpop.f32.mrb[0].mxu0
      %v1359 = vadd.f32 0.0, %v1358
      %v1360 = vpop.f32.mrb[0].mxu0
      %v1361 = vpop.f32.mrb[0].mxu0
      %v1362 = vadd.f32 0.0, %v1361
      %v1363 = vpop.f32.mrb[0].mxu0
      %1364 = vmatprep.mubr.bf16.mxu0 0
      %1365 = vmatmul.mubr.bf16.gmra.mrb[0].mxu0 %v1242
      %v1366 = vpop.f32.mrb[0].mxu0
      %v1367 = vadd.f32 0.0, %v1366
      %v1368 = vpop.f32.mrb[0].mxu0
      %v1369 = vpop.f32.mrb[0].mxu0
      %v1370 = vadd.f32 0.0, %v1369
      %v1371 = vpop.f32.mrb[0].mxu0
      %1372 = vmatprep.mubr.bf16.mxu0 0
      %1373 = vmatmul.mubr.bf16.gmra.mrb[0].mxu0 %v1243
      %v1374 = vpop.f32.mrb[0].mxu0
      %v1375 = vadd.f32 0.0, %v1374
      %v1376 = vpop.f32.mrb[0].mxu0
      %v1377 = vpop.f32.mrb[0].mxu0
      %v1378 = vadd.f32 0.0, %v1377
      %v1379 = vpop.f32.mrb[0].mxu0
      %1380 = vmatprep.mubr.bf16.mxu0 0
      %1381 = vmatmul.mubr.bf16.gmra.mrb[0].mxu0 %v1244
      %v1382 = vpop.f32.mrb[0].mxu0
      %v1383 = vadd.f32 0.0, %v1382
      %v1384 = vpop.f32.mrb[0].mxu0
      %v1385 = vpop.f32.mrb[0].mxu0
      %v1386 = vadd.f32 0.0, %v1385
      %v1387 = vpop.f32.mrb[0].mxu0
      %1388 = vmatprep.mubr.bf16.mxu0 0
      %1389 = vmatmul.mubr.bf16.gmra.mrb[0].mxu0 %v1245
      %v1390 = vpop.f32.mrb[0].mxu0
      %v1391 = vadd.f32 0.0, %v1390
      %v1392 = vpop.f32.mrb[0].mxu0
      %v1393 = vpop.f32.mrb[0].mxu0
      %v1394 = vadd.f32 0.0, %v1393
      %v1395 = vpop.f32.mrb[0].mxu0
      %1396 = vmatprep.mubr.bf16.mxu0 0
      %1397 = vmatmul.mubr.bf16.gmra.mrb[0].mxu0 %v1246
      %v1398 = vpop.f32.mrb[0].mxu0
      %v1399 = vadd.f32 0.0, %v1398
      %v1400 = vpop.f32.mrb[0].mxu0
      %v1401 = vpop.f32.mrb[0].mxu0
      %v1402 = vadd.f32 0.0, %v1401
      %v1403 = vpop.f32.mrb[0].mxu0
      %1404 = vmatprep.mubr.bf16.mxu0 0
      %1405 = vmatmul.mubr.bf16.gmra.mrb[0].mxu0 %v1247
      %v1406 = vpop.f32.mrb[0].mxu0
      %v1407 = vadd.f32 0.0, %v1406
      %v1408 = vpop.f32.mrb[0].mxu0
      %v1409 = vpop.f32.mrb[0].mxu0
      %v1410 = vadd.f32 0.0, %v1409
      %v1411 = vpop.f32.mrb[0].mxu0
      %1412 = vmatprep.mubr.bf16.mxu0 0
      %1413 = vmatmul.mubr.bf16.gmra.mrb[0].mxu0 %v1248
      %v1414 = vpop.f32.mrb[0].mxu0
      %v1415 = vadd.f32 0.0, %v1414
      %v1416 = vpop.f32.mrb[0].mxu0
      %v1417 = vpop.f32.mrb[0].mxu0
      %v1418 = vadd.f32 0.0, %v1417
      %v1419 = vpop.f32.mrb[0].mxu0
      %1420 = vmatprep.mubr.bf16.mxu0 0
      %1421 = vmatmul.mubr.bf16.gmra.mrb[0].mxu0 %v1249
      %v1422 = vpop.f32.mrb[0].mxu0
      %v1423 = vadd.f32 0.0, %v1422
      %v1424 = vpop.f32.mrb[0].mxu0
      %v1425 = vpop.f32.mrb[0].mxu0
      %v1426 = vadd.f32 0.0, %v1425
      %v1427 = vpop.f32.mrb[0].mxu0
      %1428 = vmatprep.mubr.bf16.mxu0 0
      %1429 = vmatmul.mubr.bf16.gmra.mrb[0].mxu0 %v1250
      %v1430 = vpop.f32.mrb[0].mxu0
      %v1431 = vadd.f32 0.0, %v1430
      %v1432 = vpop.f32.mrb[0].mxu0
      %v1433 = vpop.f32.mrb[0].mxu0
      %v1434 = vadd.f32 0.0, %v1433
      %v1435 = vpop.f32.mrb[0].mxu0
      %1436 = vmatprep.mubr.bf16.mxu0 0
      %1437 = vmatmul.mubr.bf16.gmra.mrb[0].mxu0 %v1251
      %v1438 = vpop.f32.mrb[0].mxu0
      %v1439 = vadd.f32 0.0, %v1438
      %v1440 = vpop.f32.mrb[0].mxu0
      %v1441 = vpop.f32.mrb[0].mxu0
      %v1442 = vadd.f32 0.0, %v1441
      %v1443 = vpop.f32.mrb[0].mxu0
      %1444 = vmatprep.mubr.bf16.mxu0 0
      %1445 = vmatmul.mubr.bf16.gmra.mrb[0].mxu0 %v1252
      %v1446 = vpop.f32.mrb[0].mxu0
      %v1447 = vadd.f32 0.0, %v1446
      %v1448 = vpop.f32.mrb[0].mxu0
      %v1449 = vpop.f32.mrb[0].mxu0
      %v1450 = vadd.f32 0.0, %v1449
      %v1451 = vpop.f32.mrb[0].mxu0
      %1452 = vmatprep.mubr.bf16.mxu0 0
      %1453 = vmatmul.mubr.bf16.gmra.mrb[0].mxu0 %v1253
      %v1454 = vpop.f32.mrb[0].mxu0
      %v1455 = vadd.f32 0.0, %v1454
      %v1456 = vpop.f32.mrb[0].mxu0
      %v1457 = vpop.f32.mrb[0].mxu0
      %v1458 = vadd.f32 0.0, %v1457
      %v1459 = vpop.f32.mrb[0].mxu0
      %1460 = vmatprep.mubr.bf16.mxu0 0
      %1461 = vmatmul.mubr.bf16.gmra.mrb[0].mxu0 %v1254
      %v1462 = vpop.f32.mrb[0].mxu0
      %v1463 = vadd.f32 0.0, %v1462
      %v1464 = vpop.f32.mrb[0].mxu0
      %v1465 = vpop.f32.mrb[0].mxu0
      %v1466 = vadd.f32 0.0, %v1465
      %v1467 = vpop.f32.mrb[0].mxu0
      %1468 = vmatprep.mubr.bf16.mxu0 0
      %1469 = vmatmul.mubr.bf16.gmra.mrb[0].mxu0 %v1255
      %v1470 = vpop.f32.mrb[0].mxu0
      %v1471 = vadd.f32 0.0, %v1470
      %v1472 = vpop.f32.mrb[0].mxu0
      %v1473 = vpop.f32.mrb[0].mxu0
      %v1474 = vadd.f32 0.0, %v1473
      %v1475 = vpop.f32.mrb[0].mxu0
      %1476 = vmatprep.mubr.bf16.mxu0 0
      %1477 = vmatmul.mubr.bf16.gmra.mrb[0].mxu0 %v1256
      %v1478 = vpop.f32.mrb[0].mxu0
      %v1479 = vadd.f32 0.0, %v1478
      %v1480 = vpop.f32.mrb[0].mxu0
      %v1481 = vpop.f32.mrb[0].mxu0
      %v1482 = vadd.f32 0.0, %v1481
      %v1483 = vpop.f32.mrb[0].mxu0
      %1484 = vdwg.mxu0
      %v1485 = vadd.f32 %v1173, %v1359
      %v1486 = vadd.f32 %v1174, %v1362
      %v1487 = vadd.f32 %v1175, %v1367
      %v1488 = vadd.f32 %v1176, %v1370
      %v1489 = vadd.f32 %v1177, %v1375
      %v1490 = vadd.f32 %v1178, %v1378
      %v1491 = vadd.f32 %v1179, %v1383
      %v1492 = vadd.f32 %v1180, %v1386
      %v1493 = vadd.f32 %v1181, %v1391
      %v1494 = vadd.f32 %v1182, %v1394
      %v1495 = vadd.f32 %v1183, %v1399
      %v1496 = vadd.f32 %v1184, %v1402
      %v1497 = vadd.f32 %v1185, %v1407
      %v1498 = vadd.f32 %v1186, %v1410
      %v1499 = vadd.f32 %v1187, %v1415
      %v1500 = vadd.f32 %v1188, %v1418
      %v1501 = vadd.f32 %v1189, %v1423
      %v1502 = vadd.f32 %v1190, %v1426
      %v1503 = vadd.f32 %v1191, %v1431
      %v1504 = vadd.f32 %v1192, %v1434
      %v1505 = vadd.f32 %v1193, %v1439
      %v1506 = vadd.f32 %v1194, %v1442
      %v1507 = vadd.f32 %v1195, %v1447
      %v1508 = vadd.f32 %v1196, %v1450
      %v1509 = vadd.f32 %v1197, %v1455
      %v1510 = vadd.f32 %v1198, %v1458
      %v1511 = vadd.f32 %v1199, %v1463
      %v1512 = vadd.f32 %v1200, %v1466
      %v1513 = vadd.f32 %v1201, %v1471
      %v1514 = vadd.f32 %v1202, %v1474
      %v1515 = vadd.f32 %v1203, %v1479
      %v1516 = vadd.f32 %v1204, %v1482
      %s1517 = scalar_lea.vmem %s1, 256
      %v1518 = vld [vmem:[%s1517] sm:$0xf]
      %v1519 = vld [vmem:[%s1517 + $0x4] sm:$0xf]
      %v1520 = vld [vmem:[%s1517 + $0x8] sm:$0xf]
      %v1521 = vld [vmem:[%s1517 + $0xc] sm:$0xf]
      %v1522 = vld [vmem:[%s1517 + $0x10] sm:$0xf]
      %v1523 = vld [vmem:[%s1517 + $0x14] sm:$0xf]
      %v1524 = vld [vmem:[%s1517 + $0x18] sm:$0xf]
      %v1525 = vld [vmem:[%s1517 + $0x1c] sm:$0xf]
      %v1526 = vld [vmem:[%s1517 + $0x20] sm:$0xf]
      %v1527 = vld [vmem:[%s1517 + $0x24] sm:$0xf]
      %v1528 = vld [vmem:[%s1517 + $0x28] sm:$0xf]
      %v1529 = vld [vmem:[%s1517 + $0x2c] sm:$0xf]
      %v1530 = vld [vmem:[%s1517 + $0x30] sm:$0xf]
      %v1531 = vld [vmem:[%s1517 + $0x34] sm:$0xf]
      %v1532 = vld [vmem:[%s1517 + $0x38] sm:$0xf]
      %v1533 = vld [vmem:[%s1517 + $0x3c] sm:$0xf]
      %v1550 = vunpack.c.l.b16 %v1518
      %v1551 = vunpack.c.l.b16 %v1519
      %v1552 = vunpack.c.l.b16 %v1520
      %v1553 = vunpack.c.l.b16 %v1521
      %v1554 = vunpack.c.l.b16 %v1522
      %v1555 = vunpack.c.l.b16 %v1523
      %v1556 = vunpack.c.l.b16 %v1524
      %v1557 = vunpack.c.l.b16 %v1525
      %v1558 = vunpack.c.l.b16 %v1526
      %v1559 = vunpack.c.l.b16 %v1527
      %v1560 = vunpack.c.l.b16 %v1528
      %v1561 = vunpack.c.l.b16 %v1529
      %v1562 = vunpack.c.l.b16 %v1530
      %v1563 = vunpack.c.l.b16 %v1531
      %v1564 = vunpack.c.l.b16 %v1532
      %v1565 = vunpack.c.l.b16 %v1533
      %v1566 = vpack.c.b16 %v1551, %v1550
      %v1567 = vpack.c.b16 %v1553, %v1552
      %v1568 = vpack.c.b16 %v1555, %v1554
      %v1569 = vpack.c.b16 %v1557, %v1556
      %v1570 = vpack.c.b16 %v1559, %v1558
      %v1571 = vpack.c.b16 %v1561, %v1560
      %v1572 = vpack.c.b16 %v1563, %v1562
      %v1573 = vpack.c.b16 %v1565, %v1564
      %1582 = vmatprep.subr.bf16.mxu0 0
      %1583 = vmatpush1.bf16.msra.mxu0 %v1566
      %1584 = vmatprep.subr.bf16.mxu0 0
      %1585 = vmatpush1.bf16.msra.mxu0 %v1567
      %1586 = vmatprep.subr.bf16.mxu0 0
      %1587 = vmatpush1.bf16.msra.mxu0 %v1568
      %1588 = vmatprep.subr.bf16.mxu0 0
      %1589 = vmatpush1.bf16.msra.mxu0 %v1569
      %1590 = vmatprep.subr.bf16.mxu0 0
      %1591 = vmatpush1.bf16.msra.mxu0 %v1570
      %1592 = vmatprep.subr.bf16.mxu0 0
      %1593 = vmatpush1.bf16.msra.mxu0 %v1571
      %1594 = vmatprep.subr.bf16.mxu0 0
      %1595 = vmatpush1.bf16.msra.mxu0 %v1572
      %1596 = vmatprep.subr.bf16.mxu0 0
      %1597 = vmatpush1.bf16.msra.mxu0 %v1573
      %1598 = vmatprep.subr.bf16.mxu0 0
      %1599 = vmatpush1.bf16.msra.mxu0 0
      %1600 = vmatprep.subr.bf16.mxu0 0
      %1601 = vmatpush1.bf16.msra.mxu0 0
      %1602 = vmatprep.subr.bf16.mxu0 0
      %1603 = vmatpush1.bf16.msra.mxu0 0
      %1604 = vmatprep.subr.bf16.mxu0 0
      %1605 = vmatpush1.bf16.msra.mxu0 0
      %1606 = vmatprep.subr.bf16.mxu0 0
      %1607 = vmatpush1.bf16.msra.mxu0 0
      %1608 = vmatprep.subr.bf16.mxu0 0
      %1609 = vmatpush1.bf16.msra.mxu0 0
      %1610 = vmatprep.subr.bf16.mxu0 0
      %1611 = vmatpush1.bf16.msra.mxu0 0
      %1612 = vmatprep.subr.bf16.mxu0 0
      %1613 = vmatpush1.bf16.msra.mxu0 0
      %1614 = vmatprep.mubr.bf16.mxu0 0
      %1615 = vmatmul.mubr.bf16.gmra.mrb[0].mxu0 %v1242
      %v1616 = vpop.f32.mrb[0].mxu0
      %v1617 = vadd.f32 0.0, %v1616
      %v1618 = vpop.f32.mrb[0].mxu0
      %v1619 = vpop.f32.mrb[0].mxu0
      %v1620 = vadd.f32 0.0, %v1619
      %v1621 = vpop.f32.mrb[0].mxu0
      %1622 = vmatprep.mubr.bf16.mxu0 0
      %1623 = vmatmul.mubr.bf16.gmra.mrb[0].mxu0 %v1243
      %v1624 = vpop.f32.mrb[0].mxu0
      %v1625 = vadd.f32 0.0, %v1624
      %v1626 = vpop.f32.mrb[0].mxu0
      %v1627 = vpop.f32.mrb[0].mxu0
      %v1628 = vadd.f32 0.0, %v1627
      %v1629 = vpop.f32.mrb[0].mxu0
      %1630 = vmatprep.mubr.bf16.mxu0 0
      %1631 = vmatmul.mubr.bf16.gmra.mrb[0].mxu0 %v1244
      %v1632 = vpop.f32.mrb[0].mxu0
      %v1633 = vadd.f32 0.0, %v1632
      %v1634 = vpop.f32.mrb[0].mxu0
      %v1635 = vpop.f32.mrb[0].mxu0
      %v1636 = vadd.f32 0.0, %v1635
      %v1637 = vpop.f32.mrb[0].mxu0
      %1638 = vmatprep.mubr.bf16.mxu0 0
      %1639 = vmatmul.mubr.bf16.gmra.mrb[0].mxu0 %v1245
      %v1640 = vpop.f32.mrb[0].mxu0
      %v1641 = vadd.f32 0.0, %v1640
      %v1642 = vpop.f32.mrb[0].mxu0
      %v1643 = vpop.f32.mrb[0].mxu0
      %v1644 = vadd.f32 0.0, %v1643
      %v1645 = vpop.f32.mrb[0].mxu0
      %1646 = vmatprep.mubr.bf16.mxu0 0
      %1647 = vmatmul.mubr.bf16.gmra.mrb[0].mxu0 %v1246
      %v1648 = vpop.f32.mrb[0].mxu0
      %v1649 = vadd.f32 0.0, %v1648
      %v1650 = vpop.f32.mrb[0].mxu0
      %v1651 = vpop.f32.mrb[0].mxu0
      %v1652 = vadd.f32 0.0, %v1651
      %v1653 = vpop.f32.mrb[0].mxu0
      %1654 = vmatprep.mubr.bf16.mxu0 0
      %1655 = vmatmul.mubr.bf16.gmra.mrb[0].mxu0 %v1247
      %v1656 = vpop.f32.mrb[0].mxu0
      %v1657 = vadd.f32 0.0, %v1656
      %v1658 = vpop.f32.mrb[0].mxu0
      %v1659 = vpop.f32.mrb[0].mxu0
      %v1660 = vadd.f32 0.0, %v1659
      %v1661 = vpop.f32.mrb[0].mxu0
      %1662 = vmatprep.mubr.bf16.mxu0 0
      %1663 = vmatmul.mubr.bf16.gmra.mrb[0].mxu0 %v1248
      %v1664 = vpop.f32.mrb[0].mxu0
      %v1665 = vadd.f32 0.0, %v1664
      %v1666 = vpop.f32.mrb[0].mxu0
      %v1667 = vpop.f32.mrb[0].mxu0
      %v1668 = vadd.f32 0.0, %v1667
      %v1669 = vpop.f32.mrb[0].mxu0
      %1670 = vmatprep.mubr.bf16.mxu0 0
      %1671 = vmatmul.mubr.bf16.gmra.mrb[0].mxu0 %v1249
      %v1672 = vpop.f32.mrb[0].mxu0
      %v1673 = vadd.f32 0.0, %v1672
      %v1674 = vpop.f32.mrb[0].mxu0
      %v1675 = vpop.f32.mrb[0].mxu0
      %v1676 = vadd.f32 0.0, %v1675
      %v1677 = vpop.f32.mrb[0].mxu0
      %1678 = vmatprep.mubr.bf16.mxu0 0
      %1679 = vmatmul.mubr.bf16.gmra.mrb[0].mxu0 %v1250
      %v1680 = vpop.f32.mrb[0].mxu0
      %v1681 = vadd.f32 0.0, %v1680
      %v1682 = vpop.f32.mrb[0].mxu0
      %v1683 = vpop.f32.mrb[0].mxu0
      %v1684 = vadd.f32 0.0, %v1683
      %v1685 = vpop.f32.mrb[0].mxu0
      %1686 = vmatprep.mubr.bf16.mxu0 0
      %1687 = vmatmul.mubr.bf16.gmra.mrb[0].mxu0 %v1251
      %v1688 = vpop.f32.mrb[0].mxu0
      %v1689 = vadd.f32 0.0, %v1688
      %v1690 = vpop.f32.mrb[0].mxu0
      %v1691 = vpop.f32.mrb[0].mxu0
      %v1692 = vadd.f32 0.0, %v1691
      %v1693 = vpop.f32.mrb[0].mxu0
      %1694 = vmatprep.mubr.bf16.mxu0 0
      %1695 = vmatmul.mubr.bf16.gmra.mrb[0].mxu0 %v1252
      %v1696 = vpop.f32.mrb[0].mxu0
      %v1697 = vadd.f32 0.0, %v1696
      %v1698 = vpop.f32.mrb[0].mxu0
      %v1699 = vpop.f32.mrb[0].mxu0
      %v1700 = vadd.f32 0.0, %v1699
      %v1701 = vpop.f32.mrb[0].mxu0
      %1702 = vmatprep.mubr.bf16.mxu0 0
      %1703 = vmatmul.mubr.bf16.gmra.mrb[0].mxu0 %v1253
      %v1704 = vpop.f32.mrb[0].mxu0
      %v1705 = vadd.f32 0.0, %v1704
      %v1706 = vpop.f32.mrb[0].mxu0
      %v1707 = vpop.f32.mrb[0].mxu0
      %v1708 = vadd.f32 0.0, %v1707
      %v1709 = vpop.f32.mrb[0].mxu0
      %1710 = vmatprep.mubr.bf16.mxu0 0
      %1711 = vmatmul.mubr.bf16.gmra.mrb[0].mxu0 %v1254
      %v1712 = vpop.f32.mrb[0].mxu0
      %v1713 = vadd.f32 0.0, %v1712
      %v1714 = vpop.f32.mrb[0].mxu0
      %v1715 = vpop.f32.mrb[0].mxu0
      %v1716 = vadd.f32 0.0, %v1715
      %v1717 = vpop.f32.mrb[0].mxu0
      %1718 = vmatprep.mubr.bf16.mxu0 0
      %1719 = vmatmul.mubr.bf16.gmra.mrb[0].mxu0 %v1255
      %v1720 = vpop.f32.mrb[0].mxu0
      %v1721 = vadd.f32 0.0, %v1720
      %v1722 = vpop.f32.mrb[0].mxu0
      %v1723 = vpop.f32.mrb[0].mxu0
      %v1724 = vadd.f32 0.0, %v1723
      %v1725 = vpop.f32.mrb[0].mxu0
      %1726 = vmatprep.mubr.bf16.mxu0 0
      %1727 = vmatmul.mubr.bf16.gmra.mrb[0].mxu0 %v1256
      %v1728 = vpop.f32.mrb[0].mxu0
      %v1729 = vadd.f32 0.0, %v1728
      %v1730 = vpop.f32.mrb[0].mxu0
      %v1731 = vpop.f32.mrb[0].mxu0
      %v1732 = vadd.f32 0.0, %v1731
      %v1733 = vpop.f32.mrb[0].mxu0
      %1734 = vmatprep.mubr.bf16.mxu0 0
      %1735 = vmatmul.mubr.bf16.gmra.mrb[0].mxu0 %v1257
      %v1736 = vpop.f32.mrb[0].mxu0
      %v1737 = vadd.f32 0.0, %v1736
      %v1738 = vpop.f32.mrb[0].mxu0
      %v1739 = vpop.f32.mrb[0].mxu0
      %v1740 = vadd.f32 0.0, %v1739
      %v1741 = vpop.f32.mrb[0].mxu0
      %1742 = vdwg.mxu0
      %v1743 = vadd.f32 %v1485, %v1617
      %v1744 = vadd.f32 %v1486, %v1620
      %v1745 = vadd.f32 %v1487, %v1625
      %v1746 = vadd.f32 %v1488, %v1628
      %v1747 = vadd.f32 %v1489, %v1633
      %v1748 = vadd.f32 %v1490, %v1636
      %v1749 = vadd.f32 %v1491, %v1641
      %v1750 = vadd.f32 %v1492, %v1644
      %v1751 = vadd.f32 %v1493, %v1649
      %v1752 = vadd.f32 %v1494, %v1652
      %v1753 = vadd.f32 %v1495, %v1657
      %v1754 = vadd.f32 %v1496, %v1660
      %v1755 = vadd.f32 %v1497, %v1665
      %v1756 = vadd.f32 %v1498, %v1668
      %v1757 = vadd.f32 %v1499, %v1673
      %v1758 = vadd.f32 %v1500, %v1676
      %v1759 = vadd.f32 %v1501, %v1681
      %v1760 = vadd.f32 %v1502, %v1684
      %v1761 = vadd.f32 %v1503, %v1689
      %v1762 = vadd.f32 %v1504, %v1692
      %v1763 = vadd.f32 %v1505, %v1697
      %v1764 = vadd.f32 %v1506, %v1700
      %v1765 = vadd.f32 %v1507, %v1705
      %v1766 = vadd.f32 %v1508, %v1708
      %v1767 = vadd.f32 %v1509, %v1713
      %v1768 = vadd.f32 %v1510, %v1716
      %v1769 = vadd.f32 %v1511, %v1721
      %v1770 = vadd.f32 %v1512, %v1724
      %v1771 = vadd.f32 %v1513, %v1729
      %v1772 = vadd.f32 %v1514, %v1732
      %v1773 = vadd.f32 %v1515, %v1737
      %v1774 = vadd.f32 %v1516, %v1740
      %s1775 = scalar_lea.vmem %s1, 448
      %v1776 = vld [vmem:[%s1775] sm:$0xf]
      %v1777 = vld [vmem:[%s1775 + $0x4] sm:$0xf]
      %v1778 = vld [vmem:[%s1775 + $0x8] sm:$0xf]
      %v1779 = vld [vmem:[%s1775 + $0xc] sm:$0xf]
      %v1780 = vld [vmem:[%s1775 + $0x10] sm:$0xf]
      %v1781 = vld [vmem:[%s1775 + $0x14] sm:$0xf]
      %v1782 = vld [vmem:[%s1775 + $0x18] sm:$0xf]
      %v1783 = vld [vmem:[%s1775 + $0x1c] sm:$0xf]
      %v1784 = vld [vmem:[%s1775 + $0x20] sm:$0xf]
      %v1785 = vld [vmem:[%s1775 + $0x24] sm:$0xf]
      %v1786 = vld [vmem:[%s1775 + $0x28] sm:$0xf]
      %v1787 = vld [vmem:[%s1775 + $0x2c] sm:$0xf]
      %v1788 = vld [vmem:[%s1775 + $0x30] sm:$0xf]
      %v1789 = vld [vmem:[%s1775 + $0x34] sm:$0xf]
      %v1790 = vld [vmem:[%s1775 + $0x38] sm:$0xf]
      %v1791 = vld [vmem:[%s1775 + $0x3c] sm:$0xf]
      %v1808 = vunpack.c.l.b16 %v1776
      %v1809 = vunpack.c.l.b16 %v1777
      %v1810 = vunpack.c.l.b16 %v1778
      %v1811 = vunpack.c.l.b16 %v1779
      %v1812 = vunpack.c.l.b16 %v1780
      %v1813 = vunpack.c.l.b16 %v1781
      %v1814 = vunpack.c.l.b16 %v1782
      %v1815 = vunpack.c.l.b16 %v1783
      %v1816 = vunpack.c.l.b16 %v1784
      %v1817 = vunpack.c.l.b16 %v1785
      %v1818 = vunpack.c.l.b16 %v1786
      %v1819 = vunpack.c.l.b16 %v1787
      %v1820 = vunpack.c.l.b16 %v1788
      %v1821 = vunpack.c.l.b16 %v1789
      %v1822 = vunpack.c.l.b16 %v1790
      %v1823 = vunpack.c.l.b16 %v1791
      %v1824 = vpack.c.b16 %v1809, %v1808
      %v1825 = vpack.c.b16 %v1811, %v1810
      %v1826 = vpack.c.b16 %v1813, %v1812
      %v1827 = vpack.c.b16 %v1815, %v1814
      %v1828 = vpack.c.b16 %v1817, %v1816
      %v1829 = vpack.c.b16 %v1819, %v1818
      %v1830 = vpack.c.b16 %v1821, %v1820
      %v1831 = vpack.c.b16 %v1823, %v1822
      %1840 = vmatprep.subr.bf16.mxu0 0
      %1841 = vmatpush1.bf16.msra.mxu0 %v1824
      %1842 = vmatprep.subr.bf16.mxu0 0
      %1843 = vmatpush1.bf16.msra.mxu0 %v1825
      %1844 = vmatprep.subr.bf16.mxu0 0
      %1845 = vmatpush1.bf16.msra.mxu0 %v1826
      %1846 = vmatprep.subr.bf16.mxu0 0
      %1847 = vmatpush1.bf16.msra.mxu0 %v1827
      %1848 = vmatprep.subr.bf16.mxu0 0
      %1849 = vmatpush1.bf16.msra.mxu0 %v1828
      %1850 = vmatprep.subr.bf16.mxu0 0
      %1851 = vmatpush1.bf16.msra.mxu0 %v1829
      %1852 = vmatprep.subr.bf16.mxu0 0
      %1853 = vmatpush1.bf16.msra.mxu0 %v1830
      %1854 = vmatprep.subr.bf16.mxu0 0
      %1855 = vmatpush1.bf16.msra.mxu0 %v1831
      %1856 = vmatprep.subr.bf16.mxu0 0
      %1857 = vmatpush1.bf16.msra.mxu0 0
      %1858 = vmatprep.subr.bf16.mxu0 0
      %1859 = vmatpush1.bf16.msra.mxu0 0
      %1860 = vmatprep.subr.bf16.mxu0 0
      %1861 = vmatpush1.bf16.msra.mxu0 0
      %1862 = vmatprep.subr.bf16.mxu0 0
      %1863 = vmatpush1.bf16.msra.mxu0 0
      %1864 = vmatprep.subr.bf16.mxu0 0
      %1865 = vmatpush1.bf16.msra.mxu0 0
      %1866 = vmatprep.subr.bf16.mxu0 0
      %1867 = vmatpush1.bf16.msra.mxu0 0
      %1868 = vmatprep.subr.bf16.mxu0 0
      %1869 = vmatpush1.bf16.msra.mxu0 0
      %1870 = vmatprep.subr.bf16.mxu0 0
      %1871 = vmatpush1.bf16.msra.mxu0 0
      %1872 = vmatprep.mubr.bf16.mxu0 0
      %1873 = vmatmul.mubr.bf16.gmra.mrb[0].mxu0 %v1243
      %v1874 = vpop.f32.mrb[0].mxu0
      %v1875 = vadd.f32 0.0, %v1874
      %v1876 = vpop.f32.mrb[0].mxu0
      %v1877 = vpop.f32.mrb[0].mxu0
      %v1878 = vadd.f32 0.0, %v1877
      %v1879 = vpop.f32.mrb[0].mxu0
      %1880 = vmatprep.mubr.bf16.mxu0 0
      %1881 = vmatmul.mubr.bf16.gmra.mrb[0].mxu0 %v1244
      %v1882 = vpop.f32.mrb[0].mxu0
      %v1883 = vadd.f32 0.0, %v1882
      %v1884 = vpop.f32.mrb[0].mxu0
      %v1885 = vpop.f32.mrb[0].mxu0
      %v1886 = vadd.f32 0.0, %v1885
      %v1887 = vpop.f32.mrb[0].mxu0
      %1888 = vmatprep.mubr.bf16.mxu0 0
      %1889 = vmatmul.mubr.bf16.gmra.mrb[0].mxu0 %v1245
      %v1890 = vpop.f32.mrb[0].mxu0
      %v1891 = vadd.f32 0.0, %v1890
      %v1892 = vpop.f32.mrb[0].mxu0
      %v1893 = vpop.f32.mrb[0].mxu0
      %v1894 = vadd.f32 0.0, %v1893
      %v1895 = vpop.f32.mrb[0].mxu0
      %1896 = vmatprep.mubr.bf16.mxu0 0
      %1897 = vmatmul.mubr.bf16.gmra.mrb[0].mxu0 %v1246
      %v1898 = vpop.f32.mrb[0].mxu0
      %v1899 = vadd.f32 0.0, %v1898
      %v1900 = vpop.f32.mrb[0].mxu0
      %v1901 = vpop.f32.mrb[0].mxu0
      %v1902 = vadd.f32 0.0, %v1901
      %v1903 = vpop.f32.mrb[0].mxu0
      %1904 = vmatprep.mubr.bf16.mxu0 0
      %1905 = vmatmul.mubr.bf16.gmra.mrb[0].mxu0 %v1247
      %v1906 = vpop.f32.mrb[0].mxu0
      %v1907 = vadd.f32 0.0, %v1906
      %v1908 = vpop.f32.mrb[0].mxu0
      %v1909 = vpop.f32.mrb[0].mxu0
      %v1910 = vadd.f32 0.0, %v1909
      %v1911 = vpop.f32.mrb[0].mxu0
      %1912 = vmatprep.mubr.bf16.mxu0 0
      %1913 = vmatmul.mubr.bf16.gmra.mrb[0].mxu0 %v1248
      %v1914 = vpop.f32.mrb[0].mxu0
      %v1915 = vadd.f32 0.0, %v1914
      %v1916 = vpop.f32.mrb[0].mxu0
      %v1917 = vpop.f32.mrb[0].mxu0
      %v1918 = vadd.f32 0.0, %v1917
      %v1919 = vpop.f32.mrb[0].mxu0
      %1920 = vmatprep.mubr.bf16.mxu0 0
      %1921 = vmatmul.mubr.bf16.gmra.mrb[0].mxu0 %v1249
      %v1922 = vpop.f32.mrb[0].mxu0
      %v1923 = vadd.f32 0.0, %v1922
      %v1924 = vpop.f32.mrb[0].mxu0
      %v1925 = vpop.f32.mrb[0].mxu0
      %v1926 = vadd.f32 0.0, %v1925
      %v1927 = vpop.f32.mrb[0].mxu0
      %1928 = vmatprep.mubr.bf16.mxu0 0
      %1929 = vmatmul.mubr.bf16.gmra.mrb[0].mxu0 %v1250
      %v1930 = vpop.f32.mrb[0].mxu0
      %v1931 = vadd.f32 0.0, %v1930
      %v1932 = vpop.f32.mrb[0].mxu0
      %v1933 = vpop.f32.mrb[0].mxu0
      %v1934 = vadd.f32 0.0, %v1933
      %v1935 = vpop.f32.mrb[0].mxu0
      %1936 = vmatprep.mubr.bf16.mxu0 0
      %1937 = vmatmul.mubr.bf16.gmra.mrb[0].mxu0 %v1251
      %v1938 = vpop.f32.mrb[0].mxu0
      %v1939 = vadd.f32 0.0, %v1938
      %v1940 = vpop.f32.mrb[0].mxu0
      %v1941 = vpop.f32.mrb[0].mxu0
      %v1942 = vadd.f32 0.0, %v1941
      %v1943 = vpop.f32.mrb[0].mxu0
      %1944 = vmatprep.mubr.bf16.mxu0 0
      %1945 = vmatmul.mubr.bf16.gmra.mrb[0].mxu0 %v1252
      %v1946 = vpop.f32.mrb[0].mxu0
      %v1947 = vadd.f32 0.0, %v1946
      %v1948 = vpop.f32.mrb[0].mxu0
      %v1949 = vpop.f32.mrb[0].mxu0
      %v1950 = vadd.f32 0.0, %v1949
      %v1951 = vpop.f32.mrb[0].mxu0
      %1952 = vmatprep.mubr.bf16.mxu0 0
      %1953 = vmatmul.mubr.bf16.gmra.mrb[0].mxu0 %v1253
      %v1954 = vpop.f32.mrb[0].mxu0
      %v1955 = vadd.f32 0.0, %v1954
      %v1956 = vpop.f32.mrb[0].mxu0
      %v1957 = vpop.f32.mrb[0].mxu0
      %v1958 = vadd.f32 0.0, %v1957
      %v1959 = vpop.f32.mrb[0].mxu0
      %1960 = vmatprep.mubr.bf16.mxu0 0
      %1961 = vmatmul.mubr.bf16.gmra.mrb[0].mxu0 %v1254
      %v1962 = vpop.f32.mrb[0].mxu0
      %v1963 = vadd.f32 0.0, %v1962
      %v1964 = vpop.f32.mrb[0].mxu0
      %v1965 = vpop.f32.mrb[0].mxu0
      %v1966 = vadd.f32 0.0, %v1965
      %v1967 = vpop.f32.mrb[0].mxu0
      %1968 = vmatprep.mubr.bf16.mxu0 0
      %1969 = vmatmul.mubr.bf16.gmra.mrb[0].mxu0 %v1255
      %v1970 = vpop.f32.mrb[0].mxu0
      %v1971 = vadd.f32 0.0, %v1970
      %v1972 = vpop.f32.mrb[0].mxu0
      %v1973 = vpop.f32.mrb[0].mxu0
      %v1974 = vadd.f32 0.0, %v1973
      %v1975 = vpop.f32.mrb[0].mxu0
      %1976 = vmatprep.mubr.bf16.mxu0 0
      %1977 = vmatmul.mubr.bf16.gmra.mrb[0].mxu0 %v1256
      %v1978 = vpop.f32.mrb[0].mxu0
      %v1979 = vadd.f32 0.0, %v1978
      %v1980 = vpop.f32.mrb[0].mxu0
      %v1981 = vpop.f32.mrb[0].mxu0
      %v1982 = vadd.f32 0.0, %v1981
      %v1983 = vpop.f32.mrb[0].mxu0
      %1984 = vmatprep.mubr.bf16.mxu0 0
      %1985 = vmatmul.mubr.bf16.gmra.mrb[0].mxu0 %v1257
      %v1986 = vpop.f32.mrb[0].mxu0
      %v1987 = vadd.f32 0.0, %v1986
      %v1988 = vpop.f32.mrb[0].mxu0
      %v1989 = vpop.f32.mrb[0].mxu0
      %v1990 = vadd.f32 0.0, %v1989
      %v1991 = vpop.f32.mrb[0].mxu0
      %1992 = vmatprep.mubr.bf16.mxu0 0
      %1993 = vmatmul.mubr.bf16.gmra.mrb[0].mxu0 %v1258
      %v1994 = vpop.f32.mrb[0].mxu0
      %v1995 = vadd.f32 0.0, %v1994
      %v1996 = vpop.f32.mrb[0].mxu0
      %v1997 = vpop.f32.mrb[0].mxu0
      %v1998 = vadd.f32 0.0, %v1997
      %v1999 = vpop.f32.mrb[0].mxu0
      %2000 = vdwg.mxu0
      %v2001 = vadd.f32 %v1743, %v1875
      %v2002 = vadd.f32 %v1744, %v1878
      %v2003 = vadd.f32 %v1745, %v1883
      %v2004 = vadd.f32 %v1746, %v1886
      %v2005 = vadd.f32 %v1747, %v1891
      %v2006 = vadd.f32 %v1748, %v1894
      %v2007 = vadd.f32 %v1749, %v1899
      %v2008 = vadd.f32 %v1750, %v1902
      %v2009 = vadd.f32 %v1751, %v1907
      %v2010 = vadd.f32 %v1752, %v1910
      %v2011 = vadd.f32 %v1753, %v1915
      %v2012 = vadd.f32 %v1754, %v1918
      %v2013 = vadd.f32 %v1755, %v1923
      %v2014 = vadd.f32 %v1756, %v1926
      %v2015 = vadd.f32 %v1757, %v1931
      %v2016 = vadd.f32 %v1758, %v1934
      %v2017 = vadd.f32 %v1759, %v1939
      %v2018 = vadd.f32 %v1760, %v1942
      %v2019 = vadd.f32 %v1761, %v1947
      %v2020 = vadd.f32 %v1762, %v1950
      %v2021 = vadd.f32 %v1763, %v1955
      %v2022 = vadd.f32 %v1764, %v1958
      %v2023 = vadd.f32 %v1765, %v1963
      %v2024 = vadd.f32 %v1766, %v1966
      %v2025 = vadd.f32 %v1767, %v1971
      %v2026 = vadd.f32 %v1768, %v1974
      %v2027 = vadd.f32 %v1769, %v1979
      %v2028 = vadd.f32 %v1770, %v1982
      %v2029 = vadd.f32 %v1771, %v1987
      %v2030 = vadd.f32 %v1772, %v1990
      %v2031 = vadd.f32 %v1773, %v1995
      %v2032 = vadd.f32 %v1774, %v1998
      %v2033 = vld [vmem:[#allocation2 + $0x2] sm:$0xff]
      %v2034 = vld [vmem:[#allocation2 + $0xa] sm:$0xff]
      %v2035 = vld [vmem:[#allocation2 + $0x1a] sm:$0xff]
      %v2036 = vld [vmem:[#allocation2 + $0x22] sm:$0xff]
      %v2037 = vld [vmem:[#allocation2 + $0x32] sm:$0xff]
      %v2038 = vld [vmem:[#allocation2 + $0x3a] sm:$0xff]
      %v2039 = vld [vmem:[#allocation2 + $0x4a] sm:$0xff]
      %v2040 = vld [vmem:[#allocation2 + $0x52] sm:$0xff]
      %v2041 = vld [vmem:[#allocation2 + $0x62] sm:$0xff]
      %v2042 = vld [vmem:[#allocation2 + $0x6a] sm:$0xff]
      %v2043 = vld [vmem:[#allocation2 + $0x7a] sm:$0xff]
      %v2044 = vld [vmem:[#allocation2 + $0x82] sm:$0xff]
      %v2045 = vld [vmem:[#allocation2 + $0x92] sm:$0xff]
      %v2046 = vld [vmem:[#allocation2 + $0x9a] sm:$0xff]
      %v2047 = vld [vmem:[#allocation2 + $0xaa] sm:$0xff]
      %v2048 = vld [vmem:[#allocation2 + $0xb2] sm:$0xff]
      %v2049 = vld [vmem:[#allocation2 + $0xc2] sm:$0xff]
      %v2050 = vld [vmem:[#allocation2 + $0xca] sm:$0xff]
      %v2051 = vld [vmem:[#allocation2 + $0xda] sm:$0xff]
      %v2052 = vld [vmem:[#allocation2 + $0xe2] sm:$0xff]
      %v2053 = vld [vmem:[#allocation2 + $0xf2] sm:$0xff]
      %v2054 = vld [vmem:[#allocation2 + $0xfa] sm:$0xff]
      %v2055 = vld [vmem:[#allocation2 + $0x10a] sm:$0xff]
      %v2056 = vld [vmem:[#allocation2 + $0x112] sm:$0xff]
      %v2057 = vld [vmem:[#allocation2 + $0x122] sm:$0xff]
      %v2058 = vld [vmem:[#allocation2 + $0x12a] sm:$0xff]
      %v2059 = vld [vmem:[#allocation2 + $0x13a] sm:$0xff]
      %v2060 = vld [vmem:[#allocation2 + $0x142] sm:$0xff]
      %v2061 = vld [vmem:[#allocation2 + $0x152] sm:$0xff]
      %v2062 = vld [vmem:[#allocation2 + $0x15a] sm:$0xff]
      %v2063 = vld [vmem:[#allocation2 + $0x16a] sm:$0xff]
      %v2064 = vld [vmem:[#allocation2 + $0x172] sm:$0xff]
      %v2065 = vld [vmem:[#allocation2 + $0x182] sm:$0xff]
      %v2066 = vld [vmem:[#allocation2 + $0x18a] sm:$0xff]
      %v2067 = vld [vmem:[#allocation2 + $0x19a] sm:$0xff]
      %v2068 = vld [vmem:[#allocation2 + $0x1a2] sm:$0xff]
      %v2069 = vpack.c.bf16 %v2034, %v2033
      %v2070 = vpack.c.bf16 %v2036, %v2035
      %v2071 = vpack.c.bf16 %v2038, %v2037
      %v2072 = vpack.c.bf16 %v2040, %v2039
      %v2073 = vpack.c.bf16 %v2042, %v2041
      %v2074 = vpack.c.bf16 %v2044, %v2043
      %v2075 = vpack.c.bf16 %v2046, %v2045
      %v2076 = vpack.c.bf16 %v2048, %v2047
      %v2077 = vpack.c.bf16 %v2050, %v2049
      %v2078 = vpack.c.bf16 %v2052, %v2051
      %v2079 = vpack.c.bf16 %v2054, %v2053
      %v2080 = vpack.c.bf16 %v2056, %v2055
      %v2081 = vpack.c.bf16 %v2058, %v2057
      %v2082 = vpack.c.bf16 %v2060, %v2059
      %v2083 = vpack.c.bf16 %v2062, %v2061
      %v2084 = vpack.c.bf16 %v2064, %v2063
      %v2085 = vpack.c.bf16 %v2066, %v2065
      %v2086 = vpack.c.bf16 %v2068, %v2067
      %s2087 = scalar_lea.vmem %s1, 128
      %v2088 = vld [vmem:[%s2087] sm:$0xf]
      %v2089 = vld [vmem:[%s2087 + $0x4] sm:$0xf]
      %v2090 = vld [vmem:[%s2087 + $0x8] sm:$0xf]
      %v2091 = vld [vmem:[%s2087 + $0xc] sm:$0xf]
      %v2092 = vld [vmem:[%s2087 + $0x10] sm:$0xf]
      %v2093 = vld [vmem:[%s2087 + $0x14] sm:$0xf]
      %v2094 = vld [vmem:[%s2087 + $0x18] sm:$0xf]
      %v2095 = vld [vmem:[%s2087 + $0x1c] sm:$0xf]
      %v2096 = vld [vmem:[%s2087 + $0x20] sm:$0xf]
      %v2097 = vld [vmem:[%s2087 + $0x24] sm:$0xf]
      %v2098 = vld [vmem:[%s2087 + $0x28] sm:$0xf]
      %v2099 = vld [vmem:[%s2087 + $0x2c] sm:$0xf]
      %v2100 = vld [vmem:[%s2087 + $0x30] sm:$0xf]
      %v2101 = vld [vmem:[%s2087 + $0x34] sm:$0xf]
      %v2102 = vld [vmem:[%s2087 + $0x38] sm:$0xf]
      %v2103 = vld [vmem:[%s2087 + $0x3c] sm:$0xf]
      %v2120 = vunpack.c.l.b16 %v2088
      %v2121 = vunpack.c.l.b16 %v2089
      %v2122 = vunpack.c.l.b16 %v2090
      %v2123 = vunpack.c.l.b16 %v2091
      %v2124 = vunpack.c.l.b16 %v2092
      %v2125 = vunpack.c.l.b16 %v2093
      %v2126 = vunpack.c.l.b16 %v2094
      %v2127 = vunpack.c.l.b16 %v2095
      %v2128 = vunpack.c.l.b16 %v2096
      %v2129 = vunpack.c.l.b16 %v2097
      %v2130 = vunpack.c.l.b16 %v2098
      %v2131 = vunpack.c.l.b16 %v2099
      %v2132 = vunpack.c.l.b16 %v2100
      %v2133 = vunpack.c.l.b16 %v2101
      %v2134 = vunpack.c.l.b16 %v2102
      %v2135 = vunpack.c.l.b16 %v2103
      %v2136 = vpack.c.b16 %v2121, %v2120
      %v2137 = vpack.c.b16 %v2123, %v2122
      %v2138 = vpack.c.b16 %v2125, %v2124
      %v2139 = vpack.c.b16 %v2127, %v2126
      %v2140 = vpack.c.b16 %v2129, %v2128
      %v2141 = vpack.c.b16 %v2131, %v2130
      %v2142 = vpack.c.b16 %v2133, %v2132
      %v2143 = vpack.c.b16 %v2135, %v2134
      %2152 = vmatprep.subr.bf16.mxu0 0
      %2153 = vmatpush1.bf16.msra.mxu0 %v2136
      %2154 = vmatprep.subr.bf16.mxu0 0
      %2155 = vmatpush1.bf16.msra.mxu0 %v2137
      %2156 = vmatprep.subr.bf16.mxu0 0
      %2157 = vmatpush1.bf16.msra.mxu0 %v2138
      %2158 = vmatprep.subr.bf16.mxu0 0
      %2159 = vmatpush1.bf16.msra.mxu0 %v2139
      %2160 = vmatprep.subr.bf16.mxu0 0
      %2161 = vmatpush1.bf16.msra.mxu0 %v2140
      %2162 = vmatprep.subr.bf16.mxu0 0
      %2163 = vmatpush1.bf16.msra.mxu0 %v2141
      %2164 = vmatprep.subr.bf16.mxu0 0
      %2165 = vmatpush1.bf16.msra.mxu0 %v2142
      %2166 = vmatprep.subr.bf16.mxu0 0
      %2167 = vmatpush1.bf16.msra.mxu0 %v2143
      %2168 = vmatprep.subr.bf16.mxu0 0
      %2169 = vmatpush1.bf16.msra.mxu0 0
      %2170 = vmatprep.subr.bf16.mxu0 0
      %2171 = vmatpush1.bf16.msra.mxu0 0
      %2172 = vmatprep.subr.bf16.mxu0 0
      %2173 = vmatpush1.bf16.msra.mxu0 0
      %2174 = vmatprep.subr.bf16.mxu0 0
      %2175 = vmatpush1.bf16.msra.mxu0 0
      %2176 = vmatprep.subr.bf16.mxu0 0
      %2177 = vmatpush1.bf16.msra.mxu0 0
      %2178 = vmatprep.subr.bf16.mxu0 0
      %2179 = vmatpush1.bf16.msra.mxu0 0
      %2180 = vmatprep.subr.bf16.mxu0 0
      %2181 = vmatpush1.bf16.msra.mxu0 0
      %2182 = vmatprep.subr.bf16.mxu0 0
      %2183 = vmatpush1.bf16.msra.mxu0 0
      %2184 = vmatprep.mubr.bf16.mxu0 0
      %2185 = vmatmul.mubr.bf16.gmra.mrb[0].mxu0 %v2069
      %v2186 = vpop.f32.mrb[0].mxu0
      %v2187 = vadd.f32 0.0, %v2186
      %v2188 = vpop.f32.mrb[0].mxu0
      %v2189 = vpop.f32.mrb[0].mxu0
      %v2190 = vadd.f32 0.0, %v2189
      %v2191 = vpop.f32.mrb[0].mxu0
      %2192 = vmatprep.mubr.bf16.mxu0 0
      %2193 = vmatmul.mubr.bf16.gmra.mrb[0].mxu0 %v2070
      %v2194 = vpop.f32.mrb[0].mxu0
      %v2195 = vadd.f32 0.0, %v2194
      %v2196 = vpop.f32.mrb[0].mxu0
      %v2197 = vpop.f32.mrb[0].mxu0
      %v2198 = vadd.f32 0.0, %v2197
      %v2199 = vpop.f32.mrb[0].mxu0
      %2200 = vmatprep.mubr.bf16.mxu0 0
      %2201 = vmatmul.mubr.bf16.gmra.mrb[0].mxu0 %v2071
      %v2202 = vpop.f32.mrb[0].mxu0
      %v2203 = vadd.f32 0.0, %v2202
      %v2204 = vpop.f32.mrb[0].mxu0
      %v2205 = vpop.f32.mrb[0].mxu0
      %v2206 = vadd.f32 0.0, %v2205
      %v2207 = vpop.f32.mrb[0].mxu0
      %2208 = vmatprep.mubr.bf16.mxu0 0
      %2209 = vmatmul.mubr.bf16.gmra.mrb[0].mxu0 %v2072
      %v2210 = vpop.f32.mrb[0].mxu0
      %v2211 = vadd.f32 0.0, %v2210
      %v2212 = vpop.f32.mrb[0].mxu0
      %v2213 = vpop.f32.mrb[0].mxu0
      %v2214 = vadd.f32 0.0, %v2213
      %v2215 = vpop.f32.mrb[0].mxu0
      %2216 = vmatprep.mubr.bf16.mxu0 0
      %2217 = vmatmul.mubr.bf16.gmra.mrb[0].mxu0 %v2073
      %v2218 = vpop.f32.mrb[0].mxu0
      %v2219 = vadd.f32 0.0, %v2218
      %v2220 = vpop.f32.mrb[0].mxu0
      %v2221 = vpop.f32.mrb[0].mxu0
      %v2222 = vadd.f32 0.0, %v2221
      %v2223 = vpop.f32.mrb[0].mxu0
      %2224 = vmatprep.mubr.bf16.mxu0 0
      %2225 = vmatmul.mubr.bf16.gmra.mrb[0].mxu0 %v2074
      %v2226 = vpop.f32.mrb[0].mxu0
      %v2227 = vadd.f32 0.0, %v2226
      %v2228 = vpop.f32.mrb[0].mxu0
      %v2229 = vpop.f32.mrb[0].mxu0
      %v2230 = vadd.f32 0.0, %v2229
      %v2231 = vpop.f32.mrb[0].mxu0
      %2232 = vmatprep.mubr.bf16.mxu0 0
      %2233 = vmatmul.mubr.bf16.gmra.mrb[0].mxu0 %v2075
      %v2234 = vpop.f32.mrb[0].mxu0
      %v2235 = vadd.f32 0.0, %v2234
      %v2236 = vpop.f32.mrb[0].mxu0
      %v2237 = vpop.f32.mrb[0].mxu0
      %v2238 = vadd.f32 0.0, %v2237
      %v2239 = vpop.f32.mrb[0].mxu0
      %2240 = vmatprep.mubr.bf16.mxu0 0
      %2241 = vmatmul.mubr.bf16.gmra.mrb[0].mxu0 %v2076
      %v2242 = vpop.f32.mrb[0].mxu0
      %v2243 = vadd.f32 0.0, %v2242
      %v2244 = vpop.f32.mrb[0].mxu0
      %v2245 = vpop.f32.mrb[0].mxu0
      %v2246 = vadd.f32 0.0, %v2245
      %v2247 = vpop.f32.mrb[0].mxu0
      %2248 = vmatprep.mubr.bf16.mxu0 0
      %2249 = vmatmul.mubr.bf16.gmra.mrb[0].mxu0 %v2077
      %v2250 = vpop.f32.mrb[0].mxu0
      %v2251 = vadd.f32 0.0, %v2250
      %v2252 = vpop.f32.mrb[0].mxu0
      %v2253 = vpop.f32.mrb[0].mxu0
      %v2254 = vadd.f32 0.0, %v2253
      %v2255 = vpop.f32.mrb[0].mxu0
      %2256 = vmatprep.mubr.bf16.mxu0 0
      %2257 = vmatmul.mubr.bf16.gmra.mrb[0].mxu0 %v2078
      %v2258 = vpop.f32.mrb[0].mxu0
      %v2259 = vadd.f32 0.0, %v2258
      %v2260 = vpop.f32.mrb[0].mxu0
      %v2261 = vpop.f32.mrb[0].mxu0
      %v2262 = vadd.f32 0.0, %v2261
      %v2263 = vpop.f32.mrb[0].mxu0
      %2264 = vmatprep.mubr.bf16.mxu0 0
      %2265 = vmatmul.mubr.bf16.gmra.mrb[0].mxu0 %v2079
      %v2266 = vpop.f32.mrb[0].mxu0
      %v2267 = vadd.f32 0.0, %v2266
      %v2268 = vpop.f32.mrb[0].mxu0
      %v2269 = vpop.f32.mrb[0].mxu0
      %v2270 = vadd.f32 0.0, %v2269
      %v2271 = vpop.f32.mrb[0].mxu0
      %2272 = vmatprep.mubr.bf16.mxu0 0
      %2273 = vmatmul.mubr.bf16.gmra.mrb[0].mxu0 %v2080
      %v2274 = vpop.f32.mrb[0].mxu0
      %v2275 = vadd.f32 0.0, %v2274
      %v2276 = vpop.f32.mrb[0].mxu0
      %v2277 = vpop.f32.mrb[0].mxu0
      %v2278 = vadd.f32 0.0, %v2277
      %v2279 = vpop.f32.mrb[0].mxu0
      %2280 = vmatprep.mubr.bf16.mxu0 0
      %2281 = vmatmul.mubr.bf16.gmra.mrb[0].mxu0 %v2081
      %v2282 = vpop.f32.mrb[0].mxu0
      %v2283 = vadd.f32 0.0, %v2282
      %v2284 = vpop.f32.mrb[0].mxu0
      %v2285 = vpop.f32.mrb[0].mxu0
      %v2286 = vadd.f32 0.0, %v2285
      %v2287 = vpop.f32.mrb[0].mxu0
      %2288 = vmatprep.mubr.bf16.mxu0 0
      %2289 = vmatmul.mubr.bf16.gmra.mrb[0].mxu0 %v2082
      %v2290 = vpop.f32.mrb[0].mxu0
      %v2291 = vadd.f32 0.0, %v2290
      %v2292 = vpop.f32.mrb[0].mxu0
      %v2293 = vpop.f32.mrb[0].mxu0
      %v2294 = vadd.f32 0.0, %v2293
      %v2295 = vpop.f32.mrb[0].mxu0
      %2296 = vmatprep.mubr.bf16.mxu0 0
      %2297 = vmatmul.mubr.bf16.gmra.mrb[0].mxu0 %v2083
      %v2298 = vpop.f32.mrb[0].mxu0
      %v2299 = vadd.f32 0.0, %v2298
      %v2300 = vpop.f32.mrb[0].mxu0
      %v2301 = vpop.f32.mrb[0].mxu0
      %v2302 = vadd.f32 0.0, %v2301
      %v2303 = vpop.f32.mrb[0].mxu0
      %2304 = vmatprep.mubr.bf16.mxu0 0
      %2305 = vmatmul.mubr.bf16.gmra.mrb[0].mxu0 %v2084
      %v2306 = vpop.f32.mrb[0].mxu0
      %v2307 = vadd.f32 0.0, %v2306
      %v2308 = vpop.f32.mrb[0].mxu0
      %v2309 = vpop.f32.mrb[0].mxu0
      %v2310 = vadd.f32 0.0, %v2309
      %v2311 = vpop.f32.mrb[0].mxu0
      %2312 = vdwg.mxu0
      %v2313 = vadd.f32 %v2001, %v2187
      %v2314 = vadd.f32 %v2002, %v2190
      %v2315 = vadd.f32 %v2003, %v2195
      %v2316 = vadd.f32 %v2004, %v2198
      %v2317 = vadd.f32 %v2005, %v2203
      %v2318 = vadd.f32 %v2006, %v2206
      %v2319 = vadd.f32 %v2007, %v2211
      %v2320 = vadd.f32 %v2008, %v2214
      %v2321 = vadd.f32 %v2009, %v2219
      %v2322 = vadd.f32 %v2010, %v2222
      %v2323 = vadd.f32 %v2011, %v2227
      %v2324 = vadd.f32 %v2012, %v2230
      %v2325 = vadd.f32 %v2013, %v2235
      %v2326 = vadd.f32 %v2014, %v2238
      %v2327 = vadd.f32 %v2015, %v2243
      %v2328 = vadd.f32 %v2016, %v2246
      %v2329 = vadd.f32 %v2017, %v2251
      %v2330 = vadd.f32 %v2018, %v2254
      %v2331 = vadd.f32 %v2019, %v2259
      %v2332 = vadd.f32 %v2020, %v2262
      %v2333 = vadd.f32 %v2021, %v2267
      %v2334 = vadd.f32 %v2022, %v2270
      %v2335 = vadd.f32 %v2023, %v2275
      %v2336 = vadd.f32 %v2024, %v2278
      %v2337 = vadd.f32 %v2025, %v2283
      %v2338 = vadd.f32 %v2026, %v2286
      %v2339 = vadd.f32 %v2027, %v2291
      %v2340 = vadd.f32 %v2028, %v2294
      %v2341 = vadd.f32 %v2029, %v2299
      %v2342 = vadd.f32 %v2030, %v2302
      %v2343 = vadd.f32 %v2031, %v2307
      %v2344 = vadd.f32 %v2032, %v2310
      %s2345 = scalar_lea.vmem %s1, 320
      %v2346 = vld [vmem:[%s2345] sm:$0xf]
      %v2347 = vld [vmem:[%s2345 + $0x4] sm:$0xf]
      %v2348 = vld [vmem:[%s2345 + $0x8] sm:$0xf]
      %v2349 = vld [vmem:[%s2345 + $0xc] sm:$0xf]
      %v2350 = vld [vmem:[%s2345 + $0x10] sm:$0xf]
      %v2351 = vld [vmem:[%s2345 + $0x14] sm:$0xf]
      %v2352 = vld [vmem:[%s2345 + $0x18] sm:$0xf]
      %v2353 = vld [vmem:[%s2345 + $0x1c] sm:$0xf]
      %v2354 = vld [vmem:[%s2345 + $0x20] sm:$0xf]
      %v2355 = vld [vmem:[%s2345 + $0x24] sm:$0xf]
      %v2356 = vld [vmem:[%s2345 + $0x28] sm:$0xf]
      %v2357 = vld [vmem:[%s2345 + $0x2c] sm:$0xf]
      %v2358 = vld [vmem:[%s2345 + $0x30] sm:$0xf]
      %v2359 = vld [vmem:[%s2345 + $0x34] sm:$0xf]
      %v2360 = vld [vmem:[%s2345 + $0x38] sm:$0xf]
      %v2361 = vld [vmem:[%s2345 + $0x3c] sm:$0xf]
      %v2378 = vunpack.c.l.b16 %v2346
      %v2379 = vunpack.c.l.b16 %v2347
      %v2380 = vunpack.c.l.b16 %v2348
      %v2381 = vunpack.c.l.b16 %v2349
      %v2382 = vunpack.c.l.b16 %v2350
      %v2383 = vunpack.c.l.b16 %v2351
      %v2384 = vunpack.c.l.b16 %v2352
      %v2385 = vunpack.c.l.b16 %v2353
      %v2386 = vunpack.c.l.b16 %v2354
      %v2387 = vunpack.c.l.b16 %v2355
      %v2388 = vunpack.c.l.b16 %v2356
      %v2389 = vunpack.c.l.b16 %v2357
      %v2390 = vunpack.c.l.b16 %v2358
      %v2391 = vunpack.c.l.b16 %v2359
      %v2392 = vunpack.c.l.b16 %v2360
      %v2393 = vunpack.c.l.b16 %v2361
      %v2394 = vpack.c.b16 %v2379, %v2378
      %v2395 = vpack.c.b16 %v2381, %v2380
      %v2396 = vpack.c.b16 %v2383, %v2382
      %v2397 = vpack.c.b16 %v2385, %v2384
      %v2398 = vpack.c.b16 %v2387, %v2386
      %v2399 = vpack.c.b16 %v2389, %v2388
      %v2400 = vpack.c.b16 %v2391, %v2390
      %v2401 = vpack.c.b16 %v2393, %v2392
      %2410 = vmatprep.subr.bf16.mxu0 0
      %2411 = vmatpush1.bf16.msra.mxu0 %v2394
      %2412 = vmatprep.subr.bf16.mxu0 0
      %2413 = vmatpush1.bf16.msra.mxu0 %v2395
      %2414 = vmatprep.subr.bf16.mxu0 0
      %2415 = vmatpush1.bf16.msra.mxu0 %v2396
      %2416 = vmatprep.subr.bf16.mxu0 0
      %2417 = vmatpush1.bf16.msra.mxu0 %v2397
      %2418 = vmatprep.subr.bf16.mxu0 0
      %2419 = vmatpush1.bf16.msra.mxu0 %v2398
      %2420 = vmatprep.subr.bf16.mxu0 0
      %2421 = vmatpush1.bf16.msra.mxu0 %v2399
      %2422 = vmatprep.subr.bf16.mxu0 0
      %2423 = vmatpush1.bf16.msra.mxu0 %v2400
      %2424 = vmatprep.subr.bf16.mxu0 0
      %2425 = vmatpush1.bf16.msra.mxu0 %v2401
      %2426 = vmatprep.subr.bf16.mxu0 0
      %2427 = vmatpush1.bf16.msra.mxu0 0
      %2428 = vmatprep.subr.bf16.mxu0 0
      %2429 = vmatpush1.bf16.msra.mxu0 0
      %2430 = vmatprep.subr.bf16.mxu0 0
      %2431 = vmatpush1.bf16.msra.mxu0 0
      %2432 = vmatprep.subr.bf16.mxu0 0
      %2433 = vmatpush1.bf16.msra.mxu0 0
      %2434 = vmatprep.subr.bf16.mxu0 0
      %2435 = vmatpush1.bf16.msra.mxu0 0
      %2436 = vmatprep.subr.bf16.mxu0 0
      %2437 = vmatpush1.bf16.msra.mxu0 0
      %2438 = vmatprep.subr.bf16.mxu0 0
      %2439 = vmatpush1.bf16.msra.mxu0 0
      %2440 = vmatprep.subr.bf16.mxu0 0
      %2441 = vmatpush1.bf16.msra.mxu0 0
      %2442 = vmatprep.mubr.bf16.mxu0 0
      %2443 = vmatmul.mubr.bf16.gmra.mrb[0].mxu0 %v2070
      %v2444 = vpop.f32.mrb[0].mxu0
      %v2445 = vadd.f32 0.0, %v2444
      %v2446 = vpop.f32.mrb[0].mxu0
      %v2447 = vpop.f32.mrb[0].mxu0
      %v2448 = vadd.f32 0.0, %v2447
      %v2449 = vpop.f32.mrb[0].mxu0
      %2450 = vmatprep.mubr.bf16.mxu0 0
      %2451 = vmatmul.mubr.bf16.gmra.mrb[0].mxu0 %v2071
      %v2452 = vpop.f32.mrb[0].mxu0
      %v2453 = vadd.f32 0.0, %v2452
      %v2454 = vpop.f32.mrb[0].mxu0
      %v2455 = vpop.f32.mrb[0].mxu0
      %v2456 = vadd.f32 0.0, %v2455
      %v2457 = vpop.f32.mrb[0].mxu0
      %2458 = vmatprep.mubr.bf16.mxu0 0
      %2459 = vmatmul.mubr.bf16.gmra.mrb[0].mxu0 %v2072
      %v2460 = vpop.f32.mrb[0].mxu0
      %v2461 = vadd.f32 0.0, %v2460
      %v2462 = vpop.f32.mrb[0].mxu0
      %v2463 = vpop.f32.mrb[0].mxu0
      %v2464 = vadd.f32 0.0, %v2463
      %v2465 = vpop.f32.mrb[0].mxu0
      %2466 = vmatprep.mubr.bf16.mxu0 0
      %2467 = vmatmul.mubr.bf16.gmra.mrb[0].mxu0 %v2073
      %v2468 = vpop.f32.mrb[0].mxu0
      %v2469 = vadd.f32 0.0, %v2468
      %v2470 = vpop.f32.mrb[0].mxu0
      %v2471 = vpop.f32.mrb[0].mxu0
      %v2472 = vadd.f32 0.0, %v2471
      %v2473 = vpop.f32.mrb[0].mxu0
      %2474 = vmatprep.mubr.bf16.mxu0 0
      %2475 = vmatmul.mubr.bf16.gmra.mrb[0].mxu0 %v2074
      %v2476 = vpop.f32.mrb[0].mxu0
      %v2477 = vadd.f32 0.0, %v2476
      %v2478 = vpop.f32.mrb[0].mxu0
      %v2479 = vpop.f32.mrb[0].mxu0
      %v2480 = vadd.f32 0.0, %v2479
      %v2481 = vpop.f32.mrb[0].mxu0
      %2482 = vmatprep.mubr.bf16.mxu0 0
      %2483 = vmatmul.mubr.bf16.gmra.mrb[0].mxu0 %v2075
      %v2484 = vpop.f32.mrb[0].mxu0
      %v2485 = vadd.f32 0.0, %v2484
      %v2486 = vpop.f32.mrb[0].mxu0
      %v2487 = vpop.f32.mrb[0].mxu0
      %v2488 = vadd.f32 0.0, %v2487
      %v2489 = vpop.f32.mrb[0].mxu0
      %2490 = vmatprep.mubr.bf16.mxu0 0
      %2491 = vmatmul.mubr.bf16.gmra.mrb[0].mxu0 %v2076
      %v2492 = vpop.f32.mrb[0].mxu0
      %v2493 = vadd.f32 0.0, %v2492
      %v2494 = vpop.f32.mrb[0].mxu0
      %v2495 = vpop.f32.mrb[0].mxu0
      %v2496 = vadd.f32 0.0, %v2495
      %v2497 = vpop.f32.mrb[0].mxu0
      %2498 = vmatprep.mubr.bf16.mxu0 0
      %2499 = vmatmul.mubr.bf16.gmra.mrb[0].mxu0 %v2077
      %v2500 = vpop.f32.mrb[0].mxu0
      %v2501 = vadd.f32 0.0, %v2500
      %v2502 = vpop.f32.mrb[0].mxu0
      %v2503 = vpop.f32.mrb[0].mxu0
      %v2504 = vadd.f32 0.0, %v2503
      %v2505 = vpop.f32.mrb[0].mxu0
      %2506 = vmatprep.mubr.bf16.mxu0 0
      %2507 = vmatmul.mubr.bf16.gmra.mrb[0].mxu0 %v2078
      %v2508 = vpop.f32.mrb[0].mxu0
      %v2509 = vadd.f32 0.0, %v2508
      %v2510 = vpop.f32.mrb[0].mxu0
      %v2511 = vpop.f32.mrb[0].mxu0
      %v2512 = vadd.f32 0.0, %v2511
      %v2513 = vpop.f32.mrb[0].mxu0
      %2514 = vmatprep.mubr.bf16.mxu0 0
      %2515 = vmatmul.mubr.bf16.gmra.mrb[0].mxu0 %v2079
      %v2516 = vpop.f32.mrb[0].mxu0
      %v2517 = vadd.f32 0.0, %v2516
      %v2518 = vpop.f32.mrb[0].mxu0
      %v2519 = vpop.f32.mrb[0].mxu0
      %v2520 = vadd.f32 0.0, %v2519
      %v2521 = vpop.f32.mrb[0].mxu0
      %2522 = vmatprep.mubr.bf16.mxu0 0
      %2523 = vmatmul.mubr.bf16.gmra.mrb[0].mxu0 %v2080
      %v2524 = vpop.f32.mrb[0].mxu0
      %v2525 = vadd.f32 0.0, %v2524
      %v2526 = vpop.f32.mrb[0].mxu0
      %v2527 = vpop.f32.mrb[0].mxu0
      %v2528 = vadd.f32 0.0, %v2527
      %v2529 = vpop.f32.mrb[0].mxu0
      %2530 = vmatprep.mubr.bf16.mxu0 0
      %2531 = vmatmul.mubr.bf16.gmra.mrb[0].mxu0 %v2081
      %v2532 = vpop.f32.mrb[0].mxu0
      %v2533 = vadd.f32 0.0, %v2532
      %v2534 = vpop.f32.mrb[0].mxu0
      %v2535 = vpop.f32.mrb[0].mxu0
      %v2536 = vadd.f32 0.0, %v2535
      %v2537 = vpop.f32.mrb[0].mxu0
      %2538 = vmatprep.mubr.bf16.mxu0 0
      %2539 = vmatmul.mubr.bf16.gmra.mrb[0].mxu0 %v2082
      %v2540 = vpop.f32.mrb[0].mxu0
      %v2541 = vadd.f32 0.0, %v2540
      %v2542 = vpop.f32.mrb[0].mxu0
      %v2543 = vpop.f32.mrb[0].mxu0
      %v2544 = vadd.f32 0.0, %v2543
      %v2545 = vpop.f32.mrb[0].mxu0
      %2546 = vmatprep.mubr.bf16.mxu0 0
      %2547 = vmatmul.mubr.bf16.gmra.mrb[0].mxu0 %v2083
      %v2548 = vpop.f32.mrb[0].mxu0
      %v2549 = vadd.f32 0.0, %v2548
      %v2550 = vpop.f32.mrb[0].mxu0
      %v2551 = vpop.f32.mrb[0].mxu0
      %v2552 = vadd.f32 0.0, %v2551
      %v2553 = vpop.f32.mrb[0].mxu0
      %2554 = vmatprep.mubr.bf16.mxu0 0
      %2555 = vmatmul.mubr.bf16.gmra.mrb[0].mxu0 %v2084
      %v2556 = vpop.f32.mrb[0].mxu0
      %v2557 = vadd.f32 0.0, %v2556
      %v2558 = vpop.f32.mrb[0].mxu0
      %v2559 = vpop.f32.mrb[0].mxu0
      %v2560 = vadd.f32 0.0, %v2559
      %v2561 = vpop.f32.mrb[0].mxu0
      %2562 = vmatprep.mubr.bf16.mxu0 0
      %2563 = vmatmul.mubr.bf16.gmra.mrb[0].mxu0 %v2085
      %v2564 = vpop.f32.mrb[0].mxu0
      %v2565 = vadd.f32 0.0, %v2564
      %v2566 = vpop.f32.mrb[0].mxu0
      %v2567 = vpop.f32.mrb[0].mxu0
      %v2568 = vadd.f32 0.0, %v2567
      %v2569 = vpop.f32.mrb[0].mxu0
      %2570 = vdwg.mxu0
      %v2571 = vadd.f32 %v2313, %v2445
      %v2572 = vadd.f32 %v2314, %v2448
      %v2573 = vadd.f32 %v2315, %v2453
      %v2574 = vadd.f32 %v2316, %v2456
      %v2575 = vadd.f32 %v2317, %v2461
      %v2576 = vadd.f32 %v2318, %v2464
      %v2577 = vadd.f32 %v2319, %v2469
      %v2578 = vadd.f32 %v2320, %v2472
      %v2579 = vadd.f32 %v2321, %v2477
      %v2580 = vadd.f32 %v2322, %v2480
      %v2581 = vadd.f32 %v2323, %v2485
      %v2582 = vadd.f32 %v2324, %v2488
      %v2583 = vadd.f32 %v2325, %v2493
      %v2584 = vadd.f32 %v2326, %v2496
      %v2585 = vadd.f32 %v2327, %v2501
      %v2586 = vadd.f32 %v2328, %v2504
      %v2587 = vadd.f32 %v2329, %v2509
      %v2588 = vadd.f32 %v2330, %v2512
      %v2589 = vadd.f32 %v2331, %v2517
      %v2590 = vadd.f32 %v2332, %v2520
      %v2591 = vadd.f32 %v2333, %v2525
      %v2592 = vadd.f32 %v2334, %v2528
      %v2593 = vadd.f32 %v2335, %v2533
      %v2594 = vadd.f32 %v2336, %v2536
      %v2595 = vadd.f32 %v2337, %v2541
      %v2596 = vadd.f32 %v2338, %v2544
      %v2597 = vadd.f32 %v2339, %v2549
      %v2598 = vadd.f32 %v2340, %v2552
      %v2599 = vadd.f32 %v2341, %v2557
      %v2600 = vadd.f32 %v2342, %v2560
      %v2601 = vadd.f32 %v2343, %v2565
      %v2602 = vadd.f32 %v2344, %v2568
      %s2603 = scalar_lea.vmem %s1, 512
      %v2604 = vld [vmem:[%s2603] sm:$0xf]
      %v2605 = vld [vmem:[%s2603 + $0x4] sm:$0xf]
      %v2606 = vld [vmem:[%s2603 + $0x8] sm:$0xf]
      %v2607 = vld [vmem:[%s2603 + $0xc] sm:$0xf]
      %v2608 = vld [vmem:[%s2603 + $0x10] sm:$0xf]
      %v2609 = vld [vmem:[%s2603 + $0x14] sm:$0xf]
      %v2610 = vld [vmem:[%s2603 + $0x18] sm:$0xf]
      %v2611 = vld [vmem:[%s2603 + $0x1c] sm:$0xf]
      %v2612 = vld [vmem:[%s2603 + $0x20] sm:$0xf]
      %v2613 = vld [vmem:[%s2603 + $0x24] sm:$0xf]
      %v2614 = vld [vmem:[%s2603 + $0x28] sm:$0xf]
      %v2615 = vld [vmem:[%s2603 + $0x2c] sm:$0xf]
      %v2616 = vld [vmem:[%s2603 + $0x30] sm:$0xf]
      %v2617 = vld [vmem:[%s2603 + $0x34] sm:$0xf]
      %v2618 = vld [vmem:[%s2603 + $0x38] sm:$0xf]
      %v2619 = vld [vmem:[%s2603 + $0x3c] sm:$0xf]
      %v2636 = vunpack.c.l.b16 %v2604
      %v2637 = vunpack.c.l.b16 %v2605
      %v2638 = vunpack.c.l.b16 %v2606
      %v2639 = vunpack.c.l.b16 %v2607
      %v2640 = vunpack.c.l.b16 %v2608
      %v2641 = vunpack.c.l.b16 %v2609
      %v2642 = vunpack.c.l.b16 %v2610
      %v2643 = vunpack.c.l.b16 %v2611
      %v2644 = vunpack.c.l.b16 %v2612
      %v2645 = vunpack.c.l.b16 %v2613
      %v2646 = vunpack.c.l.b16 %v2614
      %v2647 = vunpack.c.l.b16 %v2615
      %v2648 = vunpack.c.l.b16 %v2616
      %v2649 = vunpack.c.l.b16 %v2617
      %v2650 = vunpack.c.l.b16 %v2618
      %v2651 = vunpack.c.l.b16 %v2619
      %v2652 = vpack.c.b16 %v2637, %v2636
      %v2653 = vpack.c.b16 %v2639, %v2638
      %v2654 = vpack.c.b16 %v2641, %v2640
      %v2655 = vpack.c.b16 %v2643, %v2642
      %v2656 = vpack.c.b16 %v2645, %v2644
      %v2657 = vpack.c.b16 %v2647, %v2646
      %v2658 = vpack.c.b16 %v2649, %v2648
      %v2659 = vpack.c.b16 %v2651, %v2650
      %2668 = vmatprep.subr.bf16.mxu0 0
      %2669 = vmatpush1.bf16.msra.mxu0 %v2652
      %2670 = vmatprep.subr.bf16.mxu0 0
      %2671 = vmatpush1.bf16.msra.mxu0 %v2653
      %2672 = vmatprep.subr.bf16.mxu0 0
      %2673 = vmatpush1.bf16.msra.mxu0 %v2654
      %2674 = vmatprep.subr.bf16.mxu0 0
      %2675 = vmatpush1.bf16.msra.mxu0 %v2655
      %2676 = vmatprep.subr.bf16.mxu0 0
      %2677 = vmatpush1.bf16.msra.mxu0 %v2656
      %2678 = vmatprep.subr.bf16.mxu0 0
      %2679 = vmatpush1.bf16.msra.mxu0 %v2657
      %2680 = vmatprep.subr.bf16.mxu0 0
      %2681 = vmatpush1.bf16.msra.mxu0 %v2658
      %2682 = vmatprep.subr.bf16.mxu0 0
      %2683 = vmatpush1.bf16.msra.mxu0 %v2659
      %2684 = vmatprep.subr.bf16.mxu0 0
      %2685 = vmatpush1.bf16.msra.mxu0 0
      %2686 = vmatprep.subr.bf16.mxu0 0
      %2687 = vmatpush1.bf16.msra.mxu0 0
      %2688 = vmatprep.subr.bf16.mxu0 0
      %2689 = vmatpush1.bf16.msra.mxu0 0
      %2690 = vmatprep.subr.bf16.mxu0 0
      %2691 = vmatpush1.bf16.msra.mxu0 0
      %2692 = vmatprep.subr.bf16.mxu0 0
      %2693 = vmatpush1.bf16.msra.mxu0 0
      %2694 = vmatprep.subr.bf16.mxu0 0
      %2695 = vmatpush1.bf16.msra.mxu0 0
      %2696 = vmatprep.subr.bf16.mxu0 0
      %2697 = vmatpush1.bf16.msra.mxu0 0
      %2698 = vmatprep.subr.bf16.mxu0 0
      %2699 = vmatpush1.bf16.msra.mxu0 0
      %2700 = vmatprep.mubr.bf16.mxu0 0
      %2701 = vmatmul.mubr.bf16.gmra.mrb[0].mxu0 %v2071
      %v2702 = vpop.f32.mrb[0].mxu0
      %v2703 = vadd.f32 0.0, %v2702
      %v2704 = vpop.f32.mrb[0].mxu0
      %v2705 = vpop.f32.mrb[0].mxu0
      %v2706 = vadd.f32 0.0, %v2705
      %v2707 = vpop.f32.mrb[0].mxu0
      %2708 = vmatprep.mubr.bf16.mxu0 0
      %2709 = vmatmul.mubr.bf16.gmra.mrb[0].mxu0 %v2072
      %v2710 = vpop.f32.mrb[0].mxu0
      %v2711 = vadd.f32 0.0, %v2710
      %v2712 = vpop.f32.mrb[0].mxu0
      %v2713 = vpop.f32.mrb[0].mxu0
      %v2714 = vadd.f32 0.0, %v2713
      %v2715 = vpop.f32.mrb[0].mxu0
      %2716 = vmatprep.mubr.bf16.mxu0 0
      %2717 = vmatmul.mubr.bf16.gmra.mrb[0].mxu0 %v2073
      %v2718 = vpop.f32.mrb[0].mxu0
      %v2719 = vadd.f32 0.0, %v2718
      %v2720 = vpop.f32.mrb[0].mxu0
      %v2721 = vpop.f32.mrb[0].mxu0
      %v2722 = vadd.f32 0.0, %v2721
      %v2723 = vpop.f32.mrb[0].mxu0
      %2724 = vmatprep.mubr.bf16.mxu0 0
      %2725 = vmatmul.mubr.bf16.gmra.mrb[0].mxu0 %v2074
      %v2726 = vpop.f32.mrb[0].mxu0
      %v2727 = vadd.f32 0.0, %v2726
      %v2728 = vpop.f32.mrb[0].mxu0
      %v2729 = vpop.f32.mrb[0].mxu0
      %v2730 = vadd.f32 0.0, %v2729
      %v2731 = vpop.f32.mrb[0].mxu0
      %2732 = vmatprep.mubr.bf16.mxu0 0
      %2733 = vmatmul.mubr.bf16.gmra.mrb[0].mxu0 %v2075
      %v2734 = vpop.f32.mrb[0].mxu0
      %v2735 = vadd.f32 0.0, %v2734
      %v2736 = vpop.f32.mrb[0].mxu0
      %v2737 = vpop.f32.mrb[0].mxu0
      %v2738 = vadd.f32 0.0, %v2737
      %v2739 = vpop.f32.mrb[0].mxu0
      %2740 = vmatprep.mubr.bf16.mxu0 0
      %2741 = vmatmul.mubr.bf16.gmra.mrb[0].mxu0 %v2076
      %v2742 = vpop.f32.mrb[0].mxu0
      %v2743 = vadd.f32 0.0, %v2742
      %v2744 = vpop.f32.mrb[0].mxu0
      %v2745 = vpop.f32.mrb[0].mxu0
      %v2746 = vadd.f32 0.0, %v2745
      %v2747 = vpop.f32.mrb[0].mxu0
      %2748 = vmatprep.mubr.bf16.mxu0 0
      %2749 = vmatmul.mubr.bf16.gmra.mrb[0].mxu0 %v2077
      %v2750 = vpop.f32.mrb[0].mxu0
      %v2751 = vadd.f32 0.0, %v2750
      %v2752 = vpop.f32.mrb[0].mxu0
      %v2753 = vpop.f32.mrb[0].mxu0
      %v2754 = vadd.f32 0.0, %v2753
      %v2755 = vpop.f32.mrb[0].mxu0
      %2756 = vmatprep.mubr.bf16.mxu0 0
      %2757 = vmatmul.mubr.bf16.gmra.mrb[0].mxu0 %v2078
      %v2758 = vpop.f32.mrb[0].mxu0
      %v2759 = vadd.f32 0.0, %v2758
      %v2760 = vpop.f32.mrb[0].mxu0
      %v2761 = vpop.f32.mrb[0].mxu0
      %v2762 = vadd.f32 0.0, %v2761
      %v2763 = vpop.f32.mrb[0].mxu0
      %2764 = vmatprep.mubr.bf16.mxu0 0
      %2765 = vmatmul.mubr.bf16.gmra.mrb[0].mxu0 %v2079
      %v2766 = vpop.f32.mrb[0].mxu0
      %v2767 = vadd.f32 0.0, %v2766
      %v2768 = vpop.f32.mrb[0].mxu0
      %v2769 = vpop.f32.mrb[0].mxu0
      %v2770 = vadd.f32 0.0, %v2769
      %v2771 = vpop.f32.mrb[0].mxu0
      %2772 = vmatprep.mubr.bf16.mxu0 0
      %2773 = vmatmul.mubr.bf16.gmra.mrb[0].mxu0 %v2080
      %v2774 = vpop.f32.mrb[0].mxu0
      %v2775 = vadd.f32 0.0, %v2774
      %v2776 = vpop.f32.mrb[0].mxu0
      %v2777 = vpop.f32.mrb[0].mxu0
      %v2778 = vadd.f32 0.0, %v2777
      %v2779 = vpop.f32.mrb[0].mxu0
      %2780 = vmatprep.mubr.bf16.mxu0 0
      %2781 = vmatmul.mubr.bf16.gmra.mrb[0].mxu0 %v2081
      %v2782 = vpop.f32.mrb[0].mxu0
      %v2783 = vadd.f32 0.0, %v2782
      %v2784 = vpop.f32.mrb[0].mxu0
      %v2785 = vpop.f32.mrb[0].mxu0
      %v2786 = vadd.f32 0.0, %v2785
      %v2787 = vpop.f32.mrb[0].mxu0
      %2788 = vmatprep.mubr.bf16.mxu0 0
      %2789 = vmatmul.mubr.bf16.gmra.mrb[0].mxu0 %v2082
      %v2790 = vpop.f32.mrb[0].mxu0
      %v2791 = vadd.f32 0.0, %v2790
      %v2792 = vpop.f32.mrb[0].mxu0
      %v2793 = vpop.f32.mrb[0].mxu0
      %v2794 = vadd.f32 0.0, %v2793
      %v2795 = vpop.f32.mrb[0].mxu0
      %2796 = vmatprep.mubr.bf16.mxu0 0
      %2797 = vmatmul.mubr.bf16.gmra.mrb[0].mxu0 %v2083
      %v2798 = vpop.f32.mrb[0].mxu0
      %v2799 = vadd.f32 0.0, %v2798
      %v2800 = vpop.f32.mrb[0].mxu0
      %v2801 = vpop.f32.mrb[0].mxu0
      %v2802 = vadd.f32 0.0, %v2801
      %v2803 = vpop.f32.mrb[0].mxu0
      %2804 = vmatprep.mubr.bf16.mxu0 0
      %2805 = vmatmul.mubr.bf16.gmra.mrb[0].mxu0 %v2084
      %v2806 = vpop.f32.mrb[0].mxu0
      %v2807 = vadd.f32 0.0, %v2806
      %v2808 = vpop.f32.mrb[0].mxu0
      %v2809 = vpop.f32.mrb[0].mxu0
      %v2810 = vadd.f32 0.0, %v2809
      %v2811 = vpop.f32.mrb[0].mxu0
      %2812 = vmatprep.mubr.bf16.mxu0 0
      %2813 = vmatmul.mubr.bf16.gmra.mrb[0].mxu0 %v2085
      %v2814 = vpop.f32.mrb[0].mxu0
      %v2815 = vadd.f32 0.0, %v2814
      %v2816 = vpop.f32.mrb[0].mxu0
      %v2817 = vpop.f32.mrb[0].mxu0
      %v2818 = vadd.f32 0.0, %v2817
      %v2819 = vpop.f32.mrb[0].mxu0
      %2820 = vmatprep.mubr.bf16.mxu0 0
      %2821 = vmatmul.mubr.bf16.gmra.mrb[0].mxu0 %v2086
      %v2822 = vpop.f32.mrb[0].mxu0
      %v2823 = vadd.f32 0.0, %v2822
      %v2824 = vpop.f32.mrb[0].mxu0
      %v2825 = vpop.f32.mrb[0].mxu0
      %v2826 = vadd.f32 0.0, %v2825
      %v2827 = vpop.f32.mrb[0].mxu0
      %2828 = vdwg.mxu0
      %v2829 = vadd.f32 %v2571, %v2703
      %v2830 = vadd.f32 %v2572, %v2706
      %v2831 = vadd.f32 %v2573, %v2711
      %v2832 = vadd.f32 %v2574, %v2714
      %v2833 = vadd.f32 %v2575, %v2719
      %v2834 = vadd.f32 %v2576, %v2722
      %v2835 = vadd.f32 %v2577, %v2727
      %v2836 = vadd.f32 %v2578, %v2730
      %v2837 = vadd.f32 %v2579, %v2735
      %v2838 = vadd.f32 %v2580, %v2738
      %v2839 = vadd.f32 %v2581, %v2743
      %v2840 = vadd.f32 %v2582, %v2746
      %v2841 = vadd.f32 %v2583, %v2751
      %v2842 = vadd.f32 %v2584, %v2754
      %v2843 = vadd.f32 %v2585, %v2759
      %v2844 = vadd.f32 %v2586, %v2762
      %v2845 = vadd.f32 %v2587, %v2767
      %v2846 = vadd.f32 %v2588, %v2770
      %v2847 = vadd.f32 %v2589, %v2775
      %v2848 = vadd.f32 %v2590, %v2778
      %v2849 = vadd.f32 %v2591, %v2783
      %v2850 = vadd.f32 %v2592, %v2786
      %v2851 = vadd.f32 %v2593, %v2791
      %v2852 = vadd.f32 %v2594, %v2794
      %v2853 = vadd.f32 %v2595, %v2799
      %v2854 = vadd.f32 %v2596, %v2802
      %v2855 = vadd.f32 %v2597, %v2807
      %v2856 = vadd.f32 %v2598, %v2810
      %v2857 = vadd.f32 %v2599, %v2815
      %v2858 = vadd.f32 %v2600, %v2818
      %v2859 = vadd.f32 %v2601, %v2823
      %v2860 = vadd.f32 %v2602, %v2826
      %v2861 = vld [vmem:[%s2] sm:$0x1]
      %v2863 = vlaneseq
      %v2864 = vshrl.u32 %v2863, 7
      %v2865 = vsub.s32 0, %v2864
      %v2866 = vrot.slane %v2861, %v2865
      %v2868 = vadd.f32 %v2829, %v2866
      %v2869 = vadd.f32 %v2830, %v2866
      %v2870 = vadd.f32 %v2831, %v2866
      %v2871 = vadd.f32 %v2832, %v2866
      %v2872 = vadd.f32 %v2833, %v2866
      %v2873 = vadd.f32 %v2834, %v2866
      %v2874 = vadd.f32 %v2835, %v2866
      %v2875 = vadd.f32 %v2836, %v2866
      %v2876 = vadd.f32 %v2837, %v2866
      %v2877 = vadd.f32 %v2838, %v2866
      %v2878 = vadd.f32 %v2839, %v2866
      %v2879 = vadd.f32 %v2840, %v2866
      %v2880 = vadd.f32 %v2841, %v2866
      %v2881 = vadd.f32 %v2842, %v2866
      %v2882 = vadd.f32 %v2843, %v2866
      %v2883 = vadd.f32 %v2844, %v2866
      %v2884 = vadd.f32 %v2845, %v2866
      %v2885 = vadd.f32 %v2846, %v2866
      %v2886 = vadd.f32 %v2847, %v2866
      %v2887 = vadd.f32 %v2848, %v2866
      %v2888 = vadd.f32 %v2849, %v2866
      %v2889 = vadd.f32 %v2850, %v2866
      %v2890 = vadd.f32 %v2851, %v2866
      %v2891 = vadd.f32 %v2852, %v2866
      %v2892 = vadd.f32 %v2853, %v2866
      %v2893 = vadd.f32 %v2854, %v2866
      %v2894 = vadd.f32 %v2855, %v2866
      %v2895 = vadd.f32 %v2856, %v2866
      %v2896 = vadd.f32 %v2857, %v2866
      %v2897 = vadd.f32 %v2858, %v2866
      %v2898 = vadd.f32 %v2859, %v2866
      %v2899 = vadd.f32 %v2860, %v2866
      %v2900 = vmax.f32 %v2868, 0.0
      %v2901 = vmax.f32 %v2869, 0.0
      %v2902 = vmax.f32 %v2870, 0.0
      %v2903 = vmax.f32 %v2871, 0.0
      %v2904 = vmax.f32 %v2872, 0.0
      %v2905 = vmax.f32 %v2873, 0.0
      %v2906 = vmax.f32 %v2874, 0.0
      %v2907 = vmax.f32 %v2875, 0.0
      %v2908 = vmax.f32 %v2876, 0.0
      %v2909 = vmax.f32 %v2877, 0.0
      %v2910 = vmax.f32 %v2878, 0.0
      %v2911 = vmax.f32 %v2879, 0.0
      %v2912 = vmax.f32 %v2880, 0.0
      %v2913 = vmax.f32 %v2881, 0.0
      %v2914 = vmax.f32 %v2882, 0.0
      %v2915 = vmax.f32 %v2883, 0.0
      %v2916 = vmax.f32 %v2884, 0.0
      %v2917 = vmax.f32 %v2885, 0.0
      %v2918 = vmax.f32 %v2886, 0.0
      %v2919 = vmax.f32 %v2887, 0.0
      %v2920 = vmax.f32 %v2888, 0.0
      %v2921 = vmax.f32 %v2889, 0.0
      %v2922 = vmax.f32 %v2890, 0.0
      %v2923 = vmax.f32 %v2891, 0.0
      %v2924 = vmax.f32 %v2892, 0.0
      %v2925 = vmax.f32 %v2893, 0.0
      %v2926 = vmax.f32 %v2894, 0.0
      %v2927 = vmax.f32 %v2895, 0.0
      %v2928 = vmax.f32 %v2896, 0.0
      %v2929 = vmax.f32 %v2897, 0.0
      %v2930 = vmax.f32 %v2898, 0.0
      %v2931 = vmax.f32 %v2899, 0.0
      %2932 = vst [vmem:[#allocation3] sm:$0xff] 0.0
      %2933 = vst [vmem:[#allocation3 + $0x8] sm:$0xff] 0.0
      %2934 = vst [vmem:[#allocation3 + $0x10] sm:$0x3] 0.0
      %s2935 = scalar_lea.vmem [#allocation3], 408
      %2936 = vst [vmem:[%s2935] sm:$0xff] 0.0
      %2937 = vst [vmem:[%s2935 + $0x8] sm:$0xff] 0.0
      %2938 = vst [vmem:[%s2935 + $0x10] sm:$0x3] 0.0
      %2939 = vst [vmem:[#allocation3] sm:$0x1] 0.0
      %2940 = vst [vmem:[#allocation3 + $0x18] sm:$0x1] 0.0
      %2941 = vst [vmem:[#allocation3 + $0x30] sm:$0x1] 0.0
      %2942 = vst [vmem:[#allocation3 + $0x48] sm:$0x1] 0.0
      %2943 = vst [vmem:[#allocation3 + $0x60] sm:$0x1] 0.0
      %2944 = vst [vmem:[#allocation3 + $0x78] sm:$0x1] 0.0
      %2945 = vst [vmem:[#allocation3 + $0x90] sm:$0x1] 0.0
      %2946 = vst [vmem:[#allocation3 + $0xa8] sm:$0x1] 0.0
      %2947 = vst [vmem:[#allocation3 + $0xc0] sm:$0x1] 0.0
      %2948 = vst [vmem:[#allocation3 + $0xd8] sm:$0x1] 0.0
      %2949 = vst [vmem:[#allocation3 + $0xf0] sm:$0x1] 0.0
      %2950 = vst [vmem:[#allocation3 + $0x108] sm:$0x1] 0.0
      %2951 = vst [vmem:[#allocation3 + $0x120] sm:$0x1] 0.0
      %2952 = vst [vmem:[#allocation3 + $0x138] sm:$0x1] 0.0
      %2953 = vst [vmem:[#allocation3 + $0x150] sm:$0x1] 0.0
      %2954 = vst [vmem:[#allocation3 + $0x168] sm:$0x1] 0.0
      %2955 = vst [vmem:[#allocation3 + $0x180] sm:$0x1] 0.0
      %2956 = vst [vmem:[#allocation3 + $0x198] sm:$0x1] 0.0
      %2957 = vst [vmem:[#allocation3 + $0x11] sm:$0x1] 0.0
      %2958 = vst [vmem:[#allocation3 + $0x29] sm:$0x1] 0.0
      %2959 = vst [vmem:[#allocation3 + $0x41] sm:$0x1] 0.0
      %2960 = vst [vmem:[#allocation3 + $0x59] sm:$0x1] 0.0
      %2961 = vst [vmem:[#allocation3 + $0x71] sm:$0x1] 0.0
      %2962 = vst [vmem:[#allocation3 + $0x89] sm:$0x1] 0.0
      %2963 = vst [vmem:[#allocation3 + $0xa1] sm:$0x1] 0.0
      %2964 = vst [vmem:[#allocation3 + $0xb9] sm:$0x1] 0.0
      %2965 = vst [vmem:[#allocation3 + $0xd1] sm:$0x1] 0.0
      %2966 = vst [vmem:[#allocation3 + $0xe9] sm:$0x1] 0.0
      %2967 = vst [vmem:[#allocation3 + $0x101] sm:$0x1] 0.0
      %2968 = vst [vmem:[#allocation3 + $0x119] sm:$0x1] 0.0
      %2969 = vst [vmem:[#allocation3 + $0x131] sm:$0x1] 0.0
      %2970 = vst [vmem:[#allocation3 + $0x149] sm:$0x1] 0.0
      %2971 = vst [vmem:[#allocation3 + $0x161] sm:$0x1] 0.0
      %2972 = vst [vmem:[#allocation3 + $0x179] sm:$0x1] 0.0
      %2973 = vst [vmem:[#allocation3 + $0x191] sm:$0x1] 0.0
      %2974 = vst [vmem:[#allocation3 + $0x1a9] sm:$0x1] 0.0
      %s2975 = scalar_lea.vmem [#allocation3], 24
      %2976 = vst [vmem:[%s2975 + $0x1] sm:$0xff] %v2900
      %2977 = vst [vmem:[%s2975 + $0x9] sm:$0xff] %v2901
      %2978 = vst [vmem:[%s2975 + $0x19] sm:$0xff] %v2902
      %2979 = vst [vmem:[%s2975 + $0x21] sm:$0xff] %v2903
      %2980 = vst [vmem:[%s2975 + $0x31] sm:$0xff] %v2904
      %2981 = vst [vmem:[%s2975 + $0x39] sm:$0xff] %v2905
      %2982 = vst [vmem:[%s2975 + $0x49] sm:$0xff] %v2906
      %2983 = vst [vmem:[%s2975 + $0x51] sm:$0xff] %v2907
      %2984 = vst [vmem:[%s2975 + $0x61] sm:$0xff] %v2908
      %2985 = vst [vmem:[%s2975 + $0x69] sm:$0xff] %v2909
      %2986 = vst [vmem:[%s2975 + $0x79] sm:$0xff] %v2910
      %2987 = vst [vmem:[%s2975 + $0x81] sm:$0xff] %v2911
      %2988 = vst [vmem:[%s2975 + $0x91] sm:$0xff] %v2912
      %2989 = vst [vmem:[%s2975 + $0x99] sm:$0xff] %v2913
      %2990 = vst [vmem:[%s2975 + $0xa9] sm:$0xff] %v2914
      %2991 = vst [vmem:[%s2975 + $0xb1] sm:$0xff] %v2915
      %2992 = vst [vmem:[%s2975 + $0xc1] sm:$0xff] %v2916
      %2993 = vst [vmem:[%s2975 + $0xc9] sm:$0xff] %v2917
      %2994 = vst [vmem:[%s2975 + $0xd9] sm:$0xff] %v2918
      %2995 = vst [vmem:[%s2975 + $0xe1] sm:$0xff] %v2919
      %2996 = vst [vmem:[%s2975 + $0xf1] sm:$0xff] %v2920
      %2997 = vst [vmem:[%s2975 + $0xf9] sm:$0xff] %v2921
      %2998 = vst [vmem:[%s2975 + $0x109] sm:$0xff] %v2922
      %2999 = vst [vmem:[%s2975 + $0x111] sm:$0xff] %v2923
      %3000 = vst [vmem:[%s2975 + $0x121] sm:$0xff] %v2924
      %3001 = vst [vmem:[%s2975 + $0x129] sm:$0xff] %v2925
      %3002 = vst [vmem:[%s2975 + $0x139] sm:$0xff] %v2926
      %3003 = vst [vmem:[%s2975 + $0x141] sm:$0xff] %v2927
      %3004 = vst [vmem:[%s2975 + $0x151] sm:$0xff] %v2928
      %3005 = vst [vmem:[%s2975 + $0x159] sm:$0xff] %v2929
      %3006 = vst [vmem:[%s2975 + $0x169] sm:$0xff] %v2930
      %3007 = vst [vmem:[%s2975 + $0x171] sm:$0xff] %v2931
      %v3008 = vld [vmem:[#allocation3] sm:$0xff]
      %v3009 = vld [vmem:[#allocation3 + $0x8] sm:$0xff]
      %v3010 = vld [vmem:[#allocation3 + $0x18] sm:$0xff]
      %v3011 = vld [vmem:[#allocation3 + $0x20] sm:$0xff]
      %v3012 = vld [vmem:[#allocation3 + $0x30] sm:$0xff]
      %v3013 = vld [vmem:[#allocation3 + $0x38] sm:$0xff]
      %v3014 = vld [vmem:[#allocation3 + $0x48] sm:$0xff]
      %v3015 = vld [vmem:[#allocation3 + $0x50] sm:$0xff]
      %v3016 = vld [vmem:[#allocation3 + $0x60] sm:$0xff]
      %v3017 = vld [vmem:[#allocation3 + $0x68] sm:$0xff]
      %v3018 = vld [vmem:[#allocation3 + $0x78] sm:$0xff]
      %v3019 = vld [vmem:[#allocation3 + $0x80] sm:$0xff]
      %v3020 = vld [vmem:[#allocation3 + $0x90] sm:$0xff]
      %v3021 = vld [vmem:[#allocation3 + $0x98] sm:$0xff]
      %v3022 = vld [vmem:[#allocation3 + $0xa8] sm:$0xff]
      %v3023 = vld [vmem:[#allocation3 + $0xb0] sm:$0xff]
      %v3024 = vld [vmem:[#allocation3 + $0xc0] sm:$0xff]
      %v3025 = vld [vmem:[#allocation3 + $0xc8] sm:$0xff]
      %v3026 = vld [vmem:[#allocation3 + $0xd8] sm:$0xff]
      %v3027 = vld [vmem:[#allocation3 + $0xe0] sm:$0xff]
      %v3028 = vld [vmem:[#allocation3 + $0xf0] sm:$0xff]
      %v3029 = vld [vmem:[#allocation3 + $0xf8] sm:$0xff]
      %v3030 = vld [vmem:[#allocation3 + $0x108] sm:$0xff]
      %v3031 = vld [vmem:[#allocation3 + $0x110] sm:$0xff]
      %v3032 = vld [vmem:[#allocation3 + $0x120] sm:$0xff]
      %v3033 = vld [vmem:[#allocation3 + $0x128] sm:$0xff]
      %v3034 = vld [vmem:[#allocation3 + $0x138] sm:$0xff]
      %v3035 = vld [vmem:[#allocation3 + $0x140] sm:$0xff]
      %v3036 = vld [vmem:[#allocation3 + $0x150] sm:$0xff]
      %v3037 = vld [vmem:[#allocation3 + $0x158] sm:$0xff]
      %v3038 = vld [vmem:[#allocation3 + $0x168] sm:$0xff]
      %v3039 = vld [vmem:[#allocation3 + $0x170] sm:$0xff]
      %v3040 = vld [vmem:[#allocation3 + $0x180] sm:$0xff]
      %v3041 = vld [vmem:[#allocation3 + $0x188] sm:$0xff]
      %v3042 = vld [vmem:[#allocation3 + $0x198] sm:$0xff]
      %v3043 = vld [vmem:[#allocation3 + $0x1a0] sm:$0xff]
      %v3044 = vpack.c.bf16 %v3009, %v3008
      %v3045 = vpack.c.bf16 %v3011, %v3010
      %v3046 = vpack.c.bf16 %v3013, %v3012
      %v3047 = vpack.c.bf16 %v3015, %v3014
      %v3048 = vpack.c.bf16 %v3017, %v3016
      %v3049 = vpack.c.bf16 %v3019, %v3018
      %v3050 = vpack.c.bf16 %v3021, %v3020
      %v3051 = vpack.c.bf16 %v3023, %v3022
      %v3052 = vpack.c.bf16 %v3025, %v3024
      %v3053 = vpack.c.bf16 %v3027, %v3026
      %v3054 = vpack.c.bf16 %v3029, %v3028
      %v3055 = vpack.c.bf16 %v3031, %v3030
      %v3056 = vpack.c.bf16 %v3033, %v3032
      %v3057 = vpack.c.bf16 %v3035, %v3034
      %v3058 = vpack.c.bf16 %v3037, %v3036
      %v3059 = vpack.c.bf16 %v3039, %v3038
      %v3060 = vpack.c.bf16 %v3041, %v3040
      %v3061 = vpack.c.bf16 %v3043, %v3042
      %v3062 = vld [vmem:[%s3] sm:$0xf]
      %v3063 = vld [vmem:[%s3 + $0x4] sm:$0xf]
      %v3064 = vld [vmem:[%s3 + $0x8] sm:$0xf]
      %v3065 = vld [vmem:[%s3 + $0xc] sm:$0xf]
      %v3066 = vld [vmem:[%s3 + $0x10] sm:$0xf]
      %v3067 = vld [vmem:[%s3 + $0x14] sm:$0xf]
      %v3068 = vld [vmem:[%s3 + $0x18] sm:$0xf]
      %v3069 = vld [vmem:[%s3 + $0x1c] sm:$0xf]
      %v3070 = vld [vmem:[%s3 + $0x20] sm:$0xf]
      %v3071 = vld [vmem:[%s3 + $0x24] sm:$0xf]
      %v3072 = vld [vmem:[%s3 + $0x28] sm:$0xf]
      %v3073 = vld [vmem:[%s3 + $0x2c] sm:$0xf]
      %v3074 = vld [vmem:[%s3 + $0x30] sm:$0xf]
      %v3075 = vld [vmem:[%s3 + $0x34] sm:$0xf]
      %v3076 = vld [vmem:[%s3 + $0x38] sm:$0xf]
      %v3077 = vld [vmem:[%s3 + $0x3c] sm:$0xf]
      %s3078 = scalar_lea.vmem %s3, 192
      %v3079 = vld [vmem:[%s3078] sm:$0xf]
      %v3080 = vld [vmem:[%s3078 + $0x4] sm:$0xf]
      %v3081 = vld [vmem:[%s3078 + $0x8] sm:$0xf]
      %v3082 = vld [vmem:[%s3078 + $0xc] sm:$0xf]
      %v3083 = vld [vmem:[%s3078 + $0x10] sm:$0xf]
      %v3084 = vld [vmem:[%s3078 + $0x14] sm:$0xf]
      %v3085 = vld [vmem:[%s3078 + $0x18] sm:$0xf]
      %v3086 = vld [vmem:[%s3078 + $0x1c] sm:$0xf]
      %v3087 = vld [vmem:[%s3078 + $0x20] sm:$0xf]
      %v3088 = vld [vmem:[%s3078 + $0x24] sm:$0xf]
      %v3089 = vld [vmem:[%s3078 + $0x28] sm:$0xf]
      %v3090 = vld [vmem:[%s3078 + $0x2c] sm:$0xf]
      %v3091 = vld [vmem:[%s3078 + $0x30] sm:$0xf]
      %v3092 = vld [vmem:[%s3078 + $0x34] sm:$0xf]
      %v3093 = vld [vmem:[%s3078 + $0x38] sm:$0xf]
      %v3094 = vld [vmem:[%s3078 + $0x3c] sm:$0xf]
      %v3111 = vunpack.c.l.b16 %v3079
      %v3112 = vunpack.c.l.b16 %v3080
      %v3113 = vunpack.c.l.b16 %v3081
      %v3114 = vunpack.c.l.b16 %v3082
      %v3115 = vunpack.c.l.b16 %v3083
      %v3116 = vunpack.c.l.b16 %v3084
      %v3117 = vunpack.c.l.b16 %v3085
      %v3118 = vunpack.c.l.b16 %v3086
      %v3119 = vunpack.c.l.b16 %v3087
      %v3120 = vunpack.c.l.b16 %v3088
      %v3121 = vunpack.c.l.b16 %v3089
      %v3122 = vunpack.c.l.b16 %v3090
      %v3123 = vunpack.c.l.b16 %v3091
      %v3124 = vunpack.c.l.b16 %v3092
      %v3125 = vunpack.c.l.b16 %v3093
      %v3126 = vunpack.c.l.b16 %v3094
      %v3127 = vpack.c.b16 %v3112, %v3111
      %v3128 = vpack.c.b16 %v3114, %v3113
      %v3129 = vpack.c.b16 %v3116, %v3115
      %v3130 = vpack.c.b16 %v3118, %v3117
      %v3131 = vpack.c.b16 %v3120, %v3119
      %v3132 = vpack.c.b16 %v3122, %v3121
      %v3133 = vpack.c.b16 %v3124, %v3123
      %v3134 = vpack.c.b16 %v3126, %v3125
      %3143 = vmatprep.subr.bf16.mxu0 0
      %3144 = vmatpush1.bf16.msra.mxu0 %v3127
      %3145 = vmatprep.subr.bf16.mxu0 0
      %3146 = vmatpush1.bf16.msra.mxu0 %v3128
      %3147 = vmatprep.subr.bf16.mxu0 0
      %3148 = vmatpush1.bf16.msra.mxu0 %v3129
      %3149 = vmatprep.subr.bf16.mxu0 0
      %3150 = vmatpush1.bf16.msra.mxu0 %v3130
      %3151 = vmatprep.subr.bf16.mxu0 0
      %3152 = vmatpush1.bf16.msra.mxu0 %v3131
      %3153 = vmatprep.subr.bf16.mxu0 0
      %3154 = vmatpush1.bf16.msra.mxu0 %v3132
      %3155 = vmatprep.subr.bf16.mxu0 0
      %3156 = vmatpush1.bf16.msra.mxu0 %v3133
      %3157 = vmatprep.subr.bf16.mxu0 0
      %3158 = vmatpush1.bf16.msra.mxu0 %v3134
      %3159 = vmatprep.subr.bf16.mxu0 0
      %3160 = vmatpush1.bf16.msra.mxu0 0
      %3161 = vmatprep.subr.bf16.mxu0 0
      %3162 = vmatpush1.bf16.msra.mxu0 0
      %3163 = vmatprep.subr.bf16.mxu0 0
      %3164 = vmatpush1.bf16.msra.mxu0 0
      %3165 = vmatprep.subr.bf16.mxu0 0
      %3166 = vmatpush1.bf16.msra.mxu0 0
      %3167 = vmatprep.subr.bf16.mxu0 0
      %3168 = vmatpush1.bf16.msra.mxu0 0
      %3169 = vmatprep.subr.bf16.mxu0 0
      %3170 = vmatpush1.bf16.msra.mxu0 0
      %3171 = vmatprep.subr.bf16.mxu0 0
      %3172 = vmatpush1.bf16.msra.mxu0 0
      %3173 = vmatprep.subr.bf16.mxu0 0
      %3174 = vmatpush1.bf16.msra.mxu0 0
      %3175 = vmatprep.mubr.bf16.mxu0 0
      %3176 = vmatmul.mubr.bf16.gmra.mrb[0].mxu0 %v3045
      %v3177 = vpop.f32.mrb[0].mxu0
      %v3178 = vadd.f32 0.0, %v3177
      %v3179 = vpop.f32.mrb[0].mxu0
      %v3180 = vpop.f32.mrb[0].mxu0
      %v3181 = vadd.f32 0.0, %v3180
      %v3182 = vpop.f32.mrb[0].mxu0
      %3183 = vmatprep.mubr.bf16.mxu0 0
      %3184 = vmatmul.mubr.bf16.gmra.mrb[0].mxu0 %v3046
      %v3185 = vpop.f32.mrb[0].mxu0
      %v3186 = vadd.f32 0.0, %v3185
      %v3187 = vpop.f32.mrb[0].mxu0
      %v3188 = vpop.f32.mrb[0].mxu0
      %v3189 = vadd.f32 0.0, %v3188
      %v3190 = vpop.f32.mrb[0].mxu0
      %3191 = vmatprep.mubr.bf16.mxu0 0
      %3192 = vmatmul.mubr.bf16.gmra.mrb[0].mxu0 %v3047
      %v3193 = vpop.f32.mrb[0].mxu0
      %v3194 = vadd.f32 0.0, %v3193
      %v3195 = vpop.f32.mrb[0].mxu0
      %v3196 = vpop.f32.mrb[0].mxu0
      %v3197 = vadd.f32 0.0, %v3196
      %v3198 = vpop.f32.mrb[0].mxu0
      %3199 = vmatprep.mubr.bf16.mxu0 0
      %3200 = vmatmul.mubr.bf16.gmra.mrb[0].mxu0 %v3048
      %v3201 = vpop.f32.mrb[0].mxu0
      %v3202 = vadd.f32 0.0, %v3201
      %v3203 = vpop.f32.mrb[0].mxu0
      %v3204 = vpop.f32.mrb[0].mxu0
      %v3205 = vadd.f32 0.0, %v3204
      %v3206 = vpop.f32.mrb[0].mxu0
      %3207 = vmatprep.mubr.bf16.mxu0 0
      %3208 = vmatmul.mubr.bf16.gmra.mrb[0].mxu0 %v3049
      %v3209 = vpop.f32.mrb[0].mxu0
      %v3210 = vadd.f32 0.0, %v3209
      %v3211 = vpop.f32.mrb[0].mxu0
      %v3212 = vpop.f32.mrb[0].mxu0
      %v3213 = vadd.f32 0.0, %v3212
      %v3214 = vpop.f32.mrb[0].mxu0
      %3215 = vmatprep.mubr.bf16.mxu0 0
      %3216 = vmatmul.mubr.bf16.gmra.mrb[0].mxu0 %v3050
      %v3217 = vpop.f32.mrb[0].mxu0
      %v3218 = vadd.f32 0.0, %v3217
      %v3219 = vpop.f32.mrb[0].mxu0
      %v3220 = vpop.f32.mrb[0].mxu0
      %v3221 = vadd.f32 0.0, %v3220
      %v3222 = vpop.f32.mrb[0].mxu0
      %3223 = vmatprep.mubr.bf16.mxu0 0
      %3224 = vmatmul.mubr.bf16.gmra.mrb[0].mxu0 %v3051
      %v3225 = vpop.f32.mrb[0].mxu0
      %v3226 = vadd.f32 0.0, %v3225
      %v3227 = vpop.f32.mrb[0].mxu0
      %v3228 = vpop.f32.mrb[0].mxu0
      %v3229 = vadd.f32 0.0, %v3228
      %v3230 = vpop.f32.mrb[0].mxu0
      %3231 = vmatprep.mubr.bf16.mxu0 0
      %3232 = vmatmul.mubr.bf16.gmra.mrb[0].mxu0 %v3052
      %v3233 = vpop.f32.mrb[0].mxu0
      %v3234 = vadd.f32 0.0, %v3233
      %v3235 = vpop.f32.mrb[0].mxu0
      %v3236 = vpop.f32.mrb[0].mxu0
      %v3237 = vadd.f32 0.0, %v3236
      %v3238 = vpop.f32.mrb[0].mxu0
      %3239 = vmatprep.mubr.bf16.mxu0 0
      %3240 = vmatmul.mubr.bf16.gmra.mrb[0].mxu0 %v3053
      %v3241 = vpop.f32.mrb[0].mxu0
      %v3242 = vadd.f32 0.0, %v3241
      %v3243 = vpop.f32.mrb[0].mxu0
      %v3244 = vpop.f32.mrb[0].mxu0
      %v3245 = vadd.f32 0.0, %v3244
      %v3246 = vpop.f32.mrb[0].mxu0
      %3247 = vmatprep.mubr.bf16.mxu0 0
      %3248 = vmatmul.mubr.bf16.gmra.mrb[0].mxu0 %v3054
      %v3249 = vpop.f32.mrb[0].mxu0
      %v3250 = vadd.f32 0.0, %v3249
      %v3251 = vpop.f32.mrb[0].mxu0
      %v3252 = vpop.f32.mrb[0].mxu0
      %v3253 = vadd.f32 0.0, %v3252
      %v3254 = vpop.f32.mrb[0].mxu0
      %3255 = vmatprep.mubr.bf16.mxu0 0
      %3256 = vmatmul.mubr.bf16.gmra.mrb[0].mxu0 %v3055
      %v3257 = vpop.f32.mrb[0].mxu0
      %v3258 = vadd.f32 0.0, %v3257
      %v3259 = vpop.f32.mrb[0].mxu0
      %v3260 = vpop.f32.mrb[0].mxu0
      %v3261 = vadd.f32 0.0, %v3260
      %v3262 = vpop.f32.mrb[0].mxu0
      %3263 = vmatprep.mubr.bf16.mxu0 0
      %3264 = vmatmul.mubr.bf16.gmra.mrb[0].mxu0 %v3056
      %v3265 = vpop.f32.mrb[0].mxu0
      %v3266 = vadd.f32 0.0, %v3265
      %v3267 = vpop.f32.mrb[0].mxu0
      %v3268 = vpop.f32.mrb[0].mxu0
      %v3269 = vadd.f32 0.0, %v3268
      %v3270 = vpop.f32.mrb[0].mxu0
      %3271 = vmatprep.mubr.bf16.mxu0 0
      %3272 = vmatmul.mubr.bf16.gmra.mrb[0].mxu0 %v3057
      %v3273 = vpop.f32.mrb[0].mxu0
      %v3274 = vadd.f32 0.0, %v3273
      %v3275 = vpop.f32.mrb[0].mxu0
      %v3276 = vpop.f32.mrb[0].mxu0
      %v3277 = vadd.f32 0.0, %v3276
      %v3278 = vpop.f32.mrb[0].mxu0
      %3279 = vmatprep.mubr.bf16.mxu0 0
      %3280 = vmatmul.mubr.bf16.gmra.mrb[0].mxu0 %v3058
      %v3281 = vpop.f32.mrb[0].mxu0
      %v3282 = vadd.f32 0.0, %v3281
      %v3283 = vpop.f32.mrb[0].mxu0
      %v3284 = vpop.f32.mrb[0].mxu0
      %v3285 = vadd.f32 0.0, %v3284
      %v3286 = vpop.f32.mrb[0].mxu0
      %3287 = vmatprep.mubr.bf16.mxu0 0
      %3288 = vmatmul.mubr.bf16.gmra.mrb[0].mxu0 %v3059
      %v3289 = vpop.f32.mrb[0].mxu0
      %v3290 = vadd.f32 0.0, %v3289
      %v3291 = vpop.f32.mrb[0].mxu0
      %v3292 = vpop.f32.mrb[0].mxu0
      %v3293 = vadd.f32 0.0, %v3292
      %v3294 = vpop.f32.mrb[0].mxu0
      %3295 = vmatprep.mubr.bf16.mxu0 0
      %3296 = vmatmul.mubr.bf16.gmra.mrb[0].mxu0 %v3060
      %v3297 = vpop.f32.mrb[0].mxu0
      %v3298 = vadd.f32 0.0, %v3297
      %v3299 = vpop.f32.mrb[0].mxu0
      %v3300 = vpop.f32.mrb[0].mxu0
      %v3301 = vadd.f32 0.0, %v3300
      %v3302 = vpop.f32.mrb[0].mxu0
      %3303 = vdwg.mxu0
      %v3320 = vunpack.c.l.b16 %v3062
      %v3321 = vunpack.c.l.b16 %v3063
      %v3322 = vunpack.c.l.b16 %v3064
      %v3323 = vunpack.c.l.b16 %v3065
      %v3324 = vunpack.c.l.b16 %v3066
      %v3325 = vunpack.c.l.b16 %v3067
      %v3326 = vunpack.c.l.b16 %v3068
      %v3327 = vunpack.c.l.b16 %v3069
      %v3328 = vunpack.c.l.b16 %v3070
      %v3329 = vunpack.c.l.b16 %v3071
      %v3330 = vunpack.c.l.b16 %v3072
      %v3331 = vunpack.c.l.b16 %v3073
      %v3332 = vunpack.c.l.b16 %v3074
      %v3333 = vunpack.c.l.b16 %v3075
      %v3334 = vunpack.c.l.b16 %v3076
      %v3335 = vunpack.c.l.b16 %v3077
      %v3336 = vpack.c.b16 %v3321, %v3320
      %v3337 = vpack.c.b16 %v3323, %v3322
      %v3338 = vpack.c.b16 %v3325, %v3324
      %v3339 = vpack.c.b16 %v3327, %v3326
      %v3340 = vpack.c.b16 %v3329, %v3328
      %v3341 = vpack.c.b16 %v3331, %v3330
      %v3342 = vpack.c.b16 %v3333, %v3332
      %v3343 = vpack.c.b16 %v3335, %v3334
      %3352 = vmatprep.subr.bf16.mxu0 0
      %3353 = vmatpush1.bf16.msra.mxu0 %v3336
      %3354 = vmatprep.subr.bf16.mxu0 0
      %3355 = vmatpush1.bf16.msra.mxu0 %v3337
      %3356 = vmatprep.subr.bf16.mxu0 0
      %3357 = vmatpush1.bf16.msra.mxu0 %v3338
      %3358 = vmatprep.subr.bf16.mxu0 0
      %3359 = vmatpush1.bf16.msra.mxu0 %v3339
      %3360 = vmatprep.subr.bf16.mxu0 0
      %3361 = vmatpush1.bf16.msra.mxu0 %v3340
      %3362 = vmatprep.subr.bf16.mxu0 0
      %3363 = vmatpush1.bf16.msra.mxu0 %v3341
      %3364 = vmatprep.subr.bf16.mxu0 0
      %3365 = vmatpush1.bf16.msra.mxu0 %v3342
      %3366 = vmatprep.subr.bf16.mxu0 0
      %3367 = vmatpush1.bf16.msra.mxu0 %v3343
      %3368 = vmatprep.subr.bf16.mxu0 0
      %3369 = vmatpush1.bf16.msra.mxu0 0
      %3370 = vmatprep.subr.bf16.mxu0 0
      %3371 = vmatpush1.bf16.msra.mxu0 0
      %3372 = vmatprep.subr.bf16.mxu0 0
      %3373 = vmatpush1.bf16.msra.mxu0 0
      %3374 = vmatprep.subr.bf16.mxu0 0
      %3375 = vmatpush1.bf16.msra.mxu0 0
      %3376 = vmatprep.subr.bf16.mxu0 0
      %3377 = vmatpush1.bf16.msra.mxu0 0
      %3378 = vmatprep.subr.bf16.mxu0 0
      %3379 = vmatpush1.bf16.msra.mxu0 0
      %3380 = vmatprep.subr.bf16.mxu0 0
      %3381 = vmatpush1.bf16.msra.mxu0 0
      %3382 = vmatprep.subr.bf16.mxu0 0
      %3383 = vmatpush1.bf16.msra.mxu0 0
      %3384 = vmatprep.mubr.bf16.mxu0 0
      %3385 = vmatmul.mubr.bf16.gmra.mrb[0].mxu0 %v3044
      %v3386 = vpop.f32.mrb[0].mxu0
      %v3387 = vadd.f32 %v3178, %v3386
      %v3388 = vpop.f32.mrb[0].mxu0
      %v3389 = vpop.f32.mrb[0].mxu0
      %v3390 = vadd.f32 %v3181, %v3389
      %v3391 = vpop.f32.mrb[0].mxu0
      %3392 = vmatprep.mubr.bf16.mxu0 0
      %3393 = vmatmul.mubr.bf16.gmra.mrb[0].mxu0 %v3045
      %v3394 = vpop.f32.mrb[0].mxu0
      %v3395 = vadd.f32 %v3186, %v3394
      %v3396 = vpop.f32.mrb[0].mxu0
      %v3397 = vpop.f32.mrb[0].mxu0
      %v3398 = vadd.f32 %v3189, %v3397
      %v3399 = vpop.f32.mrb[0].mxu0
      %3400 = vmatprep.mubr.bf16.mxu0 0
      %3401 = vmatmul.mubr.bf16.gmra.mrb[0].mxu0 %v3046
      %v3402 = vpop.f32.mrb[0].mxu0
      %v3403 = vadd.f32 %v3194, %v3402
      %v3404 = vpop.f32.mrb[0].mxu0
      %v3405 = vpop.f32.mrb[0].mxu0
      %v3406 = vadd.f32 %v3197, %v3405
      %v3407 = vpop.f32.mrb[0].mxu0
      %3408 = vmatprep.mubr.bf16.mxu0 0
      %3409 = vmatmul.mubr.bf16.gmra.mrb[0].mxu0 %v3047
      %v3410 = vpop.f32.mrb[0].mxu0
      %v3411 = vadd.f32 %v3202, %v3410
      %v3412 = vpop.f32.mrb[0].mxu0
      %v3413 = vpop.f32.mrb[0].mxu0
      %v3414 = vadd.f32 %v3205, %v3413
      %v3415 = vpop.f32.mrb[0].mxu0
      %3416 = vmatprep.mubr.bf16.mxu0 0
      %3417 = vmatmul.mubr.bf16.gmra.mrb[0].mxu0 %v3048
      %v3418 = vpop.f32.mrb[0].mxu0
      %v3419 = vadd.f32 %v3210, %v3418
      %v3420 = vpop.f32.mrb[0].mxu0
      %v3421 = vpop.f32.mrb[0].mxu0
      %v3422 = vadd.f32 %v3213, %v3421
      %v3423 = vpop.f32.mrb[0].mxu0
      %3424 = vmatprep.mubr.bf16.mxu0 0
      %3425 = vmatmul.mubr.bf16.gmra.mrb[0].mxu0 %v3049
      %v3426 = vpop.f32.mrb[0].mxu0
      %v3427 = vadd.f32 %v3218, %v3426
      %v3428 = vpop.f32.mrb[0].mxu0
      %v3429 = vpop.f32.mrb[0].mxu0
      %v3430 = vadd.f32 %v3221, %v3429
      %v3431 = vpop.f32.mrb[0].mxu0
      %3432 = vmatprep.mubr.bf16.mxu0 0
      %3433 = vmatmul.mubr.bf16.gmra.mrb[0].mxu0 %v3050
      %v3434 = vpop.f32.mrb[0].mxu0
      %v3435 = vadd.f32 %v3226, %v3434
      %v3436 = vpop.f32.mrb[0].mxu0
      %v3437 = vpop.f32.mrb[0].mxu0
      %v3438 = vadd.f32 %v3229, %v3437
      %v3439 = vpop.f32.mrb[0].mxu0
      %3440 = vmatprep.mubr.bf16.mxu0 0
      %3441 = vmatmul.mubr.bf16.gmra.mrb[0].mxu0 %v3051
      %v3442 = vpop.f32.mrb[0].mxu0
      %v3443 = vadd.f32 %v3234, %v3442
      %v3444 = vpop.f32.mrb[0].mxu0
      %v3445 = vpop.f32.mrb[0].mxu0
      %v3446 = vadd.f32 %v3237, %v3445
      %v3447 = vpop.f32.mrb[0].mxu0
      %3448 = vmatprep.mubr.bf16.mxu0 0
      %3449 = vmatmul.mubr.bf16.gmra.mrb[0].mxu0 %v3052
      %v3450 = vpop.f32.mrb[0].mxu0
      %v3451 = vadd.f32 %v3242, %v3450
      %v3452 = vpop.f32.mrb[0].mxu0
      %v3453 = vpop.f32.mrb[0].mxu0
      %v3454 = vadd.f32 %v3245, %v3453
      %v3455 = vpop.f32.mrb[0].mxu0
      %3456 = vmatprep.mubr.bf16.mxu0 0
      %3457 = vmatmul.mubr.bf16.gmra.mrb[0].mxu0 %v3053
      %v3458 = vpop.f32.mrb[0].mxu0
      %v3459 = vadd.f32 %v3250, %v3458
      %v3460 = vpop.f32.mrb[0].mxu0
      %v3461 = vpop.f32.mrb[0].mxu0
      %v3462 = vadd.f32 %v3253, %v3461
      %v3463 = vpop.f32.mrb[0].mxu0
      %3464 = vmatprep.mubr.bf16.mxu0 0
      %3465 = vmatmul.mubr.bf16.gmra.mrb[0].mxu0 %v3054
      %v3466 = vpop.f32.mrb[0].mxu0
      %v3467 = vadd.f32 %v3258, %v3466
      %v3468 = vpop.f32.mrb[0].mxu0
      %v3469 = vpop.f32.mrb[0].mxu0
      %v3470 = vadd.f32 %v3261, %v3469
      %v3471 = vpop.f32.mrb[0].mxu0
      %3472 = vmatprep.mubr.bf16.mxu0 0
      %3473 = vmatmul.mubr.bf16.gmra.mrb[0].mxu0 %v3055
      %v3474 = vpop.f32.mrb[0].mxu0
      %v3475 = vadd.f32 %v3266, %v3474
      %v3476 = vpop.f32.mrb[0].mxu0
      %v3477 = vpop.f32.mrb[0].mxu0
      %v3478 = vadd.f32 %v3269, %v3477
      %v3479 = vpop.f32.mrb[0].mxu0
      %3480 = vmatprep.mubr.bf16.mxu0 0
      %3481 = vmatmul.mubr.bf16.gmra.mrb[0].mxu0 %v3056
      %v3482 = vpop.f32.mrb[0].mxu0
      %v3483 = vadd.f32 %v3274, %v3482
      %v3484 = vpop.f32.mrb[0].mxu0
      %v3485 = vpop.f32.mrb[0].mxu0
      %v3486 = vadd.f32 %v3277, %v3485
      %v3487 = vpop.f32.mrb[0].mxu0
      %3488 = vmatprep.mubr.bf16.mxu0 0
      %3489 = vmatmul.mubr.bf16.gmra.mrb[0].mxu0 %v3057
      %v3490 = vpop.f32.mrb[0].mxu0
      %v3491 = vadd.f32 %v3282, %v3490
      %v3492 = vpop.f32.mrb[0].mxu0
      %v3493 = vpop.f32.mrb[0].mxu0
      %v3494 = vadd.f32 %v3285, %v3493
      %v3495 = vpop.f32.mrb[0].mxu0
      %3496 = vmatprep.mubr.bf16.mxu0 0
      %3497 = vmatmul.mubr.bf16.gmra.mrb[0].mxu0 %v3058
      %v3498 = vpop.f32.mrb[0].mxu0
      %v3499 = vadd.f32 %v3290, %v3498
      %v3500 = vpop.f32.mrb[0].mxu0
      %v3501 = vpop.f32.mrb[0].mxu0
      %v3502 = vadd.f32 %v3293, %v3501
      %v3503 = vpop.f32.mrb[0].mxu0
      %3504 = vmatprep.mubr.bf16.mxu0 0
      %3505 = vmatmul.mubr.bf16.gmra.mrb[0].mxu0 %v3059
      %v3506 = vpop.f32.mrb[0].mxu0
      %v3507 = vadd.f32 %v3298, %v3506
      %v3508 = vpop.f32.mrb[0].mxu0
      %v3509 = vpop.f32.mrb[0].mxu0
      %v3510 = vadd.f32 %v3301, %v3509
      %v3511 = vpop.f32.mrb[0].mxu0
      %3512 = vdwg.mxu0
      %s3513 = scalar_lea.vmem %s3, 384
      %v3514 = vld [vmem:[%s3513] sm:$0xf]
      %v3515 = vld [vmem:[%s3513 + $0x4] sm:$0xf]
      %v3516 = vld [vmem:[%s3513 + $0x8] sm:$0xf]
      %v3517 = vld [vmem:[%s3513 + $0xc] sm:$0xf]
      %v3518 = vld [vmem:[%s3513 + $0x10] sm:$0xf]
      %v3519 = vld [vmem:[%s3513 + $0x14] sm:$0xf]
      %v3520 = vld [vmem:[%s3513 + $0x18] sm:$0xf]
      %v3521 = vld [vmem:[%s3513 + $0x1c] sm:$0xf]
      %v3522 = vld [vmem:[%s3513 + $0x20] sm:$0xf]
      %v3523 = vld [vmem:[%s3513 + $0x24] sm:$0xf]
      %v3524 = vld [vmem:[%s3513 + $0x28] sm:$0xf]
      %v3525 = vld [vmem:[%s3513 + $0x2c] sm:$0xf]
      %v3526 = vld [vmem:[%s3513 + $0x30] sm:$0xf]
      %v3527 = vld [vmem:[%s3513 + $0x34] sm:$0xf]
      %v3528 = vld [vmem:[%s3513 + $0x38] sm:$0xf]
      %v3529 = vld [vmem:[%s3513 + $0x3c] sm:$0xf]
      %v3546 = vunpack.c.l.b16 %v3514
      %v3547 = vunpack.c.l.b16 %v3515
      %v3548 = vunpack.c.l.b16 %v3516
      %v3549 = vunpack.c.l.b16 %v3517
      %v3550 = vunpack.c.l.b16 %v3518
      %v3551 = vunpack.c.l.b16 %v3519
      %v3552 = vunpack.c.l.b16 %v3520
      %v3553 = vunpack.c.l.b16 %v3521
      %v3554 = vunpack.c.l.b16 %v3522
      %v3555 = vunpack.c.l.b16 %v3523
      %v3556 = vunpack.c.l.b16 %v3524
      %v3557 = vunpack.c.l.b16 %v3525
      %v3558 = vunpack.c.l.b16 %v3526
      %v3559 = vunpack.c.l.b16 %v3527
      %v3560 = vunpack.c.l.b16 %v3528
      %v3561 = vunpack.c.l.b16 %v3529
      %v3562 = vpack.c.b16 %v3547, %v3546
      %v3563 = vpack.c.b16 %v3549, %v3548
      %v3564 = vpack.c.b16 %v3551, %v3550
      %v3565 = vpack.c.b16 %v3553, %v3552
      %v3566 = vpack.c.b16 %v3555, %v3554
      %v3567 = vpack.c.b16 %v3557, %v3556
      %v3568 = vpack.c.b16 %v3559, %v3558
      %v3569 = vpack.c.b16 %v3561, %v3560
      %3578 = vmatprep.subr.bf16.mxu0 0
      %3579 = vmatpush1.bf16.msra.mxu0 %v3562
      %3580 = vmatprep.subr.bf16.mxu0 0
      %3581 = vmatpush1.bf16.msra.mxu0 %v3563
      %3582 = vmatprep.subr.bf16.mxu0 0
      %3583 = vmatpush1.bf16.msra.mxu0 %v3564
      %3584 = vmatprep.subr.bf16.mxu0 0
      %3585 = vmatpush1.bf16.msra.mxu0 %v3565
      %3586 = vmatprep.subr.bf16.mxu0 0
      %3587 = vmatpush1.bf16.msra.mxu0 %v3566
      %3588 = vmatprep.subr.bf16.mxu0 0
      %3589 = vmatpush1.bf16.msra.mxu0 %v3567
      %3590 = vmatprep.subr.bf16.mxu0 0
      %3591 = vmatpush1.bf16.msra.mxu0 %v3568
      %3592 = vmatprep.subr.bf16.mxu0 0
      %3593 = vmatpush1.bf16.msra.mxu0 %v3569
      %3594 = vmatprep.subr.bf16.mxu0 0
      %3595 = vmatpush1.bf16.msra.mxu0 0
      %3596 = vmatprep.subr.bf16.mxu0 0
      %3597 = vmatpush1.bf16.msra.mxu0 0
      %3598 = vmatprep.subr.bf16.mxu0 0
      %3599 = vmatpush1.bf16.msra.mxu0 0
      %3600 = vmatprep.subr.bf16.mxu0 0
      %3601 = vmatpush1.bf16.msra.mxu0 0
      %3602 = vmatprep.subr.bf16.mxu0 0
      %3603 = vmatpush1.bf16.msra.mxu0 0
      %3604 = vmatprep.subr.bf16.mxu0 0
      %3605 = vmatpush1.bf16.msra.mxu0 0
      %3606 = vmatprep.subr.bf16.mxu0 0
      %3607 = vmatpush1.bf16.msra.mxu0 0
      %3608 = vmatprep.subr.bf16.mxu0 0
      %3609 = vmatpush1.bf16.msra.mxu0 0
      %3610 = vmatprep.mubr.bf16.mxu0 0
      %3611 = vmatmul.mubr.bf16.gmra.mrb[0].mxu0 %v3046
      %v3612 = vpop.f32.mrb[0].mxu0
      %v3613 = vadd.f32 0.0, %v3612
      %v3614 = vpop.f32.mrb[0].mxu0
      %v3615 = vpop.f32.mrb[0].mxu0
      %v3616 = vadd.f32 0.0, %v3615
      %v3617 = vpop.f32.mrb[0].mxu0
      %3618 = vmatprep.mubr.bf16.mxu0 0
      %3619 = vmatmul.mubr.bf16.gmra.mrb[0].mxu0 %v3047
      %v3620 = vpop.f32.mrb[0].mxu0
      %v3621 = vadd.f32 0.0, %v3620
      %v3622 = vpop.f32.mrb[0].mxu0
      %v3623 = vpop.f32.mrb[0].mxu0
      %v3624 = vadd.f32 0.0, %v3623
      %v3625 = vpop.f32.mrb[0].mxu0
      %3626 = vmatprep.mubr.bf16.mxu0 0
      %3627 = vmatmul.mubr.bf16.gmra.mrb[0].mxu0 %v3048
      %v3628 = vpop.f32.mrb[0].mxu0
      %v3629 = vadd.f32 0.0, %v3628
      %v3630 = vpop.f32.mrb[0].mxu0
      %v3631 = vpop.f32.mrb[0].mxu0
      %v3632 = vadd.f32 0.0, %v3631
      %v3633 = vpop.f32.mrb[0].mxu0
      %3634 = vmatprep.mubr.bf16.mxu0 0
      %3635 = vmatmul.mubr.bf16.gmra.mrb[0].mxu0 %v3049
      %v3636 = vpop.f32.mrb[0].mxu0
      %v3637 = vadd.f32 0.0, %v3636
      %v3638 = vpop.f32.mrb[0].mxu0
      %v3639 = vpop.f32.mrb[0].mxu0
      %v3640 = vadd.f32 0.0, %v3639
      %v3641 = vpop.f32.mrb[0].mxu0
      %3642 = vmatprep.mubr.bf16.mxu0 0
      %3643 = vmatmul.mubr.bf16.gmra.mrb[0].mxu0 %v3050
      %v3644 = vpop.f32.mrb[0].mxu0
      %v3645 = vadd.f32 0.0, %v3644
      %v3646 = vpop.f32.mrb[0].mxu0
      %v3647 = vpop.f32.mrb[0].mxu0
      %v3648 = vadd.f32 0.0, %v3647
      %v3649 = vpop.f32.mrb[0].mxu0
      %3650 = vmatprep.mubr.bf16.mxu0 0
      %3651 = vmatmul.mubr.bf16.gmra.mrb[0].mxu0 %v3051
      %v3652 = vpop.f32.mrb[0].mxu0
      %v3653 = vadd.f32 0.0, %v3652
      %v3654 = vpop.f32.mrb[0].mxu0
      %v3655 = vpop.f32.mrb[0].mxu0
      %v3656 = vadd.f32 0.0, %v3655
      %v3657 = vpop.f32.mrb[0].mxu0
      %3658 = vmatprep.mubr.bf16.mxu0 0
      %3659 = vmatmul.mubr.bf16.gmra.mrb[0].mxu0 %v3052
      %v3660 = vpop.f32.mrb[0].mxu0
      %v3661 = vadd.f32 0.0, %v3660
      %v3662 = vpop.f32.mrb[0].mxu0
      %v3663 = vpop.f32.mrb[0].mxu0
      %v3664 = vadd.f32 0.0, %v3663
      %v3665 = vpop.f32.mrb[0].mxu0
      %3666 = vmatprep.mubr.bf16.mxu0 0
      %3667 = vmatmul.mubr.bf16.gmra.mrb[0].mxu0 %v3053
      %v3668 = vpop.f32.mrb[0].mxu0
      %v3669 = vadd.f32 0.0, %v3668
      %v3670 = vpop.f32.mrb[0].mxu0
      %v3671 = vpop.f32.mrb[0].mxu0
      %v3672 = vadd.f32 0.0, %v3671
      %v3673 = vpop.f32.mrb[0].mxu0
      %3674 = vmatprep.mubr.bf16.mxu0 0
      %3675 = vmatmul.mubr.bf16.gmra.mrb[0].mxu0 %v3054
      %v3676 = vpop.f32.mrb[0].mxu0
      %v3677 = vadd.f32 0.0, %v3676
      %v3678 = vpop.f32.mrb[0].mxu0
      %v3679 = vpop.f32.mrb[0].mxu0
      %v3680 = vadd.f32 0.0, %v3679
      %v3681 = vpop.f32.mrb[0].mxu0
      %3682 = vmatprep.mubr.bf16.mxu0 0
      %3683 = vmatmul.mubr.bf16.gmra.mrb[0].mxu0 %v3055
      %v3684 = vpop.f32.mrb[0].mxu0
      %v3685 = vadd.f32 0.0, %v3684
      %v3686 = vpop.f32.mrb[0].mxu0
      %v3687 = vpop.f32.mrb[0].mxu0
      %v3688 = vadd.f32 0.0, %v3687
      %v3689 = vpop.f32.mrb[0].mxu0
      %3690 = vmatprep.mubr.bf16.mxu0 0
      %3691 = vmatmul.mubr.bf16.gmra.mrb[0].mxu0 %v3056
      %v3692 = vpop.f32.mrb[0].mxu0
      %v3693 = vadd.f32 0.0, %v3692
      %v3694 = vpop.f32.mrb[0].mxu0
      %v3695 = vpop.f32.mrb[0].mxu0
      %v3696 = vadd.f32 0.0, %v3695
      %v3697 = vpop.f32.mrb[0].mxu0
      %3698 = vmatprep.mubr.bf16.mxu0 0
      %3699 = vmatmul.mubr.bf16.gmra.mrb[0].mxu0 %v3057
      %v3700 = vpop.f32.mrb[0].mxu0
      %v3701 = vadd.f32 0.0, %v3700
      %v3702 = vpop.f32.mrb[0].mxu0
      %v3703 = vpop.f32.mrb[0].mxu0
      %v3704 = vadd.f32 0.0, %v3703
      %v3705 = vpop.f32.mrb[0].mxu0
      %3706 = vmatprep.mubr.bf16.mxu0 0
      %3707 = vmatmul.mubr.bf16.gmra.mrb[0].mxu0 %v3058
      %v3708 = vpop.f32.mrb[0].mxu0
      %v3709 = vadd.f32 0.0, %v3708
      %v3710 = vpop.f32.mrb[0].mxu0
      %v3711 = vpop.f32.mrb[0].mxu0
      %v3712 = vadd.f32 0.0, %v3711
      %v3713 = vpop.f32.mrb[0].mxu0
      %3714 = vmatprep.mubr.bf16.mxu0 0
      %3715 = vmatmul.mubr.bf16.gmra.mrb[0].mxu0 %v3059
      %v3716 = vpop.f32.mrb[0].mxu0
      %v3717 = vadd.f32 0.0, %v3716
      %v3718 = vpop.f32.mrb[0].mxu0
      %v3719 = vpop.f32.mrb[0].mxu0
      %v3720 = vadd.f32 0.0, %v3719
      %v3721 = vpop.f32.mrb[0].mxu0
      %3722 = vmatprep.mubr.bf16.mxu0 0
      %3723 = vmatmul.mubr.bf16.gmra.mrb[0].mxu0 %v3060
      %v3724 = vpop.f32.mrb[0].mxu0
      %v3725 = vadd.f32 0.0, %v3724
      %v3726 = vpop.f32.mrb[0].mxu0
      %v3727 = vpop.f32.mrb[0].mxu0
      %v3728 = vadd.f32 0.0, %v3727
      %v3729 = vpop.f32.mrb[0].mxu0
      %3730 = vmatprep.mubr.bf16.mxu0 0
      %3731 = vmatmul.mubr.bf16.gmra.mrb[0].mxu0 %v3061
      %v3732 = vpop.f32.mrb[0].mxu0
      %v3733 = vadd.f32 0.0, %v3732
      %v3734 = vpop.f32.mrb[0].mxu0
      %v3735 = vpop.f32.mrb[0].mxu0
      %v3736 = vadd.f32 0.0, %v3735
      %v3737 = vpop.f32.mrb[0].mxu0
      %3738 = vdwg.mxu0
      %v3739 = vadd.f32 %v3387, %v3613
      %v3740 = vadd.f32 %v3390, %v3616
      %v3741 = vadd.f32 %v3395, %v3621
      %v3742 = vadd.f32 %v3398, %v3624
      %v3743 = vadd.f32 %v3403, %v3629
      %v3744 = vadd.f32 %v3406, %v3632
      %v3745 = vadd.f32 %v3411, %v3637
      %v3746 = vadd.f32 %v3414, %v3640
      %v3747 = vadd.f32 %v3419, %v3645
      %v3748 = vadd.f32 %v3422, %v3648
      %v3749 = vadd.f32 %v3427, %v3653
      %v3750 = vadd.f32 %v3430, %v3656
      %v3751 = vadd.f32 %v3435, %v3661
      %v3752 = vadd.f32 %v3438, %v3664
      %v3753 = vadd.f32 %v3443, %v3669
      %v3754 = vadd.f32 %v3446, %v3672
      %v3755 = vadd.f32 %v3451, %v3677
      %v3756 = vadd.f32 %v3454, %v3680
      %v3757 = vadd.f32 %v3459, %v3685
      %v3758 = vadd.f32 %v3462, %v3688
      %v3759 = vadd.f32 %v3467, %v3693
      %v3760 = vadd.f32 %v3470, %v3696
      %v3761 = vadd.f32 %v3475, %v3701
      %v3762 = vadd.f32 %v3478, %v3704
      %v3763 = vadd.f32 %v3483, %v3709
      %v3764 = vadd.f32 %v3486, %v3712
      %v3765 = vadd.f32 %v3491, %v3717
      %v3766 = vadd.f32 %v3494, %v3720
      %v3767 = vadd.f32 %v3499, %v3725
      %v3768 = vadd.f32 %v3502, %v3728
      %v3769 = vadd.f32 %v3507, %v3733
      %v3770 = vadd.f32 %v3510, %v3736
      %v3771 = vld [vmem:[#allocation3 + $0x1] sm:$0xff]
      %v3772 = vld [vmem:[#allocation3 + $0x9] sm:$0xff]
      %v3773 = vld [vmem:[#allocation3 + $0x19] sm:$0xff]
      %v3774 = vld [vmem:[#allocation3 + $0x21] sm:$0xff]
      %v3775 = vld [vmem:[#allocation3 + $0x31] sm:$0xff]
      %v3776 = vld [vmem:[#allocation3 + $0x39] sm:$0xff]
      %v3777 = vld [vmem:[#allocation3 + $0x49] sm:$0xff]
      %v3778 = vld [vmem:[#allocation3 + $0x51] sm:$0xff]
      %v3779 = vld [vmem:[#allocation3 + $0x61] sm:$0xff]
      %v3780 = vld [vmem:[#allocation3 + $0x69] sm:$0xff]
      %v3781 = vld [vmem:[#allocation3 + $0x79] sm:$0xff]
      %v3782 = vld [vmem:[#allocation3 + $0x81] sm:$0xff]
      %v3783 = vld [vmem:[#allocation3 + $0x91] sm:$0xff]
      %v3784 = vld [vmem:[#allocation3 + $0x99] sm:$0xff]
      %v3785 = vld [vmem:[#allocation3 + $0xa9] sm:$0xff]
      %v3786 = vld [vmem:[#allocation3 + $0xb1] sm:$0xff]
      %v3787 = vld [vmem:[#allocation3 + $0xc1] sm:$0xff]
      %v3788 = vld [vmem:[#allocation3 + $0xc9] sm:$0xff]
      %v3789 = vld [vmem:[#allocation3 + $0xd9] sm:$0xff]
      %v3790 = vld [vmem:[#allocation3 + $0xe1] sm:$0xff]
      %v3791 = vld [vmem:[#allocation3 + $0xf1] sm:$0xff]
      %v3792 = vld [vmem:[#allocation3 + $0xf9] sm:$0xff]
      %v3793 = vld [vmem:[#allocation3 + $0x109] sm:$0xff]
      %v3794 = vld [vmem:[#allocation3 + $0x111] sm:$0xff]
      %v3795 = vld [vmem:[#allocation3 + $0x121] sm:$0xff]
      %v3796 = vld [vmem:[#allocation3 + $0x129] sm:$0xff]
      %v3797 = vld [vmem:[#allocation3 + $0x139] sm:$0xff]
      %v3798 = vld [vmem:[#allocation3 + $0x141] sm:$0xff]
      %v3799 = vld [vmem:[#allocation3 + $0x151] sm:$0xff]
      %v3800 = vld [vmem:[#allocation3 + $0x159] sm:$0xff]
      %v3801 = vld [vmem:[#allocation3 + $0x169] sm:$0xff]
      %v3802 = vld [vmem:[#allocation3 + $0x171] sm:$0xff]
      %v3803 = vld [vmem:[#allocation3 + $0x181] sm:$0xff]
      %v3804 = vld [vmem:[#allocation3 + $0x189] sm:$0xff]
      %v3805 = vld [vmem:[#allocation3 + $0x199] sm:$0xff]
      %v3806 = vld [vmem:[#allocation3 + $0x1a1] sm:$0xff]
      %v3807 = vpack.c.bf16 %v3772, %v3771
      %v3808 = vpack.c.bf16 %v3774, %v3773
      %v3809 = vpack.c.bf16 %v3776, %v3775
      %v3810 = vpack.c.bf16 %v3778, %v3777
      %v3811 = vpack.c.bf16 %v3780, %v3779
      %v3812 = vpack.c.bf16 %v3782, %v3781
      %v3813 = vpack.c.bf16 %v3784, %v3783
      %v3814 = vpack.c.bf16 %v3786, %v3785
      %v3815 = vpack.c.bf16 %v3788, %v3787
      %v3816 = vpack.c.bf16 %v3790, %v3789
      %v3817 = vpack.c.bf16 %v3792, %v3791
      %v3818 = vpack.c.bf16 %v3794, %v3793
      %v3819 = vpack.c.bf16 %v3796, %v3795
      %v3820 = vpack.c.bf16 %v3798, %v3797
      %v3821 = vpack.c.bf16 %v3800, %v3799
      %v3822 = vpack.c.bf16 %v3802, %v3801
      %v3823 = vpack.c.bf16 %v3804, %v3803
      %v3824 = vpack.c.bf16 %v3806, %v3805
      %s3825 = scalar_lea.vmem %s3, 64
      %v3826 = vld [vmem:[%s3825] sm:$0xf]
      %v3827 = vld [vmem:[%s3825 + $0x4] sm:$0xf]
      %v3828 = vld [vmem:[%s3825 + $0x8] sm:$0xf]
      %v3829 = vld [vmem:[%s3825 + $0xc] sm:$0xf]
      %v3830 = vld [vmem:[%s3825 + $0x10] sm:$0xf]
      %v3831 = vld [vmem:[%s3825 + $0x14] sm:$0xf]
      %v3832 = vld [vmem:[%s3825 + $0x18] sm:$0xf]
      %v3833 = vld [vmem:[%s3825 + $0x1c] sm:$0xf]
      %v3834 = vld [vmem:[%s3825 + $0x20] sm:$0xf]
      %v3835 = vld [vmem:[%s3825 + $0x24] sm:$0xf]
      %v3836 = vld [vmem:[%s3825 + $0x28] sm:$0xf]
      %v3837 = vld [vmem:[%s3825 + $0x2c] sm:$0xf]
      %v3838 = vld [vmem:[%s3825 + $0x30] sm:$0xf]
      %v3839 = vld [vmem:[%s3825 + $0x34] sm:$0xf]
      %v3840 = vld [vmem:[%s3825 + $0x38] sm:$0xf]
      %v3841 = vld [vmem:[%s3825 + $0x3c] sm:$0xf]
      %v3858 = vunpack.c.l.b16 %v3826
      %v3859 = vunpack.c.l.b16 %v3827
      %v3860 = vunpack.c.l.b16 %v3828
      %v3861 = vunpack.c.l.b16 %v3829
      %v3862 = vunpack.c.l.b16 %v3830
      %v3863 = vunpack.c.l.b16 %v3831
      %v3864 = vunpack.c.l.b16 %v3832
      %v3865 = vunpack.c.l.b16 %v3833
      %v3866 = vunpack.c.l.b16 %v3834
      %v3867 = vunpack.c.l.b16 %v3835
      %v3868 = vunpack.c.l.b16 %v3836
      %v3869 = vunpack.c.l.b16 %v3837
      %v3870 = vunpack.c.l.b16 %v3838
      %v3871 = vunpack.c.l.b16 %v3839
      %v3872 = vunpack.c.l.b16 %v3840
      %v3873 = vunpack.c.l.b16 %v3841
      %v3874 = vpack.c.b16 %v3859, %v3858
      %v3875 = vpack.c.b16 %v3861, %v3860
      %v3876 = vpack.c.b16 %v3863, %v3862
      %v3877 = vpack.c.b16 %v3865, %v3864
      %v3878 = vpack.c.b16 %v3867, %v3866
      %v3879 = vpack.c.b16 %v3869, %v3868
      %v3880 = vpack.c.b16 %v3871, %v3870
      %v3881 = vpack.c.b16 %v3873, %v3872
      %3890 = vmatprep.subr.bf16.mxu0 0
      %3891 = vmatpush1.bf16.msra.mxu0 %v3874
      %3892 = vmatprep.subr.bf16.mxu0 0
      %3893 = vmatpush1.bf16.msra.mxu0 %v3875
      %3894 = vmatprep.subr.bf16.mxu0 0
      %3895 = vmatpush1.bf16.msra.mxu0 %v3876
      %3896 = vmatprep.subr.bf16.mxu0 0
      %3897 = vmatpush1.bf16.msra.mxu0 %v3877
      %3898 = vmatprep.subr.bf16.mxu0 0
      %3899 = vmatpush1.bf16.msra.mxu0 %v3878
      %3900 = vmatprep.subr.bf16.mxu0 0
      %3901 = vmatpush1.bf16.msra.mxu0 %v3879
      %3902 = vmatprep.subr.bf16.mxu0 0
      %3903 = vmatpush1.bf16.msra.mxu0 %v3880
      %3904 = vmatprep.subr.bf16.mxu0 0
      %3905 = vmatpush1.bf16.msra.mxu0 %v3881
      %3906 = vmatprep.subr.bf16.mxu0 0
      %3907 = vmatpush1.bf16.msra.mxu0 0
      %3908 = vmatprep.subr.bf16.mxu0 0
      %3909 = vmatpush1.bf16.msra.mxu0 0
      %3910 = vmatprep.subr.bf16.mxu0 0
      %3911 = vmatpush1.bf16.msra.mxu0 0
      %3912 = vmatprep.subr.bf16.mxu0 0
      %3913 = vmatpush1.bf16.msra.mxu0 0
      %3914 = vmatprep.subr.bf16.mxu0 0
      %3915 = vmatpush1.bf16.msra.mxu0 0
      %3916 = vmatprep.subr.bf16.mxu0 0
      %3917 = vmatpush1.bf16.msra.mxu0 0
      %3918 = vmatprep.subr.bf16.mxu0 0
      %3919 = vmatpush1.bf16.msra.mxu0 0
      %3920 = vmatprep.subr.bf16.mxu0 0
      %3921 = vmatpush1.bf16.msra.mxu0 0
      %3922 = vmatprep.mubr.bf16.mxu0 0
      %3923 = vmatmul.mubr.bf16.gmra.mrb[0].mxu0 %v3807
      %v3924 = vpop.f32.mrb[0].mxu0
      %v3925 = vadd.f32 0.0, %v3924
      %v3926 = vpop.f32.mrb[0].mxu0
      %v3927 = vpop.f32.mrb[0].mxu0
      %v3928 = vadd.f32 0.0, %v3927
      %v3929 = vpop.f32.mrb[0].mxu0
      %3930 = vmatprep.mubr.bf16.mxu0 0
      %3931 = vmatmul.mubr.bf16.gmra.mrb[0].mxu0 %v3808
      %v3932 = vpop.f32.mrb[0].mxu0
      %v3933 = vadd.f32 0.0, %v3932
      %v3934 = vpop.f32.mrb[0].mxu0
      %v3935 = vpop.f32.mrb[0].mxu0
      %v3936 = vadd.f32 0.0, %v3935
      %v3937 = vpop.f32.mrb[0].mxu0
      %3938 = vmatprep.mubr.bf16.mxu0 0
      %3939 = vmatmul.mubr.bf16.gmra.mrb[0].mxu0 %v3809
      %v3940 = vpop.f32.mrb[0].mxu0
      %v3941 = vadd.f32 0.0, %v3940
      %v3942 = vpop.f32.mrb[0].mxu0
      %v3943 = vpop.f32.mrb[0].mxu0
      %v3944 = vadd.f32 0.0, %v3943
      %v3945 = vpop.f32.mrb[0].mxu0
      %3946 = vmatprep.mubr.bf16.mxu0 0
      %3947 = vmatmul.mubr.bf16.gmra.mrb[0].mxu0 %v3810
      %v3948 = vpop.f32.mrb[0].mxu0
      %v3949 = vadd.f32 0.0, %v3948
      %v3950 = vpop.f32.mrb[0].mxu0
      %v3951 = vpop.f32.mrb[0].mxu0
      %v3952 = vadd.f32 0.0, %v3951
      %v3953 = vpop.f32.mrb[0].mxu0
      %3954 = vmatprep.mubr.bf16.mxu0 0
      %3955 = vmatmul.mubr.bf16.gmra.mrb[0].mxu0 %v3811
      %v3956 = vpop.f32.mrb[0].mxu0
      %v3957 = vadd.f32 0.0, %v3956
      %v3958 = vpop.f32.mrb[0].mxu0
      %v3959 = vpop.f32.mrb[0].mxu0
      %v3960 = vadd.f32 0.0, %v3959
      %v3961 = vpop.f32.mrb[0].mxu0
      %3962 = vmatprep.mubr.bf16.mxu0 0
      %3963 = vmatmul.mubr.bf16.gmra.mrb[0].mxu0 %v3812
      %v3964 = vpop.f32.mrb[0].mxu0
      %v3965 = vadd.f32 0.0, %v3964
      %v3966 = vpop.f32.mrb[0].mxu0
      %v3967 = vpop.f32.mrb[0].mxu0
      %v3968 = vadd.f32 0.0, %v3967
      %v3969 = vpop.f32.mrb[0].mxu0
      %3970 = vmatprep.mubr.bf16.mxu0 0
      %3971 = vmatmul.mubr.bf16.gmra.mrb[0].mxu0 %v3813
      %v3972 = vpop.f32.mrb[0].mxu0
      %v3973 = vadd.f32 0.0, %v3972
      %v3974 = vpop.f32.mrb[0].mxu0
      %v3975 = vpop.f32.mrb[0].mxu0
      %v3976 = vadd.f32 0.0, %v3975
      %v3977 = vpop.f32.mrb[0].mxu0
      %3978 = vmatprep.mubr.bf16.mxu0 0
      %3979 = vmatmul.mubr.bf16.gmra.mrb[0].mxu0 %v3814
      %v3980 = vpop.f32.mrb[0].mxu0
      %v3981 = vadd.f32 0.0, %v3980
      %v3982 = vpop.f32.mrb[0].mxu0
      %v3983 = vpop.f32.mrb[0].mxu0
      %v3984 = vadd.f32 0.0, %v3983
      %v3985 = vpop.f32.mrb[0].mxu0
      %3986 = vmatprep.mubr.bf16.mxu0 0
      %3987 = vmatmul.mubr.bf16.gmra.mrb[0].mxu0 %v3815
      %v3988 = vpop.f32.mrb[0].mxu0
      %v3989 = vadd.f32 0.0, %v3988
      %v3990 = vpop.f32.mrb[0].mxu0
      %v3991 = vpop.f32.mrb[0].mxu0
      %v3992 = vadd.f32 0.0, %v3991
      %v3993 = vpop.f32.mrb[0].mxu0
      %3994 = vmatprep.mubr.bf16.mxu0 0
      %3995 = vmatmul.mubr.bf16.gmra.mrb[0].mxu0 %v3816
      %v3996 = vpop.f32.mrb[0].mxu0
      %v3997 = vadd.f32 0.0, %v3996
      %v3998 = vpop.f32.mrb[0].mxu0
      %v3999 = vpop.f32.mrb[0].mxu0
      %v4000 = vadd.f32 0.0, %v3999
      %v4001 = vpop.f32.mrb[0].mxu0
      %4002 = vmatprep.mubr.bf16.mxu0 0
      %4003 = vmatmul.mubr.bf16.gmra.mrb[0].mxu0 %v3817
      %v4004 = vpop.f32.mrb[0].mxu0
      %v4005 = vadd.f32 0.0, %v4004
      %v4006 = vpop.f32.mrb[0].mxu0
      %v4007 = vpop.f32.mrb[0].mxu0
      %v4008 = vadd.f32 0.0, %v4007
      %v4009 = vpop.f32.mrb[0].mxu0
      %4010 = vmatprep.mubr.bf16.mxu0 0
      %4011 = vmatmul.mubr.bf16.gmra.mrb[0].mxu0 %v3818
      %v4012 = vpop.f32.mrb[0].mxu0
      %v4013 = vadd.f32 0.0, %v4012
      %v4014 = vpop.f32.mrb[0].mxu0
      %v4015 = vpop.f32.mrb[0].mxu0
      %v4016 = vadd.f32 0.0, %v4015
      %v4017 = vpop.f32.mrb[0].mxu0
      %4018 = vmatprep.mubr.bf16.mxu0 0
      %4019 = vmatmul.mubr.bf16.gmra.mrb[0].mxu0 %v3819
      %v4020 = vpop.f32.mrb[0].mxu0
      %v4021 = vadd.f32 0.0, %v4020
      %v4022 = vpop.f32.mrb[0].mxu0
      %v4023 = vpop.f32.mrb[0].mxu0
      %v4024 = vadd.f32 0.0, %v4023
      %v4025 = vpop.f32.mrb[0].mxu0
      %4026 = vmatprep.mubr.bf16.mxu0 0
      %4027 = vmatmul.mubr.bf16.gmra.mrb[0].mxu0 %v3820
      %v4028 = vpop.f32.mrb[0].mxu0
      %v4029 = vadd.f32 0.0, %v4028
      %v4030 = vpop.f32.mrb[0].mxu0
      %v4031 = vpop.f32.mrb[0].mxu0
      %v4032 = vadd.f32 0.0, %v4031
      %v4033 = vpop.f32.mrb[0].mxu0
      %4034 = vmatprep.mubr.bf16.mxu0 0
      %4035 = vmatmul.mubr.bf16.gmra.mrb[0].mxu0 %v3821
      %v4036 = vpop.f32.mrb[0].mxu0
      %v4037 = vadd.f32 0.0, %v4036
      %v4038 = vpop.f32.mrb[0].mxu0
      %v4039 = vpop.f32.mrb[0].mxu0
      %v4040 = vadd.f32 0.0, %v4039
      %v4041 = vpop.f32.mrb[0].mxu0
      %4042 = vmatprep.mubr.bf16.mxu0 0
      %4043 = vmatmul.mubr.bf16.gmra.mrb[0].mxu0 %v3822
      %v4044 = vpop.f32.mrb[0].mxu0
      %v4045 = vadd.f32 0.0, %v4044
      %v4046 = vpop.f32.mrb[0].mxu0
      %v4047 = vpop.f32.mrb[0].mxu0
      %v4048 = vadd.f32 0.0, %v4047
      %v4049 = vpop.f32.mrb[0].mxu0
      %4050 = vdwg.mxu0
      %v4051 = vadd.f32 %v3739, %v3925
      %v4052 = vadd.f32 %v3740, %v3928
      %v4053 = vadd.f32 %v3741, %v3933
      %v4054 = vadd.f32 %v3742, %v3936
      %v4055 = vadd.f32 %v3743, %v3941
      %v4056 = vadd.f32 %v3744, %v3944
      %v4057 = vadd.f32 %v3745, %v3949
      %v4058 = vadd.f32 %v3746, %v3952
      %v4059 = vadd.f32 %v3747, %v3957
      %v4060 = vadd.f32 %v3748, %v3960
      %v4061 = vadd.f32 %v3749, %v3965
      %v4062 = vadd.f32 %v3750, %v3968
      %v4063 = vadd.f32 %v3751, %v3973
      %v4064 = vadd.f32 %v3752, %v3976
      %v4065 = vadd.f32 %v3753, %v3981
      %v4066 = vadd.f32 %v3754, %v3984
      %v4067 = vadd.f32 %v3755, %v3989
      %v4068 = vadd.f32 %v3756, %v3992
      %v4069 = vadd.f32 %v3757, %v3997
      %v4070 = vadd.f32 %v3758, %v4000
      %v4071 = vadd.f32 %v3759, %v4005
      %v4072 = vadd.f32 %v3760, %v4008
      %v4073 = vadd.f32 %v3761, %v4013
      %v4074 = vadd.f32 %v3762, %v4016
      %v4075 = vadd.f32 %v3763, %v4021
      %v4076 = vadd.f32 %v3764, %v4024
      %v4077 = vadd.f32 %v3765, %v4029
      %v4078 = vadd.f32 %v3766, %v4032
      %v4079 = vadd.f32 %v3767, %v4037
      %v4080 = vadd.f32 %v3768, %v4040
      %v4081 = vadd.f32 %v3769, %v4045
      %v4082 = vadd.f32 %v3770, %v4048
      %s4083 = scalar_lea.vmem %s3, 256
      %v4084 = vld [vmem:[%s4083] sm:$0xf]
      %v4085 = vld [vmem:[%s4083 + $0x4] sm:$0xf]
      %v4086 = vld [vmem:[%s4083 + $0x8] sm:$0xf]
      %v4087 = vld [vmem:[%s4083 + $0xc] sm:$0xf]
      %v4088 = vld [vmem:[%s4083 + $0x10] sm:$0xf]
      %v4089 = vld [vmem:[%s4083 + $0x14] sm:$0xf]
      %v4090 = vld [vmem:[%s4083 + $0x18] sm:$0xf]
      %v4091 = vld [vmem:[%s4083 + $0x1c] sm:$0xf]
      %v4092 = vld [vmem:[%s4083 + $0x20] sm:$0xf]
      %v4093 = vld [vmem:[%s4083 + $0x24] sm:$0xf]
      %v4094 = vld [vmem:[%s4083 + $0x28] sm:$0xf]
      %v4095 = vld [vmem:[%s4083 + $0x2c] sm:$0xf]
      %v4096 = vld [vmem:[%s4083 + $0x30] sm:$0xf]
      %v4097 = vld [vmem:[%s4083 + $0x34] sm:$0xf]
      %v4098 = vld [vmem:[%s4083 + $0x38] sm:$0xf]
      %v4099 = vld [vmem:[%s4083 + $0x3c] sm:$0xf]
      %v4116 = vunpack.c.l.b16 %v4084
      %v4117 = vunpack.c.l.b16 %v4085
      %v4118 = vunpack.c.l.b16 %v4086
      %v4119 = vunpack.c.l.b16 %v4087
      %v4120 = vunpack.c.l.b16 %v4088
      %v4121 = vunpack.c.l.b16 %v4089
      %v4122 = vunpack.c.l.b16 %v4090
      %v4123 = vunpack.c.l.b16 %v4091
      %v4124 = vunpack.c.l.b16 %v4092
      %v4125 = vunpack.c.l.b16 %v4093
      %v4126 = vunpack.c.l.b16 %v4094
      %v4127 = vunpack.c.l.b16 %v4095
      %v4128 = vunpack.c.l.b16 %v4096
      %v4129 = vunpack.c.l.b16 %v4097
      %v4130 = vunpack.c.l.b16 %v4098
      %v4131 = vunpack.c.l.b16 %v4099
      %v4132 = vpack.c.b16 %v4117, %v4116
      %v4133 = vpack.c.b16 %v4119, %v4118
      %v4134 = vpack.c.b16 %v4121, %v4120
      %v4135 = vpack.c.b16 %v4123, %v4122
      %v4136 = vpack.c.b16 %v4125, %v4124
      %v4137 = vpack.c.b16 %v4127, %v4126
      %v4138 = vpack.c.b16 %v4129, %v4128
      %v4139 = vpack.c.b16 %v4131, %v4130
      %4148 = vmatprep.subr.bf16.mxu0 0
      %4149 = vmatpush1.bf16.msra.mxu0 %v4132
      %4150 = vmatprep.subr.bf16.mxu0 0
      %4151 = vmatpush1.bf16.msra.mxu0 %v4133
      %4152 = vmatprep.subr.bf16.mxu0 0
      %4153 = vmatpush1.bf16.msra.mxu0 %v4134
      %4154 = vmatprep.subr.bf16.mxu0 0
      %4155 = vmatpush1.bf16.msra.mxu0 %v4135
      %4156 = vmatprep.subr.bf16.mxu0 0
      %4157 = vmatpush1.bf16.msra.mxu0 %v4136
      %4158 = vmatprep.subr.bf16.mxu0 0
      %4159 = vmatpush1.bf16.msra.mxu0 %v4137
      %4160 = vmatprep.subr.bf16.mxu0 0
      %4161 = vmatpush1.bf16.msra.mxu0 %v4138
      %4162 = vmatprep.subr.bf16.mxu0 0
      %4163 = vmatpush1.bf16.msra.mxu0 %v4139
      %4164 = vmatprep.subr.bf16.mxu0 0
      %4165 = vmatpush1.bf16.msra.mxu0 0
      %4166 = vmatprep.subr.bf16.mxu0 0
      %4167 = vmatpush1.bf16.msra.mxu0 0
      %4168 = vmatprep.subr.bf16.mxu0 0
      %4169 = vmatpush1.bf16.msra.mxu0 0
      %4170 = vmatprep.subr.bf16.mxu0 0
      %4171 = vmatpush1.bf16.msra.mxu0 0
      %4172 = vmatprep.subr.bf16.mxu0 0
      %4173 = vmatpush1.bf16.msra.mxu0 0
      %4174 = vmatprep.subr.bf16.mxu0 0
      %4175 = vmatpush1.bf16.msra.mxu0 0
      %4176 = vmatprep.subr.bf16.mxu0 0
      %4177 = vmatpush1.bf16.msra.mxu0 0
      %4178 = vmatprep.subr.bf16.mxu0 0
      %4179 = vmatpush1.bf16.msra.mxu0 0
      %4180 = vmatprep.mubr.bf16.mxu0 0
      %4181 = vmatmul.mubr.bf16.gmra.mrb[0].mxu0 %v3808
      %v4182 = vpop.f32.mrb[0].mxu0
      %v4183 = vadd.f32 0.0, %v4182
      %v4184 = vpop.f32.mrb[0].mxu0
      %v4185 = vpop.f32.mrb[0].mxu0
      %v4186 = vadd.f32 0.0, %v4185
      %v4187 = vpop.f32.mrb[0].mxu0
      %4188 = vmatprep.mubr.bf16.mxu0 0
      %4189 = vmatmul.mubr.bf16.gmra.mrb[0].mxu0 %v3809
      %v4190 = vpop.f32.mrb[0].mxu0
      %v4191 = vadd.f32 0.0, %v4190
      %v4192 = vpop.f32.mrb[0].mxu0
      %v4193 = vpop.f32.mrb[0].mxu0
      %v4194 = vadd.f32 0.0, %v4193
      %v4195 = vpop.f32.mrb[0].mxu0
      %4196 = vmatprep.mubr.bf16.mxu0 0
      %4197 = vmatmul.mubr.bf16.gmra.mrb[0].mxu0 %v3810
      %v4198 = vpop.f32.mrb[0].mxu0
      %v4199 = vadd.f32 0.0, %v4198
      %v4200 = vpop.f32.mrb[0].mxu0
      %v4201 = vpop.f32.mrb[0].mxu0
      %v4202 = vadd.f32 0.0, %v4201
      %v4203 = vpop.f32.mrb[0].mxu0
      %4204 = vmatprep.mubr.bf16.mxu0 0
      %4205 = vmatmul.mubr.bf16.gmra.mrb[0].mxu0 %v3811
      %v4206 = vpop.f32.mrb[0].mxu0
      %v4207 = vadd.f32 0.0, %v4206
      %v4208 = vpop.f32.mrb[0].mxu0
      %v4209 = vpop.f32.mrb[0].mxu0
      %v4210 = vadd.f32 0.0, %v4209
      %v4211 = vpop.f32.mrb[0].mxu0
      %4212 = vmatprep.mubr.bf16.mxu0 0
      %4213 = vmatmul.mubr.bf16.gmra.mrb[0].mxu0 %v3812
      %v4214 = vpop.f32.mrb[0].mxu0
      %v4215 = vadd.f32 0.0, %v4214
      %v4216 = vpop.f32.mrb[0].mxu0
      %v4217 = vpop.f32.mrb[0].mxu0
      %v4218 = vadd.f32 0.0, %v4217
      %v4219 = vpop.f32.mrb[0].mxu0
      %4220 = vmatprep.mubr.bf16.mxu0 0
      %4221 = vmatmul.mubr.bf16.gmra.mrb[0].mxu0 %v3813
      %v4222 = vpop.f32.mrb[0].mxu0
      %v4223 = vadd.f32 0.0, %v4222
      %v4224 = vpop.f32.mrb[0].mxu0
      %v4225 = vpop.f32.mrb[0].mxu0
      %v4226 = vadd.f32 0.0, %v4225
      %v4227 = vpop.f32.mrb[0].mxu0
      %4228 = vmatprep.mubr.bf16.mxu0 0
      %4229 = vmatmul.mubr.bf16.gmra.mrb[0].mxu0 %v3814
      %v4230 = vpop.f32.mrb[0].mxu0
      %v4231 = vadd.f32 0.0, %v4230
      %v4232 = vpop.f32.mrb[0].mxu0
      %v4233 = vpop.f32.mrb[0].mxu0
      %v4234 = vadd.f32 0.0, %v4233
      %v4235 = vpop.f32.mrb[0].mxu0
      %4236 = vmatprep.mubr.bf16.mxu0 0
      %4237 = vmatmul.mubr.bf16.gmra.mrb[0].mxu0 %v3815
      %v4238 = vpop.f32.mrb[0].mxu0
      %v4239 = vadd.f32 0.0, %v4238
      %v4240 = vpop.f32.mrb[0].mxu0
      %v4241 = vpop.f32.mrb[0].mxu0
      %v4242 = vadd.f32 0.0, %v4241
      %v4243 = vpop.f32.mrb[0].mxu0
      %4244 = vmatprep.mubr.bf16.mxu0 0
      %4245 = vmatmul.mubr.bf16.gmra.mrb[0].mxu0 %v3816
      %v4246 = vpop.f32.mrb[0].mxu0
      %v4247 = vadd.f32 0.0, %v4246
      %v4248 = vpop.f32.mrb[0].mxu0
      %v4249 = vpop.f32.mrb[0].mxu0
      %v4250 = vadd.f32 0.0, %v4249
      %v4251 = vpop.f32.mrb[0].mxu0
      %4252 = vmatprep.mubr.bf16.mxu0 0
      %4253 = vmatmul.mubr.bf16.gmra.mrb[0].mxu0 %v3817
      %v4254 = vpop.f32.mrb[0].mxu0
      %v4255 = vadd.f32 0.0, %v4254
      %v4256 = vpop.f32.mrb[0].mxu0
      %v4257 = vpop.f32.mrb[0].mxu0
      %v4258 = vadd.f32 0.0, %v4257
      %v4259 = vpop.f32.mrb[0].mxu0
      %4260 = vmatprep.mubr.bf16.mxu0 0
      %4261 = vmatmul.mubr.bf16.gmra.mrb[0].mxu0 %v3818
      %v4262 = vpop.f32.mrb[0].mxu0
      %v4263 = vadd.f32 0.0, %v4262
      %v4264 = vpop.f32.mrb[0].mxu0
      %v4265 = vpop.f32.mrb[0].mxu0
      %v4266 = vadd.f32 0.0, %v4265
      %v4267 = vpop.f32.mrb[0].mxu0
      %4268 = vmatprep.mubr.bf16.mxu0 0
      %4269 = vmatmul.mubr.bf16.gmra.mrb[0].mxu0 %v3819
      %v4270 = vpop.f32.mrb[0].mxu0
      %v4271 = vadd.f32 0.0, %v4270
      %v4272 = vpop.f32.mrb[0].mxu0
      %v4273 = vpop.f32.mrb[0].mxu0
      %v4274 = vadd.f32 0.0, %v4273
      %v4275 = vpop.f32.mrb[0].mxu0
      %4276 = vmatprep.mubr.bf16.mxu0 0
      %4277 = vmatmul.mubr.bf16.gmra.mrb[0].mxu0 %v3820
      %v4278 = vpop.f32.mrb[0].mxu0
      %v4279 = vadd.f32 0.0, %v4278
      %v4280 = vpop.f32.mrb[0].mxu0
      %v4281 = vpop.f32.mrb[0].mxu0
      %v4282 = vadd.f32 0.0, %v4281
      %v4283 = vpop.f32.mrb[0].mxu0
      %4284 = vmatprep.mubr.bf16.mxu0 0
      %4285 = vmatmul.mubr.bf16.gmra.mrb[0].mxu0 %v3821
      %v4286 = vpop.f32.mrb[0].mxu0
      %v4287 = vadd.f32 0.0, %v4286
      %v4288 = vpop.f32.mrb[0].mxu0
      %v4289 = vpop.f32.mrb[0].mxu0
      %v4290 = vadd.f32 0.0, %v4289
      %v4291 = vpop.f32.mrb[0].mxu0
      %4292 = vmatprep.mubr.bf16.mxu0 0
      %4293 = vmatmul.mubr.bf16.gmra.mrb[0].mxu0 %v3822
      %v4294 = vpop.f32.mrb[0].mxu0
      %v4295 = vadd.f32 0.0, %v4294
      %v4296 = vpop.f32.mrb[0].mxu0
      %v4297 = vpop.f32.mrb[0].mxu0
      %v4298 = vadd.f32 0.0, %v4297
      %v4299 = vpop.f32.mrb[0].mxu0
      %4300 = vmatprep.mubr.bf16.mxu0 0
      %4301 = vmatmul.mubr.bf16.gmra.mrb[0].mxu0 %v3823
      %v4302 = vpop.f32.mrb[0].mxu0
      %v4303 = vadd.f32 0.0, %v4302
      %v4304 = vpop.f32.mrb[0].mxu0
      %v4305 = vpop.f32.mrb[0].mxu0
      %v4306 = vadd.f32 0.0, %v4305
      %v4307 = vpop.f32.mrb[0].mxu0
      %4308 = vdwg.mxu0
      %v4309 = vadd.f32 %v4051, %v4183
      %v4310 = vadd.f32 %v4052, %v4186
      %v4311 = vadd.f32 %v4053, %v4191
      %v4312 = vadd.f32 %v4054, %v4194
      %v4313 = vadd.f32 %v4055, %v4199
      %v4314 = vadd.f32 %v4056, %v4202
      %v4315 = vadd.f32 %v4057, %v4207
      %v4316 = vadd.f32 %v4058, %v4210
      %v4317 = vadd.f32 %v4059, %v4215
      %v4318 = vadd.f32 %v4060, %v4218
      %v4319 = vadd.f32 %v4061, %v4223
      %v4320 = vadd.f32 %v4062, %v4226
      %v4321 = vadd.f32 %v4063, %v4231
      %v4322 = vadd.f32 %v4064, %v4234
      %v4323 = vadd.f32 %v4065, %v4239
      %v4324 = vadd.f32 %v4066, %v4242
      %v4325 = vadd.f32 %v4067, %v4247
      %v4326 = vadd.f32 %v4068, %v4250
      %v4327 = vadd.f32 %v4069, %v4255
      %v4328 = vadd.f32 %v4070, %v4258
      %v4329 = vadd.f32 %v4071, %v4263
      %v4330 = vadd.f32 %v4072, %v4266
      %v4331 = vadd.f32 %v4073, %v4271
      %v4332 = vadd.f32 %v4074, %v4274
      %v4333 = vadd.f32 %v4075, %v4279
      %v4334 = vadd.f32 %v4076, %v4282
      %v4335 = vadd.f32 %v4077, %v4287
      %v4336 = vadd.f32 %v4078, %v4290
      %v4337 = vadd.f32 %v4079, %v4295
      %v4338 = vadd.f32 %v4080, %v4298
      %v4339 = vadd.f32 %v4081, %v4303
      %v4340 = vadd.f32 %v4082, %v4306
      %s4341 = scalar_lea.vmem %s3, 448
      %v4342 = vld [vmem:[%s4341] sm:$0xf]
      %v4343 = vld [vmem:[%s4341 + $0x4] sm:$0xf]
      %v4344 = vld [vmem:[%s4341 + $0x8] sm:$0xf]
      %v4345 = vld [vmem:[%s4341 + $0xc] sm:$0xf]
      %v4346 = vld [vmem:[%s4341 + $0x10] sm:$0xf]
      %v4347 = vld [vmem:[%s4341 + $0x14] sm:$0xf]
      %v4348 = vld [vmem:[%s4341 + $0x18] sm:$0xf]
      %v4349 = vld [vmem:[%s4341 + $0x1c] sm:$0xf]
      %v4350 = vld [vmem:[%s4341 + $0x20] sm:$0xf]
      %v4351 = vld [vmem:[%s4341 + $0x24] sm:$0xf]
      %v4352 = vld [vmem:[%s4341 + $0x28] sm:$0xf]
      %v4353 = vld [vmem:[%s4341 + $0x2c] sm:$0xf]
      %v4354 = vld [vmem:[%s4341 + $0x30] sm:$0xf]
      %v4355 = vld [vmem:[%s4341 + $0x34] sm:$0xf]
      %v4356 = vld [vmem:[%s4341 + $0x38] sm:$0xf]
      %v4357 = vld [vmem:[%s4341 + $0x3c] sm:$0xf]
      %v4374 = vunpack.c.l.b16 %v4342
      %v4375 = vunpack.c.l.b16 %v4343
      %v4376 = vunpack.c.l.b16 %v4344
      %v4377 = vunpack.c.l.b16 %v4345
      %v4378 = vunpack.c.l.b16 %v4346
      %v4379 = vunpack.c.l.b16 %v4347
      %v4380 = vunpack.c.l.b16 %v4348
      %v4381 = vunpack.c.l.b16 %v4349
      %v4382 = vunpack.c.l.b16 %v4350
      %v4383 = vunpack.c.l.b16 %v4351
      %v4384 = vunpack.c.l.b16 %v4352
      %v4385 = vunpack.c.l.b16 %v4353
      %v4386 = vunpack.c.l.b16 %v4354
      %v4387 = vunpack.c.l.b16 %v4355
      %v4388 = vunpack.c.l.b16 %v4356
      %v4389 = vunpack.c.l.b16 %v4357
      %v4390 = vpack.c.b16 %v4375, %v4374
      %v4391 = vpack.c.b16 %v4377, %v4376
      %v4392 = vpack.c.b16 %v4379, %v4378
      %v4393 = vpack.c.b16 %v4381, %v4380
      %v4394 = vpack.c.b16 %v4383, %v4382
      %v4395 = vpack.c.b16 %v4385, %v4384
      %v4396 = vpack.c.b16 %v4387, %v4386
      %v4397 = vpack.c.b16 %v4389, %v4388
      %4406 = vmatprep.subr.bf16.mxu0 0
      %4407 = vmatpush1.bf16.msra.mxu0 %v4390
      %4408 = vmatprep.subr.bf16.mxu0 0
      %4409 = vmatpush1.bf16.msra.mxu0 %v4391
      %4410 = vmatprep.subr.bf16.mxu0 0
      %4411 = vmatpush1.bf16.msra.mxu0 %v4392
      %4412 = vmatprep.subr.bf16.mxu0 0
      %4413 = vmatpush1.bf16.msra.mxu0 %v4393
      %4414 = vmatprep.subr.bf16.mxu0 0
      %4415 = vmatpush1.bf16.msra.mxu0 %v4394
      %4416 = vmatprep.subr.bf16.mxu0 0
      %4417 = vmatpush1.bf16.msra.mxu0 %v4395
      %4418 = vmatprep.subr.bf16.mxu0 0
      %4419 = vmatpush1.bf16.msra.mxu0 %v4396
      %4420 = vmatprep.subr.bf16.mxu0 0
      %4421 = vmatpush1.bf16.msra.mxu0 %v4397
      %4422 = vmatprep.subr.bf16.mxu0 0
      %4423 = vmatpush1.bf16.msra.mxu0 0
      %4424 = vmatprep.subr.bf16.mxu0 0
      %4425 = vmatpush1.bf16.msra.mxu0 0
      %4426 = vmatprep.subr.bf16.mxu0 0
      %4427 = vmatpush1.bf16.msra.mxu0 0
      %4428 = vmatprep.subr.bf16.mxu0 0
      %4429 = vmatpush1.bf16.msra.mxu0 0
      %4430 = vmatprep.subr.bf16.mxu0 0
      %4431 = vmatpush1.bf16.msra.mxu0 0
      %4432 = vmatprep.subr.bf16.mxu0 0
      %4433 = vmatpush1.bf16.msra.mxu0 0
      %4434 = vmatprep.subr.bf16.mxu0 0
      %4435 = vmatpush1.bf16.msra.mxu0 0
      %4436 = vmatprep.subr.bf16.mxu0 0
      %4437 = vmatpush1.bf16.msra.mxu0 0
      %4438 = vmatprep.mubr.bf16.mxu0 0
      %4439 = vmatmul.mubr.bf16.gmra.mrb[0].mxu0 %v3809
      %v4440 = vpop.f32.mrb[0].mxu0
      %v4441 = vadd.f32 0.0, %v4440
      %v4442 = vpop.f32.mrb[0].mxu0
      %v4443 = vpop.f32.mrb[0].mxu0
      %v4444 = vadd.f32 0.0, %v4443
      %v4445 = vpop.f32.mrb[0].mxu0
      %4446 = vmatprep.mubr.bf16.mxu0 0
      %4447 = vmatmul.mubr.bf16.gmra.mrb[0].mxu0 %v3810
      %v4448 = vpop.f32.mrb[0].mxu0
      %v4449 = vadd.f32 0.0, %v4448
      %v4450 = vpop.f32.mrb[0].mxu0
      %v4451 = vpop.f32.mrb[0].mxu0
      %v4452 = vadd.f32 0.0, %v4451
      %v4453 = vpop.f32.mrb[0].mxu0
      %4454 = vmatprep.mubr.bf16.mxu0 0
      %4455 = vmatmul.mubr.bf16.gmra.mrb[0].mxu0 %v3811
      %v4456 = vpop.f32.mrb[0].mxu0
      %v4457 = vadd.f32 0.0, %v4456
      %v4458 = vpop.f32.mrb[0].mxu0
      %v4459 = vpop.f32.mrb[0].mxu0
      %v4460 = vadd.f32 0.0, %v4459
      %v4461 = vpop.f32.mrb[0].mxu0
      %4462 = vmatprep.mubr.bf16.mxu0 0
      %4463 = vmatmul.mubr.bf16.gmra.mrb[0].mxu0 %v3812
      %v4464 = vpop.f32.mrb[0].mxu0
      %v4465 = vadd.f32 0.0, %v4464
      %v4466 = vpop.f32.mrb[0].mxu0
      %v4467 = vpop.f32.mrb[0].mxu0
      %v4468 = vadd.f32 0.0, %v4467
      %v4469 = vpop.f32.mrb[0].mxu0
      %4470 = vmatprep.mubr.bf16.mxu0 0
      %4471 = vmatmul.mubr.bf16.gmra.mrb[0].mxu0 %v3813
      %v4472 = vpop.f32.mrb[0].mxu0
      %v4473 = vadd.f32 0.0, %v4472
      %v4474 = vpop.f32.mrb[0].mxu0
      %v4475 = vpop.f32.mrb[0].mxu0
      %v4476 = vadd.f32 0.0, %v4475
      %v4477 = vpop.f32.mrb[0].mxu0
      %4478 = vmatprep.mubr.bf16.mxu0 0
      %4479 = vmatmul.mubr.bf16.gmra.mrb[0].mxu0 %v3814
      %v4480 = vpop.f32.mrb[0].mxu0
      %v4481 = vadd.f32 0.0, %v4480
      %v4482 = vpop.f32.mrb[0].mxu0
      %v4483 = vpop.f32.mrb[0].mxu0
      %v4484 = vadd.f32 0.0, %v4483
      %v4485 = vpop.f32.mrb[0].mxu0
      %4486 = vmatprep.mubr.bf16.mxu0 0
      %4487 = vmatmul.mubr.bf16.gmra.mrb[0].mxu0 %v3815
      %v4488 = vpop.f32.mrb[0].mxu0
      %v4489 = vadd.f32 0.0, %v4488
      %v4490 = vpop.f32.mrb[0].mxu0
      %v4491 = vpop.f32.mrb[0].mxu0
      %v4492 = vadd.f32 0.0, %v4491
      %v4493 = vpop.f32.mrb[0].mxu0
      %4494 = vmatprep.mubr.bf16.mxu0 0
      %4495 = vmatmul.mubr.bf16.gmra.mrb[0].mxu0 %v3816
      %v4496 = vpop.f32.mrb[0].mxu0
      %v4497 = vadd.f32 0.0, %v4496
      %v4498 = vpop.f32.mrb[0].mxu0
      %v4499 = vpop.f32.mrb[0].mxu0
      %v4500 = vadd.f32 0.0, %v4499
      %v4501 = vpop.f32.mrb[0].mxu0
      %4502 = vmatprep.mubr.bf16.mxu0 0
      %4503 = vmatmul.mubr.bf16.gmra.mrb[0].mxu0 %v3817
      %v4504 = vpop.f32.mrb[0].mxu0
      %v4505 = vadd.f32 0.0, %v4504
      %v4506 = vpop.f32.mrb[0].mxu0
      %v4507 = vpop.f32.mrb[0].mxu0
      %v4508 = vadd.f32 0.0, %v4507
      %v4509 = vpop.f32.mrb[0].mxu0
      %4510 = vmatprep.mubr.bf16.mxu0 0
      %4511 = vmatmul.mubr.bf16.gmra.mrb[0].mxu0 %v3818
      %v4512 = vpop.f32.mrb[0].mxu0
      %v4513 = vadd.f32 0.0, %v4512
      %v4514 = vpop.f32.mrb[0].mxu0
      %v4515 = vpop.f32.mrb[0].mxu0
      %v4516 = vadd.f32 0.0, %v4515
      %v4517 = vpop.f32.mrb[0].mxu0
      %4518 = vmatprep.mubr.bf16.mxu0 0
      %4519 = vmatmul.mubr.bf16.gmra.mrb[0].mxu0 %v3819
      %v4520 = vpop.f32.mrb[0].mxu0
      %v4521 = vadd.f32 0.0, %v4520
      %v4522 = vpop.f32.mrb[0].mxu0
      %v4523 = vpop.f32.mrb[0].mxu0
      %v4524 = vadd.f32 0.0, %v4523
      %v4525 = vpop.f32.mrb[0].mxu0
      %4526 = vmatprep.mubr.bf16.mxu0 0
      %4527 = vmatmul.mubr.bf16.gmra.mrb[0].mxu0 %v3820
      %v4528 = vpop.f32.mrb[0].mxu0
      %v4529 = vadd.f32 0.0, %v4528
      %v4530 = vpop.f32.mrb[0].mxu0
      %v4531 = vpop.f32.mrb[0].mxu0
      %v4532 = vadd.f32 0.0, %v4531
      %v4533 = vpop.f32.mrb[0].mxu0
      %4534 = vmatprep.mubr.bf16.mxu0 0
      %4535 = vmatmul.mubr.bf16.gmra.mrb[0].mxu0 %v3821
      %v4536 = vpop.f32.mrb[0].mxu0
      %v4537 = vadd.f32 0.0, %v4536
      %v4538 = vpop.f32.mrb[0].mxu0
      %v4539 = vpop.f32.mrb[0].mxu0
      %v4540 = vadd.f32 0.0, %v4539
      %v4541 = vpop.f32.mrb[0].mxu0
      %4542 = vmatprep.mubr.bf16.mxu0 0
      %4543 = vmatmul.mubr.bf16.gmra.mrb[0].mxu0 %v3822
      %v4544 = vpop.f32.mrb[0].mxu0
      %v4545 = vadd.f32 0.0, %v4544
      %v4546 = vpop.f32.mrb[0].mxu0
      %v4547 = vpop.f32.mrb[0].mxu0
      %v4548 = vadd.f32 0.0, %v4547
      %v4549 = vpop.f32.mrb[0].mxu0
      %4550 = vmatprep.mubr.bf16.mxu0 0
      %4551 = vmatmul.mubr.bf16.gmra.mrb[0].mxu0 %v3823
      %v4552 = vpop.f32.mrb[0].mxu0
      %v4553 = vadd.f32 0.0, %v4552
      %v4554 = vpop.f32.mrb[0].mxu0
      %v4555 = vpop.f32.mrb[0].mxu0
      %v4556 = vadd.f32 0.0, %v4555
      %v4557 = vpop.f32.mrb[0].mxu0
      %4558 = vmatprep.mubr.bf16.mxu0 0
      %4559 = vmatmul.mubr.bf16.gmra.mrb[0].mxu0 %v3824
      %v4560 = vpop.f32.mrb[0].mxu0
      %v4561 = vadd.f32 0.0, %v4560
      %v4562 = vpop.f32.mrb[0].mxu0
      %v4563 = vpop.f32.mrb[0].mxu0
      %v4564 = vadd.f32 0.0, %v4563
      %v4565 = vpop.f32.mrb[0].mxu0
      %4566 = vdwg.mxu0
      %v4567 = vadd.f32 %v4309, %v4441
      %v4568 = vadd.f32 %v4310, %v4444
      %v4569 = vadd.f32 %v4311, %v4449
      %v4570 = vadd.f32 %v4312, %v4452
      %v4571 = vadd.f32 %v4313, %v4457
      %v4572 = vadd.f32 %v4314, %v4460
      %v4573 = vadd.f32 %v4315, %v4465
      %v4574 = vadd.f32 %v4316, %v4468
      %v4575 = vadd.f32 %v4317, %v4473
      %v4576 = vadd.f32 %v4318, %v4476
      %v4577 = vadd.f32 %v4319, %v4481
      %v4578 = vadd.f32 %v4320, %v4484
      %v4579 = vadd.f32 %v4321, %v4489
      %v4580 = vadd.f32 %v4322, %v4492
      %v4581 = vadd.f32 %v4323, %v4497
      %v4582 = vadd.f32 %v4324, %v4500
      %v4583 = vadd.f32 %v4325, %v4505
      %v4584 = vadd.f32 %v4326, %v4508
      %v4585 = vadd.f32 %v4327, %v4513
      %v4586 = vadd.f32 %v4328, %v4516
      %v4587 = vadd.f32 %v4329, %v4521
      %v4588 = vadd.f32 %v4330, %v4524
      %v4589 = vadd.f32 %v4331, %v4529
      %v4590 = vadd.f32 %v4332, %v4532
      %v4591 = vadd.f32 %v4333, %v4537
      %v4592 = vadd.f32 %v4334, %v4540
      %v4593 = vadd.f32 %v4335, %v4545
      %v4594 = vadd.f32 %v4336, %v4548
      %v4595 = vadd.f32 %v4337, %v4553
      %v4596 = vadd.f32 %v4338, %v4556
      %v4597 = vadd.f32 %v4339, %v4561
      %v4598 = vadd.f32 %v4340, %v4564
      %v4599 = vld [vmem:[#allocation3 + $0x2] sm:$0xff]
      %v4600 = vld [vmem:[#allocation3 + $0xa] sm:$0xff]
      %v4601 = vld [vmem:[#allocation3 + $0x1a] sm:$0xff]
      %v4602 = vld [vmem:[#allocation3 + $0x22] sm:$0xff]
      %v4603 = vld [vmem:[#allocation3 + $0x32] sm:$0xff]
      %v4604 = vld [vmem:[#allocation3 + $0x3a] sm:$0xff]
      %v4605 = vld [vmem:[#allocation3 + $0x4a] sm:$0xff]
      %v4606 = vld [vmem:[#allocation3 + $0x52] sm:$0xff]
      %v4607 = vld [vmem:[#allocation3 + $0x62] sm:$0xff]
      %v4608 = vld [vmem:[#allocation3 + $0x6a] sm:$0xff]
      %v4609 = vld [vmem:[#allocation3 + $0x7a] sm:$0xff]
      %v4610 = vld [vmem:[#allocation3 + $0x82] sm:$0xff]
      %v4611 = vld [vmem:[#allocation3 + $0x92] sm:$0xff]
      %v4612 = vld [vmem:[#allocation3 + $0x9a] sm:$0xff]
      %v4613 = vld [vmem:[#allocation3 + $0xaa] sm:$0xff]
      %v4614 = vld [vmem:[#allocation3 + $0xb2] sm:$0xff]
      %v4615 = vld [vmem:[#allocation3 + $0xc2] sm:$0xff]
      %v4616 = vld [vmem:[#allocation3 + $0xca] sm:$0xff]
      %v4617 = vld [vmem:[#allocation3 + $0xda] sm:$0xff]
      %v4618 = vld [vmem:[#allocation3 + $0xe2] sm:$0xff]
      %v4619 = vld [vmem:[#allocation3 + $0xf2] sm:$0xff]
      %v4620 = vld [vmem:[#allocation3 + $0xfa] sm:$0xff]
      %v4621 = vld [vmem:[#allocation3 + $0x10a] sm:$0xff]
      %v4622 = vld [vmem:[#allocation3 + $0x112] sm:$0xff]
      %v4623 = vld [vmem:[#allocation3 + $0x122] sm:$0xff]
      %v4624 = vld [vmem:[#allocation3 + $0x12a] sm:$0xff]
      %v4625 = vld [vmem:[#allocation3 + $0x13a] sm:$0xff]
      %v4626 = vld [vmem:[#allocation3 + $0x142] sm:$0xff]
      %v4627 = vld [vmem:[#allocation3 + $0x152] sm:$0xff]
      %v4628 = vld [vmem:[#allocation3 + $0x15a] sm:$0xff]
      %v4629 = vld [vmem:[#allocation3 + $0x16a] sm:$0xff]
      %v4630 = vld [vmem:[#allocation3 + $0x172] sm:$0xff]
      %v4631 = vld [vmem:[#allocation3 + $0x182] sm:$0xff]
      %v4632 = vld [vmem:[#allocation3 + $0x18a] sm:$0xff]
      %v4633 = vld [vmem:[#allocation3 + $0x19a] sm:$0xff]
      %v4634 = vld [vmem:[#allocation3 + $0x1a2] sm:$0xff]
      %v4635 = vpack.c.bf16 %v4600, %v4599
      %v4636 = vpack.c.bf16 %v4602, %v4601
      %v4637 = vpack.c.bf16 %v4604, %v4603
      %v4638 = vpack.c.bf16 %v4606, %v4605
      %v4639 = vpack.c.bf16 %v4608, %v4607
      %v4640 = vpack.c.bf16 %v4610, %v4609
      %v4641 = vpack.c.bf16 %v4612, %v4611
      %v4642 = vpack.c.bf16 %v4614, %v4613
      %v4643 = vpack.c.bf16 %v4616, %v4615
      %v4644 = vpack.c.bf16 %v4618, %v4617
      %v4645 = vpack.c.bf16 %v4620, %v4619
      %v4646 = vpack.c.bf16 %v4622, %v4621
      %v4647 = vpack.c.bf16 %v4624, %v4623
      %v4648 = vpack.c.bf16 %v4626, %v4625
      %v4649 = vpack.c.bf16 %v4628, %v4627
      %v4650 = vpack.c.bf16 %v4630, %v4629
      %v4651 = vpack.c.bf16 %v4632, %v4631
      %v4652 = vpack.c.bf16 %v4634, %v4633
      %s4653 = scalar_lea.vmem %s3, 128
      %v4654 = vld [vmem:[%s4653] sm:$0xf]
      %v4655 = vld [vmem:[%s4653 + $0x4] sm:$0xf]
      %v4656 = vld [vmem:[%s4653 + $0x8] sm:$0xf]
      %v4657 = vld [vmem:[%s4653 + $0xc] sm:$0xf]
      %v4658 = vld [vmem:[%s4653 + $0x10] sm:$0xf]
      %v4659 = vld [vmem:[%s4653 + $0x14] sm:$0xf]
      %v4660 = vld [vmem:[%s4653 + $0x18] sm:$0xf]
      %v4661 = vld [vmem:[%s4653 + $0x1c] sm:$0xf]
      %v4662 = vld [vmem:[%s4653 + $0x20] sm:$0xf]
      %v4663 = vld [vmem:[%s4653 + $0x24] sm:$0xf]
      %v4664 = vld [vmem:[%s4653 + $0x28] sm:$0xf]
      %v4665 = vld [vmem:[%s4653 + $0x2c] sm:$0xf]
      %v4666 = vld [vmem:[%s4653 + $0x30] sm:$0xf]
      %v4667 = vld [vmem:[%s4653 + $0x34] sm:$0xf]
      %v4668 = vld [vmem:[%s4653 + $0x38] sm:$0xf]
      %v4669 = vld [vmem:[%s4653 + $0x3c] sm:$0xf]
      %v4686 = vunpack.c.l.b16 %v4654
      %v4687 = vunpack.c.l.b16 %v4655
      %v4688 = vunpack.c.l.b16 %v4656
      %v4689 = vunpack.c.l.b16 %v4657
      %v4690 = vunpack.c.l.b16 %v4658
      %v4691 = vunpack.c.l.b16 %v4659
      %v4692 = vunpack.c.l.b16 %v4660
      %v4693 = vunpack.c.l.b16 %v4661
      %v4694 = vunpack.c.l.b16 %v4662
      %v4695 = vunpack.c.l.b16 %v4663
      %v4696 = vunpack.c.l.b16 %v4664
      %v4697 = vunpack.c.l.b16 %v4665
      %v4698 = vunpack.c.l.b16 %v4666
      %v4699 = vunpack.c.l.b16 %v4667
      %v4700 = vunpack.c.l.b16 %v4668
      %v4701 = vunpack.c.l.b16 %v4669
      %v4702 = vpack.c.b16 %v4687, %v4686
      %v4703 = vpack.c.b16 %v4689, %v4688
      %v4704 = vpack.c.b16 %v4691, %v4690
      %v4705 = vpack.c.b16 %v4693, %v4692
      %v4706 = vpack.c.b16 %v4695, %v4694
      %v4707 = vpack.c.b16 %v4697, %v4696
      %v4708 = vpack.c.b16 %v4699, %v4698
      %v4709 = vpack.c.b16 %v4701, %v4700
      %4718 = vmatprep.subr.bf16.mxu0 0
      %4719 = vmatpush1.bf16.msra.mxu0 %v4702
      %4720 = vmatprep.subr.bf16.mxu0 0
      %4721 = vmatpush1.bf16.msra.mxu0 %v4703
      %4722 = vmatprep.subr.bf16.mxu0 0
      %4723 = vmatpush1.bf16.msra.mxu0 %v4704
      %4724 = vmatprep.subr.bf16.mxu0 0
      %4725 = vmatpush1.bf16.msra.mxu0 %v4705
      %4726 = vmatprep.subr.bf16.mxu0 0
      %4727 = vmatpush1.bf16.msra.mxu0 %v4706
      %4728 = vmatprep.subr.bf16.mxu0 0
      %4729 = vmatpush1.bf16.msra.mxu0 %v4707
      %4730 = vmatprep.subr.bf16.mxu0 0
      %4731 = vmatpush1.bf16.msra.mxu0 %v4708
      %4732 = vmatprep.subr.bf16.mxu0 0
      %4733 = vmatpush1.bf16.msra.mxu0 %v4709
      %4734 = vmatprep.subr.bf16.mxu0 0
      %4735 = vmatpush1.bf16.msra.mxu0 0
      %4736 = vmatprep.subr.bf16.mxu0 0
      %4737 = vmatpush1.bf16.msra.mxu0 0
      %4738 = vmatprep.subr.bf16.mxu0 0
      %4739 = vmatpush1.bf16.msra.mxu0 0
      %4740 = vmatprep.subr.bf16.mxu0 0
      %4741 = vmatpush1.bf16.msra.mxu0 0
      %4742 = vmatprep.subr.bf16.mxu0 0
      %4743 = vmatpush1.bf16.msra.mxu0 0
      %4744 = vmatprep.subr.bf16.mxu0 0
      %4745 = vmatpush1.bf16.msra.mxu0 0
      %4746 = vmatprep.subr.bf16.mxu0 0
      %4747 = vmatpush1.bf16.msra.mxu0 0
      %4748 = vmatprep.subr.bf16.mxu0 0
      %4749 = vmatpush1.bf16.msra.mxu0 0
      %4750 = vmatprep.mubr.bf16.mxu0 0
      %4751 = vmatmul.mubr.bf16.gmra.mrb[0].mxu0 %v4635
      %v4752 = vpop.f32.mrb[0].mxu0
      %v4753 = vadd.f32 0.0, %v4752
      %v4754 = vpop.f32.mrb[0].mxu0
      %v4755 = vpop.f32.mrb[0].mxu0
      %v4756 = vadd.f32 0.0, %v4755
      %v4757 = vpop.f32.mrb[0].mxu0
      %4758 = vmatprep.mubr.bf16.mxu0 0
      %4759 = vmatmul.mubr.bf16.gmra.mrb[0].mxu0 %v4636
      %v4760 = vpop.f32.mrb[0].mxu0
      %v4761 = vadd.f32 0.0, %v4760
      %v4762 = vpop.f32.mrb[0].mxu0
      %v4763 = vpop.f32.mrb[0].mxu0
      %v4764 = vadd.f32 0.0, %v4763
      %v4765 = vpop.f32.mrb[0].mxu0
      %4766 = vmatprep.mubr.bf16.mxu0 0
      %4767 = vmatmul.mubr.bf16.gmra.mrb[0].mxu0 %v4637
      %v4768 = vpop.f32.mrb[0].mxu0
      %v4769 = vadd.f32 0.0, %v4768
      %v4770 = vpop.f32.mrb[0].mxu0
      %v4771 = vpop.f32.mrb[0].mxu0
      %v4772 = vadd.f32 0.0, %v4771
      %v4773 = vpop.f32.mrb[0].mxu0
      %4774 = vmatprep.mubr.bf16.mxu0 0
      %4775 = vmatmul.mubr.bf16.gmra.mrb[0].mxu0 %v4638
      %v4776 = vpop.f32.mrb[0].mxu0
      %v4777 = vadd.f32 0.0, %v4776
      %v4778 = vpop.f32.mrb[0].mxu0
      %v4779 = vpop.f32.mrb[0].mxu0
      %v4780 = vadd.f32 0.0, %v4779
      %v4781 = vpop.f32.mrb[0].mxu0
      %4782 = vmatprep.mubr.bf16.mxu0 0
      %4783 = vmatmul.mubr.bf16.gmra.mrb[0].mxu0 %v4639
      %v4784 = vpop.f32.mrb[0].mxu0
      %v4785 = vadd.f32 0.0, %v4784
      %v4786 = vpop.f32.mrb[0].mxu0
      %v4787 = vpop.f32.mrb[0].mxu0
      %v4788 = vadd.f32 0.0, %v4787
      %v4789 = vpop.f32.mrb[0].mxu0
      %4790 = vmatprep.mubr.bf16.mxu0 0
      %4791 = vmatmul.mubr.bf16.gmra.mrb[0].mxu0 %v4640
      %v4792 = vpop.f32.mrb[0].mxu0
      %v4793 = vadd.f32 0.0, %v4792
      %v4794 = vpop.f32.mrb[0].mxu0
      %v4795 = vpop.f32.mrb[0].mxu0
      %v4796 = vadd.f32 0.0, %v4795
      %v4797 = vpop.f32.mrb[0].mxu0
      %4798 = vmatprep.mubr.bf16.mxu0 0
      %4799 = vmatmul.mubr.bf16.gmra.mrb[0].mxu0 %v4641
      %v4800 = vpop.f32.mrb[0].mxu0
      %v4801 = vadd.f32 0.0, %v4800
      %v4802 = vpop.f32.mrb[0].mxu0
      %v4803 = vpop.f32.mrb[0].mxu0
      %v4804 = vadd.f32 0.0, %v4803
      %v4805 = vpop.f32.mrb[0].mxu0
      %4806 = vmatprep.mubr.bf16.mxu0 0
      %4807 = vmatmul.mubr.bf16.gmra.mrb[0].mxu0 %v4642
      %v4808 = vpop.f32.mrb[0].mxu0
      %v4809 = vadd.f32 0.0, %v4808
      %v4810 = vpop.f32.mrb[0].mxu0
      %v4811 = vpop.f32.mrb[0].mxu0
      %v4812 = vadd.f32 0.0, %v4811
      %v4813 = vpop.f32.mrb[0].mxu0
      %4814 = vmatprep.mubr.bf16.mxu0 0
      %4815 = vmatmul.mubr.bf16.gmra.mrb[0].mxu0 %v4643
      %v4816 = vpop.f32.mrb[0].mxu0
      %v4817 = vadd.f32 0.0, %v4816
      %v4818 = vpop.f32.mrb[0].mxu0
      %v4819 = vpop.f32.mrb[0].mxu0
      %v4820 = vadd.f32 0.0, %v4819
      %v4821 = vpop.f32.mrb[0].mxu0
      %4822 = vmatprep.mubr.bf16.mxu0 0
      %4823 = vmatmul.mubr.bf16.gmra.mrb[0].mxu0 %v4644
      %v4824 = vpop.f32.mrb[0].mxu0
      %v4825 = vadd.f32 0.0, %v4824
      %v4826 = vpop.f32.mrb[0].mxu0
      %v4827 = vpop.f32.mrb[0].mxu0
      %v4828 = vadd.f32 0.0, %v4827
      %v4829 = vpop.f32.mrb[0].mxu0
      %4830 = vmatprep.mubr.bf16.mxu0 0
      %4831 = vmatmul.mubr.bf16.gmra.mrb[0].mxu0 %v4645
      %v4832 = vpop.f32.mrb[0].mxu0
      %v4833 = vadd.f32 0.0, %v4832
      %v4834 = vpop.f32.mrb[0].mxu0
      %v4835 = vpop.f32.mrb[0].mxu0
      %v4836 = vadd.f32 0.0, %v4835
      %v4837 = vpop.f32.mrb[0].mxu0
      %4838 = vmatprep.mubr.bf16.mxu0 0
      %4839 = vmatmul.mubr.bf16.gmra.mrb[0].mxu0 %v4646
      %v4840 = vpop.f32.mrb[0].mxu0
      %v4841 = vadd.f32 0.0, %v4840
      %v4842 = vpop.f32.mrb[0].mxu0
      %v4843 = vpop.f32.mrb[0].mxu0
      %v4844 = vadd.f32 0.0, %v4843
      %v4845 = vpop.f32.mrb[0].mxu0
      %4846 = vmatprep.mubr.bf16.mxu0 0
      %4847 = vmatmul.mubr.bf16.gmra.mrb[0].mxu0 %v4647
      %v4848 = vpop.f32.mrb[0].mxu0
      %v4849 = vadd.f32 0.0, %v4848
      %v4850 = vpop.f32.mrb[0].mxu0
      %v4851 = vpop.f32.mrb[0].mxu0
      %v4852 = vadd.f32 0.0, %v4851
      %v4853 = vpop.f32.mrb[0].mxu0
      %4854 = vmatprep.mubr.bf16.mxu0 0
      %4855 = vmatmul.mubr.bf16.gmra.mrb[0].mxu0 %v4648
      %v4856 = vpop.f32.mrb[0].mxu0
      %v4857 = vadd.f32 0.0, %v4856
      %v4858 = vpop.f32.mrb[0].mxu0
      %v4859 = vpop.f32.mrb[0].mxu0
      %v4860 = vadd.f32 0.0, %v4859
      %v4861 = vpop.f32.mrb[0].mxu0
      %4862 = vmatprep.mubr.bf16.mxu0 0
      %4863 = vmatmul.mubr.bf16.gmra.mrb[0].mxu0 %v4649
      %v4864 = vpop.f32.mrb[0].mxu0
      %v4865 = vadd.f32 0.0, %v4864
      %v4866 = vpop.f32.mrb[0].mxu0
      %v4867 = vpop.f32.mrb[0].mxu0
      %v4868 = vadd.f32 0.0, %v4867
      %v4869 = vpop.f32.mrb[0].mxu0
      %4870 = vmatprep.mubr.bf16.mxu0 0
      %4871 = vmatmul.mubr.bf16.gmra.mrb[0].mxu0 %v4650
      %v4872 = vpop.f32.mrb[0].mxu0
      %v4873 = vadd.f32 0.0, %v4872
      %v4874 = vpop.f32.mrb[0].mxu0
      %v4875 = vpop.f32.mrb[0].mxu0
      %v4876 = vadd.f32 0.0, %v4875
      %v4877 = vpop.f32.mrb[0].mxu0
      %4878 = vdwg.mxu0
      %v4879 = vadd.f32 %v4567, %v4753
      %v4880 = vadd.f32 %v4568, %v4756
      %v4881 = vadd.f32 %v4569, %v4761
      %v4882 = vadd.f32 %v4570, %v4764
      %v4883 = vadd.f32 %v4571, %v4769
      %v4884 = vadd.f32 %v4572, %v4772
      %v4885 = vadd.f32 %v4573, %v4777
      %v4886 = vadd.f32 %v4574, %v4780
      %v4887 = vadd.f32 %v4575, %v4785
      %v4888 = vadd.f32 %v4576, %v4788
      %v4889 = vadd.f32 %v4577, %v4793
      %v4890 = vadd.f32 %v4578, %v4796
      %v4891 = vadd.f32 %v4579, %v4801
      %v4892 = vadd.f32 %v4580, %v4804
      %v4893 = vadd.f32 %v4581, %v4809
      %v4894 = vadd.f32 %v4582, %v4812
      %v4895 = vadd.f32 %v4583, %v4817
      %v4896 = vadd.f32 %v4584, %v4820
      %v4897 = vadd.f32 %v4585, %v4825
      %v4898 = vadd.f32 %v4586, %v4828
      %v4899 = vadd.f32 %v4587, %v4833
      %v4900 = vadd.f32 %v4588, %v4836
      %v4901 = vadd.f32 %v4589, %v4841
      %v4902 = vadd.f32 %v4590, %v4844
      %v4903 = vadd.f32 %v4591, %v4849
      %v4904 = vadd.f32 %v4592, %v4852
      %v4905 = vadd.f32 %v4593, %v4857
      %v4906 = vadd.f32 %v4594, %v4860
      %v4907 = vadd.f32 %v4595, %v4865
      %v4908 = vadd.f32 %v4596, %v4868
      %v4909 = vadd.f32 %v4597, %v4873
      %v4910 = vadd.f32 %v4598, %v4876
      %s4911 = scalar_lea.vmem %s3, 320
      %v4912 = vld [vmem:[%s4911] sm:$0xf]
      %v4913 = vld [vmem:[%s4911 + $0x4] sm:$0xf]
      %v4914 = vld [vmem:[%s4911 + $0x8] sm:$0xf]
      %v4915 = vld [vmem:[%s4911 + $0xc] sm:$0xf]
      %v4916 = vld [vmem:[%s4911 + $0x10] sm:$0xf]
      %v4917 = vld [vmem:[%s4911 + $0x14] sm:$0xf]
      %v4918 = vld [vmem:[%s4911 + $0x18] sm:$0xf]
      %v4919 = vld [vmem:[%s4911 + $0x1c] sm:$0xf]
      %v4920 = vld [vmem:[%s4911 + $0x20] sm:$0xf]
      %v4921 = vld [vmem:[%s4911 + $0x24] sm:$0xf]
      %v4922 = vld [vmem:[%s4911 + $0x28] sm:$0xf]
      %v4923 = vld [vmem:[%s4911 + $0x2c] sm:$0xf]
      %v4924 = vld [vmem:[%s4911 + $0x30] sm:$0xf]
      %v4925 = vld [vmem:[%s4911 + $0x34] sm:$0xf]
      %v4926 = vld [vmem:[%s4911 + $0x38] sm:$0xf]
      %v4927 = vld [vmem:[%s4911 + $0x3c] sm:$0xf]
      %v4944 = vunpack.c.l.b16 %v4912
      %v4945 = vunpack.c.l.b16 %v4913
      %v4946 = vunpack.c.l.b16 %v4914
      %v4947 = vunpack.c.l.b16 %v4915
      %v4948 = vunpack.c.l.b16 %v4916
      %v4949 = vunpack.c.l.b16 %v4917
      %v4950 = vunpack.c.l.b16 %v4918
      %v4951 = vunpack.c.l.b16 %v4919
      %v4952 = vunpack.c.l.b16 %v4920
      %v4953 = vunpack.c.l.b16 %v4921
      %v4954 = vunpack.c.l.b16 %v4922
      %v4955 = vunpack.c.l.b16 %v4923
      %v4956 = vunpack.c.l.b16 %v4924
      %v4957 = vunpack.c.l.b16 %v4925
      %v4958 = vunpack.c.l.b16 %v4926
      %v4959 = vunpack.c.l.b16 %v4927
      %v4960 = vpack.c.b16 %v4945, %v4944
      %v4961 = vpack.c.b16 %v4947, %v4946
      %v4962 = vpack.c.b16 %v4949, %v4948
      %v4963 = vpack.c.b16 %v4951, %v4950
      %v4964 = vpack.c.b16 %v4953, %v4952
      %v4965 = vpack.c.b16 %v4955, %v4954
      %v4966 = vpack.c.b16 %v4957, %v4956
      %v4967 = vpack.c.b16 %v4959, %v4958
      %4976 = vmatprep.subr.bf16.mxu0 0
      %4977 = vmatpush1.bf16.msra.mxu0 %v4960
      %4978 = vmatprep.subr.bf16.mxu0 0
      %4979 = vmatpush1.bf16.msra.mxu0 %v4961
      %4980 = vmatprep.subr.bf16.mxu0 0
      %4981 = vmatpush1.bf16.msra.mxu0 %v4962
      %4982 = vmatprep.subr.bf16.mxu0 0
      %4983 = vmatpush1.bf16.msra.mxu0 %v4963
      %4984 = vmatprep.subr.bf16.mxu0 0
      %4985 = vmatpush1.bf16.msra.mxu0 %v4964
      %4986 = vmatprep.subr.bf16.mxu0 0
      %4987 = vmatpush1.bf16.msra.mxu0 %v4965
      %4988 = vmatprep.subr.bf16.mxu0 0
      %4989 = vmatpush1.bf16.msra.mxu0 %v4966
      %4990 = vmatprep.subr.bf16.mxu0 0
      %4991 = vmatpush1.bf16.msra.mxu0 %v4967
      %4992 = vmatprep.subr.bf16.mxu0 0
      %4993 = vmatpush1.bf16.msra.mxu0 0
      %4994 = vmatprep.subr.bf16.mxu0 0
      %4995 = vmatpush1.bf16.msra.mxu0 0
      %4996 = vmatprep.subr.bf16.mxu0 0
      %4997 = vmatpush1.bf16.msra.mxu0 0
      %4998 = vmatprep.subr.bf16.mxu0 0
      %4999 = vmatpush1.bf16.msra.mxu0 0
      %5000 = vmatprep.subr.bf16.mxu0 0
      %5001 = vmatpush1.bf16.msra.mxu0 0
      %5002 = vmatprep.subr.bf16.mxu0 0
      %5003 = vmatpush1.bf16.msra.mxu0 0
      %5004 = vmatprep.subr.bf16.mxu0 0
      %5005 = vmatpush1.bf16.msra.mxu0 0
      %5006 = vmatprep.subr.bf16.mxu0 0
      %5007 = vmatpush1.bf16.msra.mxu0 0
      %5008 = vmatprep.mubr.bf16.mxu0 0
      %5009 = vmatmul.mubr.bf16.gmra.mrb[0].mxu0 %v4636
      %v5010 = vpop.f32.mrb[0].mxu0
      %v5011 = vadd.f32 0.0, %v5010
      %v5012 = vpop.f32.mrb[0].mxu0
      %v5013 = vpop.f32.mrb[0].mxu0
      %v5014 = vadd.f32 0.0, %v5013
      %v5015 = vpop.f32.mrb[0].mxu0
      %5016 = vmatprep.mubr.bf16.mxu0 0
      %5017 = vmatmul.mubr.bf16.gmra.mrb[0].mxu0 %v4637
      %v5018 = vpop.f32.mrb[0].mxu0
      %v5019 = vadd.f32 0.0, %v5018
      %v5020 = vpop.f32.mrb[0].mxu0
      %v5021 = vpop.f32.mrb[0].mxu0
      %v5022 = vadd.f32 0.0, %v5021
      %v5023 = vpop.f32.mrb[0].mxu0
      %5024 = vmatprep.mubr.bf16.mxu0 0
      %5025 = vmatmul.mubr.bf16.gmra.mrb[0].mxu0 %v4638
      %v5026 = vpop.f32.mrb[0].mxu0
      %v5027 = vadd.f32 0.0, %v5026
      %v5028 = vpop.f32.mrb[0].mxu0
      %v5029 = vpop.f32.mrb[0].mxu0
      %v5030 = vadd.f32 0.0, %v5029
      %v5031 = vpop.f32.mrb[0].mxu0
      %5032 = vmatprep.mubr.bf16.mxu0 0
      %5033 = vmatmul.mubr.bf16.gmra.mrb[0].mxu0 %v4639
      %v5034 = vpop.f32.mrb[0].mxu0
      %v5035 = vadd.f32 0.0, %v5034
      %v5036 = vpop.f32.mrb[0].mxu0
      %v5037 = vpop.f32.mrb[0].mxu0
      %v5038 = vadd.f32 0.0, %v5037
      %v5039 = vpop.f32.mrb[0].mxu0
      %5040 = vmatprep.mubr.bf16.mxu0 0
      %5041 = vmatmul.mubr.bf16.gmra.mrb[0].mxu0 %v4640
      %v5042 = vpop.f32.mrb[0].mxu0
      %v5043 = vadd.f32 0.0, %v5042
      %v5044 = vpop.f32.mrb[0].mxu0
      %v5045 = vpop.f32.mrb[0].mxu0
      %v5046 = vadd.f32 0.0, %v5045
      %v5047 = vpop.f32.mrb[0].mxu0
      %5048 = vmatprep.mubr.bf16.mxu0 0
      %5049 = vmatmul.mubr.bf16.gmra.mrb[0].mxu0 %v4641
      %v5050 = vpop.f32.mrb[0].mxu0
      %v5051 = vadd.f32 0.0, %v5050
      %v5052 = vpop.f32.mrb[0].mxu0
      %v5053 = vpop.f32.mrb[0].mxu0
      %v5054 = vadd.f32 0.0, %v5053
      %v5055 = vpop.f32.mrb[0].mxu0
      %5056 = vmatprep.mubr.bf16.mxu0 0
      %5057 = vmatmul.mubr.bf16.gmra.mrb[0].mxu0 %v4642
      %v5058 = vpop.f32.mrb[0].mxu0
      %v5059 = vadd.f32 0.0, %v5058
      %v5060 = vpop.f32.mrb[0].mxu0
      %v5061 = vpop.f32.mrb[0].mxu0
      %v5062 = vadd.f32 0.0, %v5061
      %v5063 = vpop.f32.mrb[0].mxu0
      %5064 = vmatprep.mubr.bf16.mxu0 0
      %5065 = vmatmul.mubr.bf16.gmra.mrb[0].mxu0 %v4643
      %v5066 = vpop.f32.mrb[0].mxu0
      %v5067 = vadd.f32 0.0, %v5066
      %v5068 = vpop.f32.mrb[0].mxu0
      %v5069 = vpop.f32.mrb[0].mxu0
      %v5070 = vadd.f32 0.0, %v5069
      %v5071 = vpop.f32.mrb[0].mxu0
      %5072 = vmatprep.mubr.bf16.mxu0 0
      %5073 = vmatmul.mubr.bf16.gmra.mrb[0].mxu0 %v4644
      %v5074 = vpop.f32.mrb[0].mxu0
      %v5075 = vadd.f32 0.0, %v5074
      %v5076 = vpop.f32.mrb[0].mxu0
      %v5077 = vpop.f32.mrb[0].mxu0
      %v5078 = vadd.f32 0.0, %v5077
      %v5079 = vpop.f32.mrb[0].mxu0
      %5080 = vmatprep.mubr.bf16.mxu0 0
      %5081 = vmatmul.mubr.bf16.gmra.mrb[0].mxu0 %v4645
      %v5082 = vpop.f32.mrb[0].mxu0
      %v5083 = vadd.f32 0.0, %v5082
      %v5084 = vpop.f32.mrb[0].mxu0
      %v5085 = vpop.f32.mrb[0].mxu0
      %v5086 = vadd.f32 0.0, %v5085
      %v5087 = vpop.f32.mrb[0].mxu0
      %5088 = vmatprep.mubr.bf16.mxu0 0
      %5089 = vmatmul.mubr.bf16.gmra.mrb[0].mxu0 %v4646
      %v5090 = vpop.f32.mrb[0].mxu0
      %v5091 = vadd.f32 0.0, %v5090
      %v5092 = vpop.f32.mrb[0].mxu0
      %v5093 = vpop.f32.mrb[0].mxu0
      %v5094 = vadd.f32 0.0, %v5093
      %v5095 = vpop.f32.mrb[0].mxu0
      %5096 = vmatprep.mubr.bf16.mxu0 0
      %5097 = vmatmul.mubr.bf16.gmra.mrb[0].mxu0 %v4647
      %v5098 = vpop.f32.mrb[0].mxu0
      %v5099 = vadd.f32 0.0, %v5098
      %v5100 = vpop.f32.mrb[0].mxu0
      %v5101 = vpop.f32.mrb[0].mxu0
      %v5102 = vadd.f32 0.0, %v5101
      %v5103 = vpop.f32.mrb[0].mxu0
      %5104 = vmatprep.mubr.bf16.mxu0 0
      %5105 = vmatmul.mubr.bf16.gmra.mrb[0].mxu0 %v4648
      %v5106 = vpop.f32.mrb[0].mxu0
      %v5107 = vadd.f32 0.0, %v5106
      %v5108 = vpop.f32.mrb[0].mxu0
      %v5109 = vpop.f32.mrb[0].mxu0
      %v5110 = vadd.f32 0.0, %v5109
      %v5111 = vpop.f32.mrb[0].mxu0
      %5112 = vmatprep.mubr.bf16.mxu0 0
      %5113 = vmatmul.mubr.bf16.gmra.mrb[0].mxu0 %v4649
      %v5114 = vpop.f32.mrb[0].mxu0
      %v5115 = vadd.f32 0.0, %v5114
      %v5116 = vpop.f32.mrb[0].mxu0
      %v5117 = vpop.f32.mrb[0].mxu0
      %v5118 = vadd.f32 0.0, %v5117
      %v5119 = vpop.f32.mrb[0].mxu0
      %5120 = vmatprep.mubr.bf16.mxu0 0
      %5121 = vmatmul.mubr.bf16.gmra.mrb[0].mxu0 %v4650
      %v5122 = vpop.f32.mrb[0].mxu0
      %v5123 = vadd.f32 0.0, %v5122
      %v5124 = vpop.f32.mrb[0].mxu0
      %v5125 = vpop.f32.mrb[0].mxu0
      %v5126 = vadd.f32 0.0, %v5125
      %v5127 = vpop.f32.mrb[0].mxu0
      %5128 = vmatprep.mubr.bf16.mxu0 0
      %5129 = vmatmul.mubr.bf16.gmra.mrb[0].mxu0 %v4651
      %v5130 = vpop.f32.mrb[0].mxu0
      %v5131 = vadd.f32 0.0, %v5130
      %v5132 = vpop.f32.mrb[0].mxu0
      %v5133 = vpop.f32.mrb[0].mxu0
      %v5134 = vadd.f32 0.0, %v5133
      %v5135 = vpop.f32.mrb[0].mxu0
      %5136 = vdwg.mxu0
      %v5137 = vadd.f32 %v4879, %v5011
      %v5138 = vadd.f32 %v4880, %v5014
      %v5139 = vadd.f32 %v4881, %v5019
      %v5140 = vadd.f32 %v4882, %v5022
      %v5141 = vadd.f32 %v4883, %v5027
      %v5142 = vadd.f32 %v4884, %v5030
      %v5143 = vadd.f32 %v4885, %v5035
      %v5144 = vadd.f32 %v4886, %v5038
      %v5145 = vadd.f32 %v4887, %v5043
      %v5146 = vadd.f32 %v4888, %v5046
      %v5147 = vadd.f32 %v4889, %v5051
      %v5148 = vadd.f32 %v4890, %v5054
      %v5149 = vadd.f32 %v4891, %v5059
      %v5150 = vadd.f32 %v4892, %v5062
      %v5151 = vadd.f32 %v4893, %v5067
      %v5152 = vadd.f32 %v4894, %v5070
      %v5153 = vadd.f32 %v4895, %v5075
      %v5154 = vadd.f32 %v4896, %v5078
      %v5155 = vadd.f32 %v4897, %v5083
      %v5156 = vadd.f32 %v4898, %v5086
      %v5157 = vadd.f32 %v4899, %v5091
      %v5158 = vadd.f32 %v4900, %v5094
      %v5159 = vadd.f32 %v4901, %v5099
      %v5160 = vadd.f32 %v4902, %v5102
      %v5161 = vadd.f32 %v4903, %v5107
      %v5162 = vadd.f32 %v4904, %v5110
      %v5163 = vadd.f32 %v4905, %v5115
      %v5164 = vadd.f32 %v4906, %v5118
      %v5165 = vadd.f32 %v4907, %v5123
      %v5166 = vadd.f32 %v4908, %v5126
      %v5167 = vadd.f32 %v4909, %v5131
      %v5168 = vadd.f32 %v4910, %v5134
      %s5169 = scalar_lea.vmem %s3, 512
      %v5170 = vld [vmem:[%s5169] sm:$0xf]
      %v5171 = vld [vmem:[%s5169 + $0x4] sm:$0xf]
      %v5172 = vld [vmem:[%s5169 + $0x8] sm:$0xf]
      %v5173 = vld [vmem:[%s5169 + $0xc] sm:$0xf]
      %v5174 = vld [vmem:[%s5169 + $0x10] sm:$0xf]
      %v5175 = vld [vmem:[%s5169 + $0x14] sm:$0xf]
      %v5176 = vld [vmem:[%s5169 + $0x18] sm:$0xf]
      %v5177 = vld [vmem:[%s5169 + $0x1c] sm:$0xf]
      %v5178 = vld [vmem:[%s5169 + $0x20] sm:$0xf]
      %v5179 = vld [vmem:[%s5169 + $0x24] sm:$0xf]
      %v5180 = vld [vmem:[%s5169 + $0x28] sm:$0xf]
      %v5181 = vld [vmem:[%s5169 + $0x2c] sm:$0xf]
      %v5182 = vld [vmem:[%s5169 + $0x30] sm:$0xf]
      %v5183 = vld [vmem:[%s5169 + $0x34] sm:$0xf]
      %v5184 = vld [vmem:[%s5169 + $0x38] sm:$0xf]
      %v5185 = vld [vmem:[%s5169 + $0x3c] sm:$0xf]
      %v5202 = vunpack.c.l.b16 %v5170
      %v5203 = vunpack.c.l.b16 %v5171
      %v5204 = vunpack.c.l.b16 %v5172
      %v5205 = vunpack.c.l.b16 %v5173
      %v5206 = vunpack.c.l.b16 %v5174
      %v5207 = vunpack.c.l.b16 %v5175
      %v5208 = vunpack.c.l.b16 %v5176
      %v5209 = vunpack.c.l.b16 %v5177
      %v5210 = vunpack.c.l.b16 %v5178
      %v5211 = vunpack.c.l.b16 %v5179
      %v5212 = vunpack.c.l.b16 %v5180
      %v5213 = vunpack.c.l.b16 %v5181
      %v5214 = vunpack.c.l.b16 %v5182
      %v5215 = vunpack.c.l.b16 %v5183
      %v5216 = vunpack.c.l.b16 %v5184
      %v5217 = vunpack.c.l.b16 %v5185
      %v5218 = vpack.c.b16 %v5203, %v5202
      %v5219 = vpack.c.b16 %v5205, %v5204
      %v5220 = vpack.c.b16 %v5207, %v5206
      %v5221 = vpack.c.b16 %v5209, %v5208
      %v5222 = vpack.c.b16 %v5211, %v5210
      %v5223 = vpack.c.b16 %v5213, %v5212
      %v5224 = vpack.c.b16 %v5215, %v5214
      %v5225 = vpack.c.b16 %v5217, %v5216
      %5234 = vmatprep.subr.bf16.mxu0 0
      %5235 = vmatpush1.bf16.msra.mxu0 %v5218
      %5236 = vmatprep.subr.bf16.mxu0 0
      %5237 = vmatpush1.bf16.msra.mxu0 %v5219
      %5238 = vmatprep.subr.bf16.mxu0 0
      %5239 = vmatpush1.bf16.msra.mxu0 %v5220
      %5240 = vmatprep.subr.bf16.mxu0 0
      %5241 = vmatpush1.bf16.msra.mxu0 %v5221
      %5242 = vmatprep.subr.bf16.mxu0 0
      %5243 = vmatpush1.bf16.msra.mxu0 %v5222
      %5244 = vmatprep.subr.bf16.mxu0 0
      %5245 = vmatpush1.bf16.msra.mxu0 %v5223
      %5246 = vmatprep.subr.bf16.mxu0 0
      %5247 = vmatpush1.bf16.msra.mxu0 %v5224
      %5248 = vmatprep.subr.bf16.mxu0 0
      %5249 = vmatpush1.bf16.msra.mxu0 %v5225
      %5250 = vmatprep.subr.bf16.mxu0 0
      %5251 = vmatpush1.bf16.msra.mxu0 0
      %5252 = vmatprep.subr.bf16.mxu0 0
      %5253 = vmatpush1.bf16.msra.mxu0 0
      %5254 = vmatprep.subr.bf16.mxu0 0
      %5255 = vmatpush1.bf16.msra.mxu0 0
      %5256 = vmatprep.subr.bf16.mxu0 0
      %5257 = vmatpush1.bf16.msra.mxu0 0
      %5258 = vmatprep.subr.bf16.mxu0 0
      %5259 = vmatpush1.bf16.msra.mxu0 0
      %5260 = vmatprep.subr.bf16.mxu0 0
      %5261 = vmatpush1.bf16.msra.mxu0 0
      %5262 = vmatprep.subr.bf16.mxu0 0
      %5263 = vmatpush1.bf16.msra.mxu0 0
      %5264 = vmatprep.subr.bf16.mxu0 0
      %5265 = vmatpush1.bf16.msra.mxu0 0
      %5266 = vmatprep.mubr.bf16.mxu0 0
      %5267 = vmatmul.mubr.bf16.gmra.mrb[0].mxu0 %v4637
      %v5268 = vpop.f32.mrb[0].mxu0
      %v5269 = vadd.f32 0.0, %v5268
      %v5270 = vpop.f32.mrb[0].mxu0
      %v5271 = vpop.f32.mrb[0].mxu0
      %v5272 = vadd.f32 0.0, %v5271
      %v5273 = vpop.f32.mrb[0].mxu0
      %5274 = vmatprep.mubr.bf16.mxu0 0
      %5275 = vmatmul.mubr.bf16.gmra.mrb[0].mxu0 %v4638
      %v5276 = vpop.f32.mrb[0].mxu0
      %v5277 = vadd.f32 0.0, %v5276
      %v5278 = vpop.f32.mrb[0].mxu0
      %v5279 = vpop.f32.mrb[0].mxu0
      %v5280 = vadd.f32 0.0, %v5279
      %v5281 = vpop.f32.mrb[0].mxu0
      %5282 = vmatprep.mubr.bf16.mxu0 0
      %5283 = vmatmul.mubr.bf16.gmra.mrb[0].mxu0 %v4639
      %v5284 = vpop.f32.mrb[0].mxu0
      %v5285 = vadd.f32 0.0, %v5284
      %v5286 = vpop.f32.mrb[0].mxu0
      %v5287 = vpop.f32.mrb[0].mxu0
      %v5288 = vadd.f32 0.0, %v5287
      %v5289 = vpop.f32.mrb[0].mxu0
      %5290 = vmatprep.mubr.bf16.mxu0 0
      %5291 = vmatmul.mubr.bf16.gmra.mrb[0].mxu0 %v4640
      %v5292 = vpop.f32.mrb[0].mxu0
      %v5293 = vadd.f32 0.0, %v5292
      %v5294 = vpop.f32.mrb[0].mxu0
      %v5295 = vpop.f32.mrb[0].mxu0
      %v5296 = vadd.f32 0.0, %v5295
      %v5297 = vpop.f32.mrb[0].mxu0
      %5298 = vmatprep.mubr.bf16.mxu0 0
      %5299 = vmatmul.mubr.bf16.gmra.mrb[0].mxu0 %v4641
      %v5300 = vpop.f32.mrb[0].mxu0
      %v5301 = vadd.f32 0.0, %v5300
      %v5302 = vpop.f32.mrb[0].mxu0
      %v5303 = vpop.f32.mrb[0].mxu0
      %v5304 = vadd.f32 0.0, %v5303
      %v5305 = vpop.f32.mrb[0].mxu0
      %5306 = vmatprep.mubr.bf16.mxu0 0
      %5307 = vmatmul.mubr.bf16.gmra.mrb[0].mxu0 %v4642
      %v5308 = vpop.f32.mrb[0].mxu0
      %v5309 = vadd.f32 0.0, %v5308
      %v5310 = vpop.f32.mrb[0].mxu0
      %v5311 = vpop.f32.mrb[0].mxu0
      %v5312 = vadd.f32 0.0, %v5311
      %v5313 = vpop.f32.mrb[0].mxu0
      %5314 = vmatprep.mubr.bf16.mxu0 0
      %5315 = vmatmul.mubr.bf16.gmra.mrb[0].mxu0 %v4643
      %v5316 = vpop.f32.mrb[0].mxu0
      %v5317 = vadd.f32 0.0, %v5316
      %v5318 = vpop.f32.mrb[0].mxu0
      %v5319 = vpop.f32.mrb[0].mxu0
      %v5320 = vadd.f32 0.0, %v5319
      %v5321 = vpop.f32.mrb[0].mxu0
      %5322 = vmatprep.mubr.bf16.mxu0 0
      %5323 = vmatmul.mubr.bf16.gmra.mrb[0].mxu0 %v4644
      %v5324 = vpop.f32.mrb[0].mxu0
      %v5325 = vadd.f32 0.0, %v5324
      %v5326 = vpop.f32.mrb[0].mxu0
      %v5327 = vpop.f32.mrb[0].mxu0
      %v5328 = vadd.f32 0.0, %v5327
      %v5329 = vpop.f32.mrb[0].mxu0
      %5330 = vmatprep.mubr.bf16.mxu0 0
      %5331 = vmatmul.mubr.bf16.gmra.mrb[0].mxu0 %v4645
      %v5332 = vpop.f32.mrb[0].mxu0
      %v5333 = vadd.f32 0.0, %v5332
      %v5334 = vpop.f32.mrb[0].mxu0
      %v5335 = vpop.f32.mrb[0].mxu0
      %v5336 = vadd.f32 0.0, %v5335
      %v5337 = vpop.f32.mrb[0].mxu0
      %5338 = vmatprep.mubr.bf16.mxu0 0
      %5339 = vmatmul.mubr.bf16.gmra.mrb[0].mxu0 %v4646
      %v5340 = vpop.f32.mrb[0].mxu0
      %v5341 = vadd.f32 0.0, %v5340
      %v5342 = vpop.f32.mrb[0].mxu0
      %v5343 = vpop.f32.mrb[0].mxu0
      %v5344 = vadd.f32 0.0, %v5343
      %v5345 = vpop.f32.mrb[0].mxu0
      %5346 = vmatprep.mubr.bf16.mxu0 0
      %5347 = vmatmul.mubr.bf16.gmra.mrb[0].mxu0 %v4647
      %v5348 = vpop.f32.mrb[0].mxu0
      %v5349 = vadd.f32 0.0, %v5348
      %v5350 = vpop.f32.mrb[0].mxu0
      %v5351 = vpop.f32.mrb[0].mxu0
      %v5352 = vadd.f32 0.0, %v5351
      %v5353 = vpop.f32.mrb[0].mxu0
      %5354 = vmatprep.mubr.bf16.mxu0 0
      %5355 = vmatmul.mubr.bf16.gmra.mrb[0].mxu0 %v4648
      %v5356 = vpop.f32.mrb[0].mxu0
      %v5357 = vadd.f32 0.0, %v5356
      %v5358 = vpop.f32.mrb[0].mxu0
      %v5359 = vpop.f32.mrb[0].mxu0
      %v5360 = vadd.f32 0.0, %v5359
      %v5361 = vpop.f32.mrb[0].mxu0
      %5362 = vmatprep.mubr.bf16.mxu0 0
      %5363 = vmatmul.mubr.bf16.gmra.mrb[0].mxu0 %v4649
      %v5364 = vpop.f32.mrb[0].mxu0
      %v5365 = vadd.f32 0.0, %v5364
      %v5366 = vpop.f32.mrb[0].mxu0
      %v5367 = vpop.f32.mrb[0].mxu0
      %v5368 = vadd.f32 0.0, %v5367
      %v5369 = vpop.f32.mrb[0].mxu0
      %5370 = vmatprep.mubr.bf16.mxu0 0
      %5371 = vmatmul.mubr.bf16.gmra.mrb[0].mxu0 %v4650
      %v5372 = vpop.f32.mrb[0].mxu0
      %v5373 = vadd.f32 0.0, %v5372
      %v5374 = vpop.f32.mrb[0].mxu0
      %v5375 = vpop.f32.mrb[0].mxu0
      %v5376 = vadd.f32 0.0, %v5375
      %v5377 = vpop.f32.mrb[0].mxu0
      %5378 = vmatprep.mubr.bf16.mxu0 0
      %5379 = vmatmul.mubr.bf16.gmra.mrb[0].mxu0 %v4651
      %v5380 = vpop.f32.mrb[0].mxu0
      %v5381 = vadd.f32 0.0, %v5380
      %v5382 = vpop.f32.mrb[0].mxu0
      %v5383 = vpop.f32.mrb[0].mxu0
      %v5384 = vadd.f32 0.0, %v5383
      %v5385 = vpop.f32.mrb[0].mxu0
      %5386 = vmatprep.mubr.bf16.mxu0 0
      %5387 = vmatmul.mubr.bf16.gmra.mrb[0].mxu0 %v4652
      %v5388 = vpop.f32.mrb[0].mxu0
      %v5389 = vadd.f32 0.0, %v5388
      %v5390 = vpop.f32.mrb[0].mxu0
      %v5391 = vpop.f32.mrb[0].mxu0
      %v5392 = vadd.f32 0.0, %v5391
      %v5393 = vpop.f32.mrb[0].mxu0
      %5394 = vdwg.mxu0
      %v5395 = vadd.f32 %v5137, %v5269
      %v5396 = vadd.f32 %v5138, %v5272
      %v5397 = vadd.f32 %v5139, %v5277
      %v5398 = vadd.f32 %v5140, %v5280
      %v5399 = vadd.f32 %v5141, %v5285
      %v5400 = vadd.f32 %v5142, %v5288
      %v5401 = vadd.f32 %v5143, %v5293
      %v5402 = vadd.f32 %v5144, %v5296
      %v5403 = vadd.f32 %v5145, %v5301
      %v5404 = vadd.f32 %v5146, %v5304
      %v5405 = vadd.f32 %v5147, %v5309
      %v5406 = vadd.f32 %v5148, %v5312
      %v5407 = vadd.f32 %v5149, %v5317
      %v5408 = vadd.f32 %v5150, %v5320
      %v5409 = vadd.f32 %v5151, %v5325
      %v5410 = vadd.f32 %v5152, %v5328
      %v5411 = vadd.f32 %v5153, %v5333
      %v5412 = vadd.f32 %v5154, %v5336
      %v5413 = vadd.f32 %v5155, %v5341
      %v5414 = vadd.f32 %v5156, %v5344
      %v5415 = vadd.f32 %v5157, %v5349
      %v5416 = vadd.f32 %v5158, %v5352
      %v5417 = vadd.f32 %v5159, %v5357
      %v5418 = vadd.f32 %v5160, %v5360
      %v5419 = vadd.f32 %v5161, %v5365
      %v5420 = vadd.f32 %v5162, %v5368
      %v5421 = vadd.f32 %v5163, %v5373
      %v5422 = vadd.f32 %v5164, %v5376
      %v5423 = vadd.f32 %v5165, %v5381
      %v5424 = vadd.f32 %v5166, %v5384
      %v5425 = vadd.f32 %v5167, %v5389
      %v5426 = vadd.f32 %v5168, %v5392
      %v5427 = vld [vmem:[%s4] sm:$0x1]
      %v5429 = vlaneseq
      %v5430 = vshrl.u32 %v5429, 7
      %v5431 = vsub.s32 0, %v5430
      %v5432 = vrot.slane %v5427, %v5431
      %v5434 = vadd.f32 %v5395, %v5432
      %v5435 = vadd.f32 %v5396, %v5432
      %v5436 = vadd.f32 %v5397, %v5432
      %v5437 = vadd.f32 %v5398, %v5432
      %v5438 = vadd.f32 %v5399, %v5432
      %v5439 = vadd.f32 %v5400, %v5432
      %v5440 = vadd.f32 %v5401, %v5432
      %v5441 = vadd.f32 %v5402, %v5432
      %v5442 = vadd.f32 %v5403, %v5432
      %v5443 = vadd.f32 %v5404, %v5432
      %v5444 = vadd.f32 %v5405, %v5432
      %v5445 = vadd.f32 %v5406, %v5432
      %v5446 = vadd.f32 %v5407, %v5432
      %v5447 = vadd.f32 %v5408, %v5432
      %v5448 = vadd.f32 %v5409, %v5432
      %v5449 = vadd.f32 %v5410, %v5432
      %v5450 = vadd.f32 %v5411, %v5432
      %v5451 = vadd.f32 %v5412, %v5432
      %v5452 = vadd.f32 %v5413, %v5432
      %v5453 = vadd.f32 %v5414, %v5432
      %v5454 = vadd.f32 %v5415, %v5432
      %v5455 = vadd.f32 %v5416, %v5432
      %v5456 = vadd.f32 %v5417, %v5432
      %v5457 = vadd.f32 %v5418, %v5432
      %v5458 = vadd.f32 %v5419, %v5432
      %v5459 = vadd.f32 %v5420, %v5432
      %v5460 = vadd.f32 %v5421, %v5432
      %v5461 = vadd.f32 %v5422, %v5432
      %v5462 = vadd.f32 %v5423, %v5432
      %v5463 = vadd.f32 %v5424, %v5432
      %v5464 = vadd.f32 %v5425, %v5432
      %v5465 = vadd.f32 %v5426, %v5432
      %v5466 = vmax.f32 %v5434, 0.0
      %v5467 = vmax.f32 %v5435, 0.0
      %v5468 = vmax.f32 %v5436, 0.0
      %v5469 = vmax.f32 %v5437, 0.0
      %v5470 = vmax.f32 %v5438, 0.0
      %v5471 = vmax.f32 %v5439, 0.0
      %v5472 = vmax.f32 %v5440, 0.0
      %v5473 = vmax.f32 %v5441, 0.0
      %v5474 = vmax.f32 %v5442, 0.0
      %v5475 = vmax.f32 %v5443, 0.0
      %v5476 = vmax.f32 %v5444, 0.0
      %v5477 = vmax.f32 %v5445, 0.0
      %v5478 = vmax.f32 %v5446, 0.0
      %v5479 = vmax.f32 %v5447, 0.0
      %v5480 = vmax.f32 %v5448, 0.0
      %v5481 = vmax.f32 %v5449, 0.0
      %v5482 = vmax.f32 %v5450, 0.0
      %v5483 = vmax.f32 %v5451, 0.0
      %v5484 = vmax.f32 %v5452, 0.0
      %v5485 = vmax.f32 %v5453, 0.0
      %v5486 = vmax.f32 %v5454, 0.0
      %v5487 = vmax.f32 %v5455, 0.0
      %v5488 = vmax.f32 %v5456, 0.0
      %v5489 = vmax.f32 %v5457, 0.0
      %v5490 = vmax.f32 %v5458, 0.0
      %v5491 = vmax.f32 %v5459, 0.0
      %v5492 = vmax.f32 %v5460, 0.0
      %v5493 = vmax.f32 %v5461, 0.0
      %v5494 = vmax.f32 %v5462, 0.0
      %v5495 = vmax.f32 %v5463, 0.0
      %v5496 = vmax.f32 %v5464, 0.0
      %v5497 = vmax.f32 %v5465, 0.0
      %v5498 = vld [vmem:[%s5] sm:$0xf]
      %v5499 = vld [vmem:[%s5 + $0x4] sm:$0xf]
      %v5500 = vld [vmem:[%s5 + $0x8] sm:$0xf]
      %v5501 = vld [vmem:[%s5 + $0xc] sm:$0xf]
      %v5502 = vld [vmem:[%s5 + $0x10] sm:$0xf]
      %v5503 = vld [vmem:[%s5 + $0x14] sm:$0xf]
      %v5504 = vld [vmem:[%s5 + $0x18] sm:$0xf]
      %v5505 = vld [vmem:[%s5 + $0x1c] sm:$0xf]
      %v5506 = vld [vmem:[%s5 + $0x20] sm:$0xf]
      %v5507 = vld [vmem:[%s5 + $0x24] sm:$0xf]
      %v5508 = vld [vmem:[%s5 + $0x28] sm:$0xf]
      %v5509 = vld [vmem:[%s5 + $0x2c] sm:$0xf]
      %v5510 = vld [vmem:[%s5 + $0x30] sm:$0xf]
      %v5511 = vld [vmem:[%s5 + $0x34] sm:$0xf]
      %v5512 = vld [vmem:[%s5 + $0x38] sm:$0xf]
      %v5513 = vld [vmem:[%s5 + $0x3c] sm:$0xf]
      %v5514 = vld [vmem:[%s6] sm:$0x1]
      %v5516 = vlaneseq
      %v5517 = vshrl.u32 %v5516, 7
      %v5518 = vsub.s32 0, %v5517
      %v5519 = vrot.slane %v5514, %v5518
      %v5537 = vunpack.c.l.b16 %v5498
      %v5538 = vunpack.c.l.b16 %v5499
      %v5539 = vunpack.c.l.b16 %v5500
      %v5540 = vunpack.c.l.b16 %v5501
      %v5541 = vunpack.c.l.b16 %v5502
      %v5542 = vunpack.c.l.b16 %v5503
      %v5543 = vunpack.c.l.b16 %v5504
      %v5544 = vunpack.c.l.b16 %v5505
      %v5545 = vunpack.c.l.b16 %v5506
      %v5546 = vunpack.c.l.b16 %v5507
      %v5547 = vunpack.c.l.b16 %v5508
      %v5548 = vunpack.c.l.b16 %v5509
      %v5549 = vunpack.c.l.b16 %v5510
      %v5550 = vunpack.c.l.b16 %v5511
      %v5551 = vunpack.c.l.b16 %v5512
      %v5552 = vunpack.c.l.b16 %v5513
      %v5553 = vpack.c.b16 %v5538, %v5537
      %v5554 = vpack.c.b16 %v5540, %v5539
      %v5555 = vpack.c.b16 %v5542, %v5541
      %v5556 = vpack.c.b16 %v5544, %v5543
      %v5557 = vpack.c.b16 %v5546, %v5545
      %v5558 = vpack.c.b16 %v5548, %v5547
      %v5559 = vpack.c.b16 %v5550, %v5549
      %v5560 = vpack.c.b16 %v5552, %v5551
      %5569 = vmatprep.subr.bf16.mxu0 0
      %5570 = vmatpush1.bf16.msra.mxu0 %v5553
      %5571 = vmatprep.subr.bf16.mxu0 0
      %5572 = vmatpush1.bf16.msra.mxu0 %v5554
      %5573 = vmatprep.subr.bf16.mxu0 0
      %5574 = vmatpush1.bf16.msra.mxu0 %v5555
      %5575 = vmatprep.subr.bf16.mxu0 0
      %5576 = vmatpush1.bf16.msra.mxu0 %v5556
      %5577 = vmatprep.subr.bf16.mxu0 0
      %5578 = vmatpush1.bf16.msra.mxu0 %v5557
      %5579 = vmatprep.subr.bf16.mxu0 0
      %5580 = vmatpush1.bf16.msra.mxu0 %v5558
      %5581 = vmatprep.subr.bf16.mxu0 0
      %5582 = vmatpush1.bf16.msra.mxu0 %v5559
      %5583 = vmatprep.subr.bf16.mxu0 0
      %5584 = vmatpush1.bf16.msra.mxu0 %v5560
      %5585 = vmatprep.subr.bf16.mxu0 0
      %5586 = vmatpush1.bf16.msra.mxu0 0
      %5587 = vmatprep.subr.bf16.mxu0 0
      %5588 = vmatpush1.bf16.msra.mxu0 0
      %5589 = vmatprep.subr.bf16.mxu0 0
      %5590 = vmatpush1.bf16.msra.mxu0 0
      %5591 = vmatprep.subr.bf16.mxu0 0
      %5592 = vmatpush1.bf16.msra.mxu0 0
      %5593 = vmatprep.subr.bf16.mxu0 0
      %5594 = vmatpush1.bf16.msra.mxu0 0
      %5595 = vmatprep.subr.bf16.mxu0 0
      %5596 = vmatpush1.bf16.msra.mxu0 0
      %5597 = vmatprep.subr.bf16.mxu0 0
      %5598 = vmatpush1.bf16.msra.mxu0 0
      %5599 = vmatprep.subr.bf16.mxu0 0
      %5600 = vmatpush1.bf16.msra.mxu0 0
      %5601 = vmatprep.mubr.bf16.mxu0 0
      %5602 = vmatmul.mubr.bf16.gmra.mrb[0].mxu0 %v1242
      %v5603 = vpop.f32.mrb[0].mxu0
      %v5604 = vadd.f32 %v5519, %v5603
      %v5605 = vpop.f32.mrb[0].mxu0
      %v5606 = vpop.f32.mrb[0].mxu0
      %v5607 = vadd.f32 %v5519, %v5606
      %v5608 = vpop.f32.mrb[0].mxu0
      %5609 = vmatprep.mubr.bf16.mxu0 0
      %5610 = vmatmul.mubr.bf16.gmra.mrb[0].mxu0 %v1243
      %v5611 = vpop.f32.mrb[0].mxu0
      %v5612 = vadd.f32 %v5519, %v5611
      %v5613 = vpop.f32.mrb[0].mxu0
      %v5614 = vpop.f32.mrb[0].mxu0
      %v5615 = vadd.f32 %v5519, %v5614
      %v5616 = vpop.f32.mrb[0].mxu0
      %5617 = vmatprep.mubr.bf16.mxu0 0
      %5618 = vmatmul.mubr.bf16.gmra.mrb[0].mxu0 %v1244
      %v5619 = vpop.f32.mrb[0].mxu0
      %v5620 = vadd.f32 %v5519, %v5619
      %v5621 = vpop.f32.mrb[0].mxu0
      %v5622 = vpop.f32.mrb[0].mxu0
      %v5623 = vadd.f32 %v5519, %v5622
      %v5624 = vpop.f32.mrb[0].mxu0
      %5625 = vmatprep.mubr.bf16.mxu0 0
      %5626 = vmatmul.mubr.bf16.gmra.mrb[0].mxu0 %v1245
      %v5627 = vpop.f32.mrb[0].mxu0
      %v5628 = vadd.f32 %v5519, %v5627
      %v5629 = vpop.f32.mrb[0].mxu0
      %v5630 = vpop.f32.mrb[0].mxu0
      %v5631 = vadd.f32 %v5519, %v5630
      %v5632 = vpop.f32.mrb[0].mxu0
      %5633 = vmatprep.mubr.bf16.mxu0 0
      %5634 = vmatmul.mubr.bf16.gmra.mrb[0].mxu0 %v1246
      %v5635 = vpop.f32.mrb[0].mxu0
      %v5636 = vadd.f32 %v5519, %v5635
      %v5637 = vpop.f32.mrb[0].mxu0
      %v5638 = vpop.f32.mrb[0].mxu0
      %v5639 = vadd.f32 %v5519, %v5638
      %v5640 = vpop.f32.mrb[0].mxu0
      %5641 = vmatprep.mubr.bf16.mxu0 0
      %5642 = vmatmul.mubr.bf16.gmra.mrb[0].mxu0 %v1247
      %v5643 = vpop.f32.mrb[0].mxu0
      %v5644 = vadd.f32 %v5519, %v5643
      %v5645 = vpop.f32.mrb[0].mxu0
      %v5646 = vpop.f32.mrb[0].mxu0
      %v5647 = vadd.f32 %v5519, %v5646
      %v5648 = vpop.f32.mrb[0].mxu0
      %5649 = vmatprep.mubr.bf16.mxu0 0
      %5650 = vmatmul.mubr.bf16.gmra.mrb[0].mxu0 %v1248
      %v5651 = vpop.f32.mrb[0].mxu0
      %v5652 = vadd.f32 %v5519, %v5651
      %v5653 = vpop.f32.mrb[0].mxu0
      %v5654 = vpop.f32.mrb[0].mxu0
      %v5655 = vadd.f32 %v5519, %v5654
      %v5656 = vpop.f32.mrb[0].mxu0
      %5657 = vmatprep.mubr.bf16.mxu0 0
      %5658 = vmatmul.mubr.bf16.gmra.mrb[0].mxu0 %v1249
      %v5659 = vpop.f32.mrb[0].mxu0
      %v5660 = vadd.f32 %v5519, %v5659
      %v5661 = vpop.f32.mrb[0].mxu0
      %v5662 = vpop.f32.mrb[0].mxu0
      %v5663 = vadd.f32 %v5519, %v5662
      %v5664 = vpop.f32.mrb[0].mxu0
      %5665 = vmatprep.mubr.bf16.mxu0 0
      %5666 = vmatmul.mubr.bf16.gmra.mrb[0].mxu0 %v1250
      %v5667 = vpop.f32.mrb[0].mxu0
      %v5668 = vadd.f32 %v5519, %v5667
      %v5669 = vpop.f32.mrb[0].mxu0
      %v5670 = vpop.f32.mrb[0].mxu0
      %v5671 = vadd.f32 %v5519, %v5670
      %v5672 = vpop.f32.mrb[0].mxu0
      %5673 = vmatprep.mubr.bf16.mxu0 0
      %5674 = vmatmul.mubr.bf16.gmra.mrb[0].mxu0 %v1251
      %v5675 = vpop.f32.mrb[0].mxu0
      %v5676 = vadd.f32 %v5519, %v5675
      %v5677 = vpop.f32.mrb[0].mxu0
      %v5678 = vpop.f32.mrb[0].mxu0
      %v5679 = vadd.f32 %v5519, %v5678
      %v5680 = vpop.f32.mrb[0].mxu0
      %5681 = vmatprep.mubr.bf16.mxu0 0
      %5682 = vmatmul.mubr.bf16.gmra.mrb[0].mxu0 %v1252
      %v5683 = vpop.f32.mrb[0].mxu0
      %v5684 = vadd.f32 %v5519, %v5683
      %v5685 = vpop.f32.mrb[0].mxu0
      %v5686 = vpop.f32.mrb[0].mxu0
      %v5687 = vadd.f32 %v5519, %v5686
      %v5688 = vpop.f32.mrb[0].mxu0
      %5689 = vmatprep.mubr.bf16.mxu0 0
      %5690 = vmatmul.mubr.bf16.gmra.mrb[0].mxu0 %v1253
      %v5691 = vpop.f32.mrb[0].mxu0
      %v5692 = vadd.f32 %v5519, %v5691
      %v5693 = vpop.f32.mrb[0].mxu0
      %v5694 = vpop.f32.mrb[0].mxu0
      %v5695 = vadd.f32 %v5519, %v5694
      %v5696 = vpop.f32.mrb[0].mxu0
      %5697 = vmatprep.mubr.bf16.mxu0 0
      %5698 = vmatmul.mubr.bf16.gmra.mrb[0].mxu0 %v1254
      %v5699 = vpop.f32.mrb[0].mxu0
      %v5700 = vadd.f32 %v5519, %v5699
      %v5701 = vpop.f32.mrb[0].mxu0
      %v5702 = vpop.f32.mrb[0].mxu0
      %v5703 = vadd.f32 %v5519, %v5702
      %v5704 = vpop.f32.mrb[0].mxu0
      %5705 = vmatprep.mubr.bf16.mxu0 0
      %5706 = vmatmul.mubr.bf16.gmra.mrb[0].mxu0 %v1255
      %v5707 = vpop.f32.mrb[0].mxu0
      %v5708 = vadd.f32 %v5519, %v5707
      %v5709 = vpop.f32.mrb[0].mxu0
      %v5710 = vpop.f32.mrb[0].mxu0
      %v5711 = vadd.f32 %v5519, %v5710
      %v5712 = vpop.f32.mrb[0].mxu0
      %5713 = vmatprep.mubr.bf16.mxu0 0
      %5714 = vmatmul.mubr.bf16.gmra.mrb[0].mxu0 %v1256
      %v5715 = vpop.f32.mrb[0].mxu0
      %v5716 = vadd.f32 %v5519, %v5715
      %v5717 = vpop.f32.mrb[0].mxu0
      %v5718 = vpop.f32.mrb[0].mxu0
      %v5719 = vadd.f32 %v5519, %v5718
      %v5720 = vpop.f32.mrb[0].mxu0
      %5721 = vmatprep.mubr.bf16.mxu0 0
      %5722 = vmatmul.mubr.bf16.gmra.mrb[0].mxu0 %v1257
      %v5723 = vpop.f32.mrb[0].mxu0
      %v5724 = vadd.f32 %v5519, %v5723
      %v5725 = vpop.f32.mrb[0].mxu0
      %v5726 = vpop.f32.mrb[0].mxu0
      %v5727 = vadd.f32 %v5519, %v5726
      %v5728 = vpop.f32.mrb[0].mxu0
      %5729 = vdwg.mxu0
      %v5730 = vadd.f32 %v5466, %v5604
      %v5731 = vadd.f32 %v5467, %v5607
      %v5732 = vadd.f32 %v5468, %v5612
      %v5733 = vadd.f32 %v5469, %v5615
      %v5734 = vadd.f32 %v5470, %v5620
      %v5735 = vadd.f32 %v5471, %v5623
      %v5736 = vadd.f32 %v5472, %v5628
      %v5737 = vadd.f32 %v5473, %v5631
      %v5738 = vadd.f32 %v5474, %v5636
      %v5739 = vadd.f32 %v5475, %v5639
      %v5740 = vadd.f32 %v5476, %v5644
      %v5741 = vadd.f32 %v5477, %v5647
      %v5742 = vadd.f32 %v5478, %v5652
      %v5743 = vadd.f32 %v5479, %v5655
      %v5744 = vadd.f32 %v5480, %v5660
      %v5745 = vadd.f32 %v5481, %v5663
      %v5746 = vadd.f32 %v5482, %v5668
      %v5747 = vadd.f32 %v5483, %v5671
      %v5748 = vadd.f32 %v5484, %v5676
      %v5749 = vadd.f32 %v5485, %v5679
      %v5750 = vadd.f32 %v5486, %v5684
      %v5751 = vadd.f32 %v5487, %v5687
      %v5752 = vadd.f32 %v5488, %v5692
      %v5753 = vadd.f32 %v5489, %v5695
      %v5754 = vadd.f32 %v5490, %v5700
      %v5755 = vadd.f32 %v5491, %v5703
      %v5756 = vadd.f32 %v5492, %v5708
      %v5757 = vadd.f32 %v5493, %v5711
      %v5758 = vadd.f32 %v5494, %v5716
      %v5759 = vadd.f32 %v5495, %v5719
      %v5760 = vadd.f32 %v5496, %v5724
      %v5761 = vadd.f32 %v5497, %v5727
      %v5762 = vpack.c.bf16 %v5731, %v5730
      %v5763 = vpack.c.bf16 %v5733, %v5732
      %v5764 = vpack.c.bf16 %v5735, %v5734
      %v5765 = vpack.c.bf16 %v5737, %v5736
      %v5766 = vpack.c.bf16 %v5739, %v5738
      %v5767 = vpack.c.bf16 %v5741, %v5740
      %v5768 = vpack.c.bf16 %v5743, %v5742
      %v5769 = vpack.c.bf16 %v5745, %v5744
      %v5770 = vpack.c.bf16 %v5747, %v5746
      %v5771 = vpack.c.bf16 %v5749, %v5748
      %v5772 = vpack.c.bf16 %v5751, %v5750
      %v5773 = vpack.c.bf16 %v5753, %v5752
      %v5774 = vpack.c.bf16 %v5755, %v5754
      %v5775 = vpack.c.bf16 %v5757, %v5756
      %v5776 = vpack.c.bf16 %v5759, %v5758
      %v5777 = vpack.c.bf16 %v5761, %v5760
      %v5794 = vunpack.c.l.b16 %v5762
      %v5795 = vunpack.c.h.b16 %v5762
      %v5796 = vunpack.c.l.b16 %v5763
      %v5797 = vunpack.c.h.b16 %v5763
      %v5798 = vunpack.c.l.b16 %v5764
      %v5799 = vunpack.c.h.b16 %v5764
      %v5800 = vunpack.c.l.b16 %v5765
      %v5801 = vunpack.c.h.b16 %v5765
      %v5802 = vunpack.c.l.b16 %v5766
      %v5803 = vunpack.c.h.b16 %v5766
      %v5804 = vunpack.c.l.b16 %v5767
      %v5805 = vunpack.c.h.b16 %v5767
      %v5806 = vunpack.c.l.b16 %v5768
      %v5807 = vunpack.c.h.b16 %v5768
      %v5808 = vunpack.c.l.b16 %v5769
      %v5809 = vunpack.c.h.b16 %v5769
      %v5810 = vunpack.c.l.b16 %v5770
      %v5811 = vunpack.c.h.b16 %v5770
      %v5812 = vunpack.c.l.b16 %v5771
      %v5813 = vunpack.c.h.b16 %v5771
      %v5814 = vunpack.c.l.b16 %v5772
      %v5815 = vunpack.c.h.b16 %v5772
      %v5816 = vunpack.c.l.b16 %v5773
      %v5817 = vunpack.c.h.b16 %v5773
      %v5818 = vunpack.c.l.b16 %v5774
      %v5819 = vunpack.c.h.b16 %v5774
      %v5820 = vunpack.c.l.b16 %v5775
      %v5821 = vunpack.c.h.b16 %v5775
      %v5822 = vunpack.c.l.b16 %v5776
      %v5823 = vunpack.c.h.b16 %v5776
      %v5824 = vunpack.c.l.b16 %v5777
      %v5825 = vunpack.c.h.b16 %v5777
      %v5826 = vpack.c.b16 %v5794, %v5794
      %v5827 = vpack.c.b16 %v5795, %v5795
      %v5828 = vpack.c.b16 %v5796, %v5796
      %v5829 = vpack.c.b16 %v5797, %v5797
      %v5830 = vpack.c.b16 %v5798, %v5798
      %v5831 = vpack.c.b16 %v5799, %v5799
      %v5832 = vpack.c.b16 %v5800, %v5800
      %v5833 = vpack.c.b16 %v5801, %v5801
      %v5834 = vpack.c.b16 %v5802, %v5802
      %v5835 = vpack.c.b16 %v5803, %v5803
      %v5836 = vpack.c.b16 %v5804, %v5804
      %v5837 = vpack.c.b16 %v5805, %v5805
      %v5838 = vpack.c.b16 %v5806, %v5806
      %v5839 = vpack.c.b16 %v5807, %v5807
      %v5840 = vpack.c.b16 %v5808, %v5808
      %v5841 = vpack.c.b16 %v5809, %v5809
      %v5842 = vpack.c.b16 %v5810, %v5810
      %v5843 = vpack.c.b16 %v5811, %v5811
      %v5844 = vpack.c.b16 %v5812, %v5812
      %v5845 = vpack.c.b16 %v5813, %v5813
      %v5846 = vpack.c.b16 %v5814, %v5814
      %v5847 = vpack.c.b16 %v5815, %v5815
      %v5848 = vpack.c.b16 %v5816, %v5816
      %v5849 = vpack.c.b16 %v5817, %v5817
      %v5850 = vpack.c.b16 %v5818, %v5818
      %v5851 = vpack.c.b16 %v5819, %v5819
      %v5852 = vpack.c.b16 %v5820, %v5820
      %v5853 = vpack.c.b16 %v5821, %v5821
      %v5854 = vpack.c.b16 %v5822, %v5822
      %v5855 = vpack.c.b16 %v5823, %v5823
      %v5856 = vpack.c.b16 %v5824, %v5824
      %v5857 = vpack.c.b16 %v5825, %v5825
      %5890 = vst [vmem:[%s278] sm:$0xf] %v5826
      %5891 = vst [vmem:[%s278 + $0x4] sm:$0xf] %v5827
      %5892 = vst [vmem:[%s278 + $0x8] sm:$0xf] %v5828
      %5893 = vst [vmem:[%s278 + $0xc] sm:$0xf] %v5829
      %5894 = vst [vmem:[%s278 + $0x10] sm:$0xf] %v5830
      %5895 = vst [vmem:[%s278 + $0x14] sm:$0xf] %v5831
      %5896 = vst [vmem:[%s278 + $0x18] sm:$0xf] %v5832
      %5897 = vst [vmem:[%s278 + $0x1c] sm:$0xf] %v5833
      %5898 = vst [vmem:[%s278 + $0x20] sm:$0xf] %v5834
      %5899 = vst [vmem:[%s278 + $0x24] sm:$0xf] %v5835
      %5900 = vst [vmem:[%s278 + $0x28] sm:$0xf] %v5836
      %5901 = vst [vmem:[%s278 + $0x2c] sm:$0xf] %v5837
      %5902 = vst [vmem:[%s278 + $0x30] sm:$0xf] %v5838
      %5903 = vst [vmem:[%s278 + $0x34] sm:$0xf] %v5839
      %5904 = vst [vmem:[%s278 + $0x38] sm:$0xf] %v5840
      %5905 = vst [vmem:[%s278 + $0x3c] sm:$0xf] %v5841
      %5906 = vst [vmem:[%s278 + $0x40] sm:$0xf] %v5842
      %5907 = vst [vmem:[%s278 + $0x44] sm:$0xf] %v5843
      %5908 = vst [vmem:[%s278 + $0x48] sm:$0xf] %v5844
      %5909 = vst [vmem:[%s278 + $0x4c] sm:$0xf] %v5845
      %5910 = vst [vmem:[%s278 + $0x50] sm:$0xf] %v5846
      %5911 = vst [vmem:[%s278 + $0x54] sm:$0xf] %v5847
      %5912 = vst [vmem:[%s278 + $0x58] sm:$0xf] %v5848
      %5913 = vst [vmem:[%s278 + $0x5c] sm:$0xf] %v5849
      %5914 = vst [vmem:[%s278 + $0x60] sm:$0xf] %v5850
      %5915 = vst [vmem:[%s278 + $0x64] sm:$0xf] %v5851
      %5916 = vst [vmem:[%s278 + $0x68] sm:$0xf] %v5852
      %5917 = vst [vmem:[%s278 + $0x6c] sm:$0xf] %v5853
      %5918 = vst [vmem:[%s278 + $0x70] sm:$0xf] %v5854
      %5919 = vst [vmem:[%s278 + $0x74] sm:$0xf] %v5855
      %5920 = vst [vmem:[%s278 + $0x78] sm:$0xf] %v5856
      %5921 = vst [vmem:[%s278 + $0x7c] sm:$0xf] %v5857
      %p5922 = scmp.lt.s32.totalorder %s18, 1
      %s5923 = scalar_select %p5922, %s18, 1
      %s5924 = smul.addr %s5923, 32
      %s5925 = smul.addr %s5924, 4
      %s5926 = scalar_lea.vmem %s7, %s5925
      // Predicated region
      $region49: #{residual_block_forward.1} parent=47 // pred_check
        %p5927 = pneg %p188
      $region50: #{residual_block_forward.1} parent=47 // pred_check_branch
        %5929 = sbr.rel (%p5927) target = $region52
      $region51: #{residual_block_forward.1} parent=47 // pred_region
        _
      $region52: #{residual_block_forward.1} parent=47 // pred_fallthru
        _
    $region48: #{residual_block_forward.1} parent=5 // pred_fallthru
      _
    %p5930 = scmp.le.s32.totalorder 2, %s13
    // Predicated region
    $region53: #{residual_block_forward.1} parent=5 // pred_check
      %p5931 = pneg %p5930
    $region54: #{residual_block_forward.1} parent=5 // pred_check_branch
      %5933 = sbr.rel (%p5931) target = $region56
    $region55: #{residual_block_forward.1} parent=5 // pred_region
      %s5934 = ssub.s32 %s13, 2
      // Predicated region
      $region57: #{residual_block_forward.1} parent=55 // pred_check
        %p5935 = pneg %p194
      $region58: #{residual_block_forward.1} parent=55 // pred_check_branch
        %5937 = sbr.rel (%p5935) target = $region60
      $region59: #{residual_block_forward.1} parent=55 // pred_region
        %p5938 = scmp.lt.s32.totalorder %s19, 1
        %s5939 = scalar_select %p5938, %s19, 1
        %s5940 = smul.addr %s5939, 32
        %s5941 = smul.addr %s5940, 4
        %s5942 = scalar_lea.vmem %s7, %s5941
      $region60: #{residual_block_forward.1} parent=55 // pred_fallthru
        _
    $region56: #{residual_block_forward.1} parent=5 // pred_fallthru
      _
  $region6: #{residual_block_forward.1} parent=0 // loop_footer
    %s17 = sadd.s32 1, %s13
  $region7: #{residual_block_forward.1} parent=0 // loop_footer_branch
    %12 = sbr.rel target = $region3
  $region8: #{residual_block_forward.1} parent=0 // loop_exit
    _

</llo_original>
